<compile_context>
chip_gen: v6e
topology: v6e:2x2x1
jax: 0.10.0
libtpu: 0.0.40
codegen_flags: <defaults>
</compile_context>

<pallas_src>
import functools

import jax
import jax.numpy as jnp
from jax.experimental import pallas as pl
from jax.experimental.pallas import tpu as pltpu  # noqa: F401  (kept for easy vmem_limit tuning)


def _leaky(v, slope):
    # LeakyReLU without a select: max(v, slope*v) for slope in (0, 1)
    return jnp.maximum(v, slope * v)


def gat_fused_kernel(adj_ref, x_ref, prm_ref, o_ref, *,
                     layout, heads, dims, n_nodes, negative_slope):
    f32 = jnp.float32
    N = n_nodes
    neg = f32(-1e30)
    slope = f32(negative_slope)

    def P(name, rows=None, cols=None):
        # Static slice of the packed parameter slab (row offsets are 8-aligned).
        off, (r, c) = layout[name]
        rr = r if rows is None else rows
        cc = c if cols is None else cols
        return prm_ref[off:off + rr, :cc]

    # ---- head-stacking constants (depend only on H, N -> smaller-H layers take prefixes) ----
    TILE = P("TILE")                                                   # (N, Hmax*N): [j, h*N+s] = [j==s]
    # additive adjacency mask tiled across heads on the lane axis, computed ONCE:
    adj_t = jnp.dot(adj_ref[...], TILE, preferred_element_type=f32)    # (N, Hmax*N) tiled adjacency
    mask_all = jnp.where(adj_t > 0.0, f32(0.0), neg)                   # 0 on edges, -1e30 elsewhere
    ones_nn = jnp.ones((N, N), f32)

    def elu(v):                                                        # F.elu, alpha = 1
        return jnp.where(v > 0.0, v, jnp.exp(v) - 1.0)

    def gat_layer(x, li, H, D):
        HD, HN = H * D, H * N
        W, AL, AR, b = P(f"W{li}"), P(f"AL{li}"), P(f"AR{li}"), P(f"b{li}")
        R = P("R", rows=H, cols=HN)                                    # (H, H*N) block-ones
        TIL = P("TILE", cols=HN)                                       # (N, H*N) tiled identity
        TILT = P("TILET", rows=HN)                                     # (H*N, N) stacked identity
        BD = P(f"BD_{H}_{D}")                                          # (H*N, H*D) block-diag 0/1
        RD = P(f"RD_{H}_{D}")                                          # (H, H*D) block-ones
        mask = mask_all[:, :HN]

        feat = jnp.dot(x, W, preferred_element_type=f32)               # (N, H*D) fused projection
        er = jnp.dot(feat, AR, preferred_element_type=f32)             # (N, H) destination terms
        el = jnp.dot(feat, AL, preferred_element_type=f32)             # (N, H) source terms

        # scores for ALL heads, heads stacked on lanes: e[dst, h*N + src] = er[dst,h] + el[src,h]
        e_dst = jnp.dot(er, R, preferred_element_type=f32)             # (N, H*N)
        s = jnp.dot(el, R, preferred_element_type=f32) * TIL           # keep only lane src == row
        e_src = jnp.dot(ones_nn, s, preferred_element_type=f32)        # (N, H*N), same for every dst
        e = _leaky(e_dst + e_src, slope)

        # exact per-head row max (leaky is monotone): m[dst,h] = leaky(er[dst,h] + max_src el[src,h])
        el_max = jnp.max(el, axis=0, keepdims=True)                    # (1, H)
        m = _leaky(er + el_max, slope)                                 # (N, H)
        m_b = jnp.dot(m, R, preferred_element_type=f32)                # (N, H*N)

        p = jnp.exp(e + mask - m_b)                                    # masked edges -> exp(-1e30) = 0

        # aggregate every head with one block-diagonal matmul; denominator on the MXU too
        feat_bd = jnp.dot(TILT, feat, preferred_element_type=f32) * BD  # (H*N, H*D) block-diag feats
        agg = jnp.dot(p, feat_bd, preferred_element_type=f32)           # (N, H*D)
        den = jax.lax.dot_general(p, R, (((1,), (1,)), ((), ())),
                                  preferred_element_type=f32)           # (N, H) per-head row sums
        inv_b = jnp.dot(pl.reciprocal(den, approx=True), RD,
                        preferred_element_type=f32)                     # (N, H*D) broadcast 1/den
        return agg * inv_b + b                                          # + bias (broadcast over rows)

    H0, H1, H2 = heads
    D0, D1, D2 = dims

    x = x_ref[...]
    # layer 0: GATConv(in, D0, H0), no residual, ELU, flatten (heads already on lanes)
    h0 = elu(gat_layer(x, 0, H0, D0))
    # layer 1: GATConv(H0*D0, D1, H1), identity residual (in_feats == H1*D1 in DGL), ELU
    h1 = elu(gat_layer(h0, 1, H1, D1) + h0)
    # layer 2: GATConv(H1*D1, D2, H2), linear residual, no activation, mean over heads
    slab2 = gat_layer(h1, 2, H2, D2) + jnp.dot(h1, P("resW2"), preferred_element_type=f32)
    acc = slab2[:, 0:D2]
    for hh in range(1, H2):
        acc = acc + slab2[:, hh * D2:(hh + 1) * D2]
    o_ref[...] = acc * f32(1.0 / H2)


def gat_forward(adj, x, kp):
    """Full 3-layer GAT forward in a single pallas_call. Returns (N, out_size)."""
    N, in_size = x.shape
    heads, dims = kp["heads"], kp["dims"]
    D2 = dims[2]
    slab = kp["slab"]

    # Rough cost hint so XLA schedules the tiny custom call sensibly (advisory only).
    flops = 0
    f_in = in_size
    for H, D in zip(heads, dims):
        HD, HN = H * D, H * N
        flops += 2 * N * f_in * HD                    # projection
        flops += 2 * 2 * N * HD * H                   # el / er
        flops += 3 * 2 * N * H * HN                   # block-ones broadcasts (e_dst, s, m_b)
        flops += 2 * N * N * HN                       # e_src gather matmul
        flops += 2 * HN * N * HD                      # feat tiling matmul
        flops += 2 * N * HN * HD                      # head aggregation
        flops += 2 * N * HN * H                       # denominators
        flops += 10 * N * HN                          # elementwise score chain
        f_in = HD
    flops += 2 * N * heads[1] * dims[1] * heads[2] * dims[2]   # layer-2 residual projection
    transcendentals = N * N * sum(heads) + N * (heads[0] * dims[0] + heads[1] * dims[1])
    bytes_accessed = 4 * (adj.size + x.size + slab.size + N * D2)

    kernel = functools.partial(gat_fused_kernel, layout=kp["layout"], heads=heads,
                               dims=dims, n_nodes=N, negative_slope=0.2)

    return pl.pallas_call(
        kernel,
        out_shape=jax.ShapeDtypeStruct((N, D2), jnp.float32),
        cost_estimate=pl.CostEstimate(flops=flops,
                                      transcendentals=transcendentals,
                                      bytes_accessed=bytes_accessed),
    )(adj, x, slab)


# ----------------------------- parameter construction ------------------------------

def init_params(key, in_size, hid_size, out_size, heads):
    """DGL-GATConv-style parameters (same distributions as before; bias key typo fixed)."""
    ks = jax.random.split(key, 13)

    def lin(k, fi, fo, scale=0.1):
        return jax.random.normal(k, (fi, fo), jnp.float32) * scale

    d0 = hid_size * heads[0]
    d1 = hid_size * heads[1]
    d2 = out_size * heads[2]
    in1, in2 = d0, d1

    params = [
        # layer 0: GATConv(in_size, hid_size, heads[0]), no residual
        dict(W=lin(ks[0], in_size, d0),
             attn_l=jax.random.normal(ks[1], (heads[0], hid_size), jnp.float32) * 0.1,
             attn_r=jax.random.normal(ks[2], (heads[0], hid_size), jnp.float32) * 0.1,
             bias=jax.random.normal(ks[3], (d0,), jnp.float32) * 0.01),
        # layer 1: GATConv(hid*heads[0], hid_size, heads[1]), residual=True
        #          in1 == heads[1]*hid_size  ->  DGL uses Identity residual
        dict(W=lin(ks[4], in1, d1),
             attn_l=jax.random.normal(ks[5], (heads[1], hid_size), jnp.float32) * 0.1,
             attn_r=jax.random.normal(ks[6], (heads[1], hid_size), jnp.float32) * 0.1,
             bias=jax.random.normal(ks[7], (d1,), jnp.float32) * 0.01),
        # layer 2: GATConv(hid*heads[1], out_size, heads[2]), residual=True
        #          in2 != heads[2]*out_size  ->  linear residual projection
        dict(W=lin(ks[8], in2, d2),
             attn_l=jax.random.normal(ks[9], (heads[2], out_size), jnp.float32) * 0.1,
             attn_r=jax.random.normal(ks[10], (heads[2], out_size), jnp.float32) * 0.1,
             res_W=lin(ks[11], in2, d2),
             bias=jax.random.normal(ks[12], (d2,), jnp.float32) * 0.01),
    ]
    return params


def prepare_params(raw, heads, dims, n_nodes):
    """One-time packing of all weights + head-stacking constants into ONE lane-padded slab."""
    N = n_nodes
    Hmax = max(heads)
    f32 = jnp.float32
    # layer 1 identity residual requires matching widths (as in the reference config)
    assert heads[0] * dims[0] == heads[1] * dims[1], "identity residual needs in == H1*D1"

    def attn_mat(a):
        # (H, D) per-head attention vector -> (H*D, H): column h holds head h's vector in its
        # D-row slice, so feat (N, H*D) @ attn_mat -> per-head score terms (N, H) in one matmul.
        H, D = a.shape
        return (jnp.eye(H, dtype=f32)[:, None, :] * a[:, :, None].astype(f32)).reshape(H * D, H)

    entries = []

    def add(name, arr):
        entries.append((name, jnp.asarray(arr, f32)))

    for i, p in enumerate(raw):
        add(f"W{i}", p["W"])                              # (F_in, H*D) fused projection
        add(f"AL{i}", attn_mat(p["attn_l"]))              # (H*D, H)
        add(f"AR{i}", attn_mat(p["attn_r"]))              # (H*D, H)
        add(f"b{i}", p["bias"].reshape(1, -1))            # (1, H*D)
    add("resW2", raw[2]["res_W"])                         # (H1*D1, H2*D2)

    eyeN = jnp.eye(N, dtype=f32)
    add("R", jnp.repeat(jnp.eye(Hmax, dtype=f32), N, axis=1))     # (Hmax, Hmax*N) block-ones
    add("TILE", jnp.tile(eyeN, (1, Hmax)))                        # (N, Hmax*N) tiled identity
    add("TILET", jnp.tile(eyeN, (Hmax, 1)))                       # (Hmax*N, N) stacked identity
    seen = set()
    for H, D in zip(heads, dims):
        if (H, D) in seen:
            continue
        seen.add((H, D))
        add(f"BD_{H}_{D}", jnp.kron(jnp.eye(H, dtype=f32), jnp.ones((N, D), f32)))  # (H*N, H*D)
        add(f"RD_{H}_{D}", jnp.repeat(jnp.eye(H, dtype=f32), D, axis=1))            # (H, H*D)

    width = max(int(a.shape[1]) for _, a in entries)
    layout, parts, off = {}, [], 0
    for name, a in entries:
        r, c = int(a.shape[0]), int(a.shape[1])
        rp = -(-r // 8) * 8                               # 8-align every row offset (sublane tile)
        layout[name] = (off, (r, c))
        parts.append(jnp.pad(a, ((0, rp - r), (0, width - c))))
        off += rp
    slab = jnp.concatenate(parts, axis=0)                 # one (rows, width) f32 slab -> one DMA

    return {"slab": slab, "layout": layout, "heads": tuple(heads), "dims": tuple(dims)}


if __name__ == "__main__":
    key = jax.random.PRNGKey(0)
    k_adj, k_x, k_p = jax.random.split(key, 3)

    N = 16
    in_size, hid_size, out_size = 16, 8, 4
    heads = (4, 4, 2)

    # synthetic graph: random sparse edges + self-loops (every dst has >= 1 incoming edge,
    # which keeps the -1e30 edge-softmax mask safe)
    adj = (jax.random.uniform(k_adj, (N, N)) < 0.3).astype(jnp.float32)
    adj = jnp.maximum(adj, jnp.eye(N, dtype=jnp.float32))

    x = jax.random.normal(k_x, (N, in_size), jnp.float32)

    raw_params = init_params(k_p, in_size, hid_size, out_size, heads)
    kernel_params = prepare_params(raw_params, heads, (hid_size, hid_size, out_size), N)

    out = gat_forward(adj, x, kernel_params)
    out = jax.block_until_ready(out)

    assert out.shape == (N, out_size), out.shape
    assert bool(jnp.all(jnp.isfinite(out)))
    print("KERNEL_OK")
</pallas_src>

<mosaic_0001>
module attributes {stable_mosaic.version = 11 : i64} {
  func.func @gat_fused_kernel(%arg0: memref<16x16xf32, #tpu.memory_space<vmem>>, %arg1: memref<16x16xf32, #tpu.memory_space<vmem>>, %arg2: memref<480x64xf32, #tpu.memory_space<vmem>>, %arg3: memref<16x4xf32, #tpu.memory_space<vmem>>) attributes {dimension_semantics = [], scalar_prefetch = 0 : i64, scratch_operands = 0 : i64, tpu.core_type = #tpu.core_type<tc>} {
    %c288 = arith.constant 288 : index
    %c0 = arith.constant 0 : index
    %0 = vector.load %arg2[%c288, %c0] : memref<480x64xf32, #tpu.memory_space<vmem>>, vector<16x64xf32>
    %c0_0 = arith.constant 0 : index
    %c0_1 = arith.constant 0 : index
    %1 = vector.load %arg0[%c0_0, %c0_1] : memref<16x16xf32, #tpu.memory_space<vmem>>, vector<16x16xf32>
    %cst = arith.constant dense<0.000000e+00> : vector<16x64xf32>
    %2 = tpu.matmul %1, %0, %cst {dimension_numbers = #tpu.dot_dimension_numbers<[1], [0], [0], [1], [0, 0, 1, 1], [], []>} : vector<16x16xf32>, vector<16x64xf32>, vector<16x64xf32> -> vector<16x64xf32>
    %cst_2 = arith.constant 0.000000e+00 : f32
    %3 = vector.broadcast %cst_2 : f32 to vector<16x64xf32>
    %4 = arith.cmpf ogt, %2, %3 : vector<16x64xf32>
    %cst_3 = arith.constant 0.000000e+00 : f32
    %cst_4 = arith.constant -1.000000e+30 : f32
    %5 = vector.broadcast %cst_3 : f32 to vector<16x64xf32>
    %6 = vector.broadcast %cst_4 : f32 to vector<16x64xf32>
    %7 = arith.select %4, %5, %6 : vector<16x64xi1>, vector<16x64xf32>
    %cst_5 = arith.constant 1.000000e+00 : f32
    %8 = vector.broadcast %cst_5 : f32 to vector<16x16xf32>
    %c0_6 = arith.constant 0 : index
    %c0_7 = arith.constant 0 : index
    %9 = vector.load %arg1[%c0_6, %c0_7] : memref<16x16xf32, #tpu.memory_space<vmem>>, vector<16x16xf32>
    %c0_8 = arith.constant 0 : index
    %c0_9 = arith.constant 0 : index
    %10 = vector.load %arg2[%c0_8, %c0_9] : memref<480x64xf32, #tpu.memory_space<vmem>>, vector<16x32xf32>
    %c16 = arith.constant 16 : index
    %c0_10 = arith.constant 0 : index
    %11 = vector.load %arg2[%c16, %c0_10] : memref<480x64xf32, #tpu.memory_space<vmem>>, vector<32x4xf32>
    %c48 = arith.constant 48 : index
    %c0_11 = arith.constant 0 : index
    %12 = vector.load %arg2[%c48, %c0_11] : memref<480x64xf32, #tpu.memory_space<vmem>>, vector<32x4xf32>
    %c80 = arith.constant 80 : index
    %c0_12 = arith.constant 0 : index
    %13 = vector.load %arg2[%c80, %c0_12] : memref<480x64xf32, #tpu.memory_space<vmem>>, vector<1x32xf32>
    %c280 = arith.constant 280 : index
    %c0_13 = arith.constant 0 : index
    %14 = vector.load %arg2[%c280, %c0_13] : memref<480x64xf32, #tpu.memory_space<vmem>>, vector<4x64xf32>
    %c288_14 = arith.constant 288 : index
    %c0_15 = arith.constant 0 : index
    %15 = vector.load %arg2[%c288_14, %c0_15] : memref<480x64xf32, #tpu.memory_space<vmem>>, vector<16x64xf32>
    %c304 = arith.constant 304 : index
    %c0_16 = arith.constant 0 : index
    %16 = vector.load %arg2[%c304, %c0_16] : memref<480x64xf32, #tpu.memory_space<vmem>>, vector<64x16xf32>
    %c368 = arith.constant 368 : index
    %c0_17 = arith.constant 0 : index
    %17 = vector.load %arg2[%c368, %c0_17] : memref<480x64xf32, #tpu.memory_space<vmem>>, vector<64x32xf32>
    %c432 = arith.constant 432 : index
    %c0_18 = arith.constant 0 : index
    %18 = vector.load %arg2[%c432, %c0_18] : memref<480x64xf32, #tpu.memory_space<vmem>>, vector<4x32xf32>
    %cst_19 = arith.constant dense<0.000000e+00> : vector<16x32xf32>
    %19 = tpu.matmul %9, %10, %cst_19 {dimension_numbers = #tpu.dot_dimension_numbers<[1], [0], [0], [1], [0, 0, 1, 1], [], []>} : vector<16x16xf32>, vector<16x32xf32>, vector<16x32xf32> -> vector<16x32xf32>
    %cst_20 = arith.constant dense<0.000000e+00> : vector<16x4xf32>
    %20 = tpu.matmul %19, %12, %cst_20 {dimension_numbers = #tpu.dot_dimension_numbers<[1], [0], [0], [1], [0, 0, 1, 1], [], []>} : vector<16x32xf32>, vector<32x4xf32>, vector<16x4xf32> -> vector<16x4xf32>
    %cst_21 = arith.constant dense<0.000000e+00> : vector<16x4xf32>
    %21 = tpu.matmul %19, %11, %cst_21 {dimension_numbers = #tpu.dot_dimension_numbers<[1], [0], [0], [1], [0, 0, 1, 1], [], []>} : vector<16x32xf32>, vector<32x4xf32>, vector<16x4xf32> -> vector<16x4xf32>
    %cst_22 = arith.constant dense<0.000000e+00> : vector<16x64xf32>
    %22 = tpu.matmul %20, %14, %cst_22 {dimension_numbers = #tpu.dot_dimension_numbers<[1], [0], [0], [1], [0, 0, 1, 1], [], []>} : vector<16x4xf32>, vector<4x64xf32>, vector<16x64xf32> -> vector<16x64xf32>
    %cst_23 = arith.constant dense<0.000000e+00> : vector<16x64xf32>
    %23 = tpu.matmul %21, %14, %cst_23 {dimension_numbers = #tpu.dot_dimension_numbers<[1], [0], [0], [1], [0, 0, 1, 1], [], []>} : vector<16x4xf32>, vector<4x64xf32>, vector<16x64xf32> -> vector<16x64xf32>
    %24 = arith.mulf %23, %15 : vector<16x64xf32>
    %cst_24 = arith.constant dense<0.000000e+00> : vector<16x64xf32>
    %25 = tpu.matmul %8, %24, %cst_24 {dimension_numbers = #tpu.dot_dimension_numbers<[1], [0], [0], [1], [0, 0, 1, 1], [], []>} : vector<16x16xf32>, vector<16x64xf32>, vector<16x64xf32> -> vector<16x64xf32>
    %26 = arith.addf %22, %25 : vector<16x64xf32>
    %cst_25 = arith.constant 2.000000e-01 : f32
    %27 = vector.broadcast %cst_25 : f32 to vector<16x64xf32>
    %28 = arith.mulf %27, %26 : vector<16x64xf32>
    %29 = arith.maximumf %26, %28 : vector<16x64xf32>
    %cst_26 = arith.constant dense<0xFF800000> : vector<4xf32>
    %30 = vector.multi_reduction <maximumf>, %21, %cst_26 [0] : vector<16x4xf32> to vector<4xf32>
    %31 = vector.shape_cast %30 : vector<4xf32> to vector<1x4xf32>
    %32 = vector.broadcast %31 : vector<1x4xf32> to vector<16x4xf32>
    %33 = arith.addf %20, %32 : vector<16x4xf32>
    %cst_27 = arith.constant 2.000000e-01 : f32
    %34 = vector.broadcast %cst_27 : f32 to vector<16x4xf32>
    %35 = arith.mulf %34, %33 : vector<16x4xf32>
    %36 = arith.maximumf %33, %35 : vector<16x4xf32>
    %cst_28 = arith.constant dense<0.000000e+00> : vector<16x64xf32>
    %37 = tpu.matmul %36, %14, %cst_28 {dimension_numbers = #tpu.dot_dimension_numbers<[1], [0], [0], [1], [0, 0, 1, 1], [], []>} : vector<16x4xf32>, vector<4x64xf32>, vector<16x64xf32> -> vector<16x64xf32>
    %38 = arith.addf %29, %7 : vector<16x64xf32>
    %39 = arith.subf %38, %37 : vector<16x64xf32>
    %40 = math.exp %39 : vector<16x64xf32>
    %cst_29 = arith.constant dense<0.000000e+00> : vector<64x32xf32>
    %41 = tpu.matmul %16, %19, %cst_29 {dimension_numbers = #tpu.dot_dimension_numbers<[1], [0], [0], [1], [0, 0, 1, 1], [], []>} : vector<64x16xf32>, vector<16x32xf32>, vector<64x32xf32> -> vector<64x32xf32>
    %42 = arith.mulf %41, %17 : vector<64x32xf32>
    %cst_30 = arith.constant dense<0.000000e+00> : vector<16x32xf32>
    %43 = tpu.matmul %40, %42, %cst_30 {dimension_numbers = #tpu.dot_dimension_numbers<[1], [0], [0], [1], [0, 0, 1, 1], [], []>} : vector<16x64xf32>, vector<64x32xf32>, vector<16x32xf32> -> vector<16x32xf32>
    %cst_31 = arith.constant dense<0.000000e+00> : vector<16x4xf32>
    %44 = tpu.matmul %40, %14, %cst_31 {dimension_numbers = #tpu.dot_dimension_numbers<[1], [1], [0], [0], [0, 0, 1, 0], [], []>} : vector<16x64xf32>, vector<4x64xf32>, vector<16x4xf32> -> vector<16x4xf32>
    %45 = tpu.reciprocal %44 {approx = true} : vector<16x4xf32> -> vector<16x4xf32>
    %cst_32 = arith.constant dense<0.000000e+00> : vector<16x32xf32>
    %46 = tpu.matmul %45, %18, %cst_32 {dimension_numbers = #tpu.dot_dimension_numbers<[1], [0], [0], [1], [0, 0, 1, 1], [], []>} : vector<16x4xf32>, vector<4x32xf32>, vector<16x32xf32> -> vector<16x32xf32>
    %47 = arith.mulf %43, %46 : vector<16x32xf32>
    %48 = vector.broadcast %13 : vector<1x32xf32> to vector<16x32xf32>
    %49 = arith.addf %47, %48 : vector<16x32xf32>
    %cst_33 = arith.constant 0.000000e+00 : f32
    %50 = vector.broadcast %cst_33 : f32 to vector<16x32xf32>
    %51 = arith.cmpf ogt, %49, %50 : vector<16x32xf32>
    %52 = math.exp %49 : vector<16x32xf32>
    %cst_34 = arith.constant 1.000000e+00 : f32
    %53 = vector.broadcast %cst_34 : f32 to vector<16x32xf32>
    %54 = arith.subf %52, %53 : vector<16x32xf32>
    %55 = arith.select %51, %49, %54 : vector<16x32xi1>, vector<16x32xf32>
    %c88 = arith.constant 88 : index
    %c0_35 = arith.constant 0 : index
    %56 = vector.load %arg2[%c88, %c0_35] : memref<480x64xf32, #tpu.memory_space<vmem>>, vector<32x32xf32>
    %c120 = arith.constant 120 : index
    %c0_36 = arith.constant 0 : index
    %57 = vector.load %arg2[%c120, %c0_36] : memref<480x64xf32, #tpu.memory_space<vmem>>, vector<32x4xf32>
    %c152 = arith.constant 152 : index
    %c0_37 = arith.constant 0 : index
    %58 = vector.load %arg2[%c152, %c0_37] : memref<480x64xf32, #tpu.memory_space<vmem>>, vector<32x4xf32>
    %c184 = arith.constant 184 : index
    %c0_38 = arith.constant 0 : index
    %59 = vector.load %arg2[%c184, %c0_38] : memref<480x64xf32, #tpu.memory_space<vmem>>, vector<1x32xf32>
    %c280_39 = arith.constant 280 : index
    %c0_40 = arith.constant 0 : index
    %60 = vector.load %arg2[%c280_39, %c0_40] : memref<480x64xf32, #tpu.memory_space<vmem>>, vector<4x64xf32>
    %c288_41 = arith.constant 288 : index
    %c0_42 = arith.constant 0 : index
    %61 = vector.load %arg2[%c288_41, %c0_42] : memref<480x64xf32, #tpu.memory_space<vmem>>, vector<16x64xf32>
    %c304_43 = arith.constant 304 : index
    %c0_44 = arith.constant 0 : index
    %62 = vector.load %arg2[%c304_43, %c0_44] : memref<480x64xf32, #tpu.memory_space<vmem>>, vector<64x16xf32>
    %c368_45 = arith.constant 368 : index
    %c0_46 = arith.constant 0 : index
    %63 = vector.load %arg2[%c368_45, %c0_46] : memref<480x64xf32, #tpu.memory_space<vmem>>, vector<64x32xf32>
    %c432_47 = arith.constant 432 : index
    %c0_48 = arith.constant 0 : index
    %64 = vector.load %arg2[%c432_47, %c0_48] : memref<480x64xf32, #tpu.memory_space<vmem>>, vector<4x32xf32>
    %cst_49 = arith.constant dense<0.000000e+00> : vector<16x32xf32>
    %65 = tpu.matmul %55, %56, %cst_49 {dimension_numbers = #tpu.dot_dimension_numbers<[1], [0], [0], [1], [0, 0, 1, 1], [], []>} : vector<16x32xf32>, vector<32x32xf32>, vector<16x32xf32> -> vector<16x32xf32>
    %cst_50 = arith.constant dense<0.000000e+00> : vector<16x4xf32>
    %66 = tpu.matmul %65, %58, %cst_50 {dimension_numbers = #tpu.dot_dimension_numbers<[1], [0], [0], [1], [0, 0, 1, 1], [], []>} : vector<16x32xf32>, vector<32x4xf32>, vector<16x4xf32> -> vector<16x4xf32>
    %cst_51 = arith.constant dense<0.000000e+00> : vector<16x4xf32>
    %67 = tpu.matmul %65, %57, %cst_51 {dimension_numbers = #tpu.dot_dimension_numbers<[1], [0], [0], [1], [0, 0, 1, 1], [], []>} : vector<16x32xf32>, vector<32x4xf32>, vector<16x4xf32> -> vector<16x4xf32>
    %cst_52 = arith.constant dense<0.000000e+00> : vector<16x64xf32>
    %68 = tpu.matmul %66, %60, %cst_52 {dimension_numbers = #tpu.dot_dimension_numbers<[1], [0], [0], [1], [0, 0, 1, 1], [], []>} : vector<16x4xf32>, vector<4x64xf32>, vector<16x64xf32> -> vector<16x64xf32>
    %cst_53 = arith.constant dense<0.000000e+00> : vector<16x64xf32>
    %69 = tpu.matmul %67, %60, %cst_53 {dimension_numbers = #tpu.dot_dimension_numbers<[1], [0], [0], [1], [0, 0, 1, 1], [], []>} : vector<16x4xf32>, vector<4x64xf32>, vector<16x64xf32> -> vector<16x64xf32>
    %70 = arith.mulf %69, %61 : vector<16x64xf32>
    %cst_54 = arith.constant dense<0.000000e+00> : vector<16x64xf32>
    %71 = tpu.matmul %8, %70, %cst_54 {dimension_numbers = #tpu.dot_dimension_numbers<[1], [0], [0], [1], [0, 0, 1, 1], [], []>} : vector<16x16xf32>, vector<16x64xf32>, vector<16x64xf32> -> vector<16x64xf32>
    %72 = arith.addf %68, %71 : vector<16x64xf32>
    %cst_55 = arith.constant 2.000000e-01 : f32
    %73 = vector.broadcast %cst_55 : f32 to vector<16x64xf32>
    %74 = arith.mulf %73, %72 : vector<16x64xf32>
    %75 = arith.maximumf %72, %74 : vector<16x64xf32>
    %cst_56 = arith.constant dense<0xFF800000> : vector<4xf32>
    %76 = vector.multi_reduction <maximumf>, %67, %cst_56 [0] : vector<16x4xf32> to vector<4xf32>
    %77 = vector.shape_cast %76 : vector<4xf32> to vector<1x4xf32>
    %78 = vector.broadcast %77 : vector<1x4xf32> to vector<16x4xf32>
    %79 = arith.addf %66, %78 : vector<16x4xf32>
    %cst_57 = arith.constant 2.000000e-01 : f32
    %80 = vector.broadcast %cst_57 : f32 to vector<16x4xf32>
    %81 = arith.mulf %80, %79 : vector<16x4xf32>
    %82 = arith.maximumf %79, %81 : vector<16x4xf32>
    %cst_58 = arith.constant dense<0.000000e+00> : vector<16x64xf32>
    %83 = tpu.matmul %82, %60, %cst_58 {dimension_numbers = #tpu.dot_dimension_numbers<[1], [0], [0], [1], [0, 0, 1, 1], [], []>} : vector<16x4xf32>, vector<4x64xf32>, vector<16x64xf32> -> vector<16x64xf32>
    %84 = arith.addf %75, %7 : vector<16x64xf32>
    %85 = arith.subf %84, %83 : vector<16x64xf32>
    %86 = math.exp %85 : vector<16x64xf32>
    %cst_59 = arith.constant dense<0.000000e+00> : vector<64x32xf32>
    %87 = tpu.matmul %62, %65, %cst_59 {dimension_numbers = #tpu.dot_dimension_numbers<[1], [0], [0], [1], [0, 0, 1, 1], [], []>} : vector<64x16xf32>, vector<16x32xf32>, vector<64x32xf32> -> vector<64x32xf32>
    %88 = arith.mulf %87, %63 : vector<64x32xf32>
    %cst_60 = arith.constant dense<0.000000e+00> : vector<16x32xf32>
    %89 = tpu.matmul %86, %88, %cst_60 {dimension_numbers = #tpu.dot_dimension_numbers<[1], [0], [0], [1], [0, 0, 1, 1], [], []>} : vector<16x64xf32>, vector<64x32xf32>, vector<16x32xf32> -> vector<16x32xf32>
    %cst_61 = arith.constant dense<0.000000e+00> : vector<16x4xf32>
    %90 = tpu.matmul %86, %60, %cst_61 {dimension_numbers = #tpu.dot_dimension_numbers<[1], [1], [0], [0], [0, 0, 1, 0], [], []>} : vector<16x64xf32>, vector<4x64xf32>, vector<16x4xf32> -> vector<16x4xf32>
    %91 = tpu.reciprocal %90 {approx = true} : vector<16x4xf32> -> vector<16x4xf32>
    %cst_62 = arith.constant dense<0.000000e+00> : vector<16x32xf32>
    %92 = tpu.matmul %91, %64, %cst_62 {dimension_numbers = #tpu.dot_dimension_numbers<[1], [0], [0], [1], [0, 0, 1, 1], [], []>} : vector<16x4xf32>, vector<4x32xf32>, vector<16x32xf32> -> vector<16x32xf32>
    %93 = arith.mulf %89, %92 : vector<16x32xf32>
    %94 = vector.broadcast %59 : vector<1x32xf32> to vector<16x32xf32>
    %95 = arith.addf %93, %94 : vector<16x32xf32>
    %96 = arith.addf %95, %55 : vector<16x32xf32>
    %cst_63 = arith.constant 0.000000e+00 : f32
    %97 = vector.broadcast %cst_63 : f32 to vector<16x32xf32>
    %98 = arith.cmpf ogt, %96, %97 : vector<16x32xf32>
    %99 = math.exp %96 : vector<16x32xf32>
    %cst_64 = arith.constant 1.000000e+00 : f32
    %100 = vector.broadcast %cst_64 : f32 to vector<16x32xf32>
    %101 = arith.subf %99, %100 : vector<16x32xf32>
    %102 = arith.select %98, %96, %101 : vector<16x32xi1>, vector<16x32xf32>
    %c192 = arith.constant 192 : index
    %c0_65 = arith.constant 0 : index
    %103 = vector.load %arg2[%c192, %c0_65] : memref<480x64xf32, #tpu.memory_space<vmem>>, vector<32x8xf32>
    %c224 = arith.constant 224 : index
    %c0_66 = arith.constant 0 : index
    %104 = vector.load %arg2[%c224, %c0_66] : memref<480x64xf32, #tpu.memory_space<vmem>>, vector<8x2xf32>
    %c232 = arith.constant 232 : index
    %c0_67 = arith.constant 0 : index
    %105 = vector.load %arg2[%c232, %c0_67] : memref<480x64xf32, #tpu.memory_space<vmem>>, vector<8x2xf32>
    %c240 = arith.constant 240 : index
    %c0_68 = arith.constant 0 : index
    %106 = vector.load %arg2[%c240, %c0_68] : memref<480x64xf32, #tpu.memory_space<vmem>>, vector<1x8xf32>
    %c280_69 = arith.constant 280 : index
    %c0_70 = arith.constant 0 : index
    %107 = vector.load %arg2[%c280_69, %c0_70] : memref<480x64xf32, #tpu.memory_space<vmem>>, vector<2x32xf32>
    %c288_71 = arith.constant 288 : index
    %c0_72 = arith.constant 0 : index
    %108 = vector.load %arg2[%c288_71, %c0_72] : memref<480x64xf32, #tpu.memory_space<vmem>>, vector<16x32xf32>
    %c304_73 = arith.constant 304 : index
    %c0_74 = arith.constant 0 : index
    %109 = vector.load %arg2[%c304_73, %c0_74] : memref<480x64xf32, #tpu.memory_space<vmem>>, vector<32x16xf32>
    %c440 = arith.constant 440 : index
    %c0_75 = arith.constant 0 : index
    %110 = vector.load %arg2[%c440, %c0_75] : memref<480x64xf32, #tpu.memory_space<vmem>>, vector<32x8xf32>
    %c472 = arith.constant 472 : index
    %c0_76 = arith.constant 0 : index
    %111 = vector.load %arg2[%c472, %c0_76] : memref<480x64xf32, #tpu.memory_space<vmem>>, vector<2x8xf32>
    %112 = vector.extract_strided_slice %7 {offsets = [0, 0], sizes = [16, 32], strides = [1, 1]} : vector<16x64xf32> to vector<16x32xf32>
    %cst_77 = arith.constant dense<0.000000e+00> : vector<16x8xf32>
    %113 = tpu.matmul %102, %103, %cst_77 {dimension_numbers = #tpu.dot_dimension_numbers<[1], [0], [0], [1], [0, 0, 1, 1], [], []>} : vector<16x32xf32>, vector<32x8xf32>, vector<16x8xf32> -> vector<16x8xf32>
    %cst_78 = arith.constant dense<0.000000e+00> : vector<16x2xf32>
    %114 = tpu.matmul %113, %105, %cst_78 {dimension_numbers = #tpu.dot_dimension_numbers<[1], [0], [0], [1], [0, 0, 1, 1], [], []>} : vector<16x8xf32>, vector<8x2xf32>, vector<16x2xf32> -> vector<16x2xf32>
    %cst_79 = arith.constant dense<0.000000e+00> : vector<16x2xf32>
    %115 = tpu.matmul %113, %104, %cst_79 {dimension_numbers = #tpu.dot_dimension_numbers<[1], [0], [0], [1], [0, 0, 1, 1], [], []>} : vector<16x8xf32>, vector<8x2xf32>, vector<16x2xf32> -> vector<16x2xf32>
    %cst_80 = arith.constant dense<0.000000e+00> : vector<16x32xf32>
    %116 = tpu.matmul %114, %107, %cst_80 {dimension_numbers = #tpu.dot_dimension_numbers<[1], [0], [0], [1], [0, 0, 1, 1], [], []>} : vector<16x2xf32>, vector<2x32xf32>, vector<16x32xf32> -> vector<16x32xf32>
    %cst_81 = arith.constant dense<0.000000e+00> : vector<16x32xf32>
    %117 = tpu.matmul %115, %107, %cst_81 {dimension_numbers = #tpu.dot_dimension_numbers<[1], [0], [0], [1], [0, 0, 1, 1], [], []>} : vector<16x2xf32>, vector<2x32xf32>, vector<16x32xf32> -> vector<16x32xf32>
    %118 = arith.mulf %117, %108 : vector<16x32xf32>
    %cst_82 = arith.constant dense<0.000000e+00> : vector<16x32xf32>
    %119 = tpu.matmul %8, %118, %cst_82 {dimension_numbers = #tpu.dot_dimension_numbers<[1], [0], [0], [1], [0, 0, 1, 1], [], []>} : vector<16x16xf32>, vector<16x32xf32>, vector<16x32xf32> -> vector<16x32xf32>
    %120 = arith.addf %116, %119 : vector<16x32xf32>
    %cst_83 = arith.constant 2.000000e-01 : f32
    %121 = vector.broadcast %cst_83 : f32 to vector<16x32xf32>
    %122 = arith.mulf %121, %120 : vector<16x32xf32>
    %123 = arith.maximumf %120, %122 : vector<16x32xf32>
    %cst_84 = arith.constant dense<0xFF800000> : vector<2xf32>
    %124 = vector.multi_reduction <maximumf>, %115, %cst_84 [0] : vector<16x2xf32> to vector<2xf32>
    %125 = vector.shape_cast %124 : vector<2xf32> to vector<1x2xf32>
    %126 = vector.broadcast %125 : vector<1x2xf32> to vector<16x2xf32>
    %127 = arith.addf %114, %126 : vector<16x2xf32>
    %cst_85 = arith.constant 2.000000e-01 : f32
    %128 = vector.broadcast %cst_85 : f32 to vector<16x2xf32>
    %129 = arith.mulf %128, %127 : vector<16x2xf32>
    %130 = arith.maximumf %127, %129 : vector<16x2xf32>
    %cst_86 = arith.constant dense<0.000000e+00> : vector<16x32xf32>
    %131 = tpu.matmul %130, %107, %cst_86 {dimension_numbers = #tpu.dot_dimension_numbers<[1], [0], [0], [1], [0, 0, 1, 1], [], []>} : vector<16x2xf32>, vector<2x32xf32>, vector<16x32xf32> -> vector<16x32xf32>
    %132 = arith.addf %123, %112 : vector<16x32xf32>
    %133 = arith.subf %132, %131 : vector<16x32xf32>
    %134 = math.exp %133 : vector<16x32xf32>
    %cst_87 = arith.constant dense<0.000000e+00> : vector<32x8xf32>
    %135 = tpu.matmul %109, %113, %cst_87 {dimension_numbers = #tpu.dot_dimension_numbers<[1], [0], [0], [1], [0, 0, 1, 1], [], []>} : vector<32x16xf32>, vector<16x8xf32>, vector<32x8xf32> -> vector<32x8xf32>
    %136 = arith.mulf %135, %110 : vector<32x8xf32>
    %cst_88 = arith.constant dense<0.000000e+00> : vector<16x8xf32>
    %137 = tpu.matmul %134, %136, %cst_88 {dimension_numbers = #tpu.dot_dimension_numbers<[1], [0], [0], [1], [0, 0, 1, 1], [], []>} : vector<16x32xf32>, vector<32x8xf32>, vector<16x8xf32> -> vector<16x8xf32>
    %cst_89 = arith.constant dense<0.000000e+00> : vector<16x2xf32>
    %138 = tpu.matmul %134, %107, %cst_89 {dimension_numbers = #tpu.dot_dimension_numbers<[1], [1], [0], [0], [0, 0, 1, 0], [], []>} : vector<16x32xf32>, vector<2x32xf32>, vector<16x2xf32> -> vector<16x2xf32>
    %139 = tpu.reciprocal %138 {approx = true} : vector<16x2xf32> -> vector<16x2xf32>
    %cst_90 = arith.constant dense<0.000000e+00> : vector<16x8xf32>
    %140 = tpu.matmul %139, %111, %cst_90 {dimension_numbers = #tpu.dot_dimension_numbers<[1], [0], [0], [1], [0, 0, 1, 1], [], []>} : vector<16x2xf32>, vector<2x8xf32>, vector<16x8xf32> -> vector<16x8xf32>
    %141 = arith.mulf %137, %140 : vector<16x8xf32>
    %142 = vector.broadcast %106 : vector<1x8xf32> to vector<16x8xf32>
    %143 = arith.addf %141, %142 : vector<16x8xf32>
    %c248 = arith.constant 248 : index
    %c0_91 = arith.constant 0 : index
    %144 = vector.load %arg2[%c248, %c0_91] : memref<480x64xf32, #tpu.memory_space<vmem>>, vector<32x8xf32>
    %cst_92 = arith.constant dense<0.000000e+00> : vector<16x8xf32>
    %145 = tpu.matmul %102, %144, %cst_92 {dimension_numbers = #tpu.dot_dimension_numbers<[1], [0], [0], [1], [0, 0, 1, 1], [], []>} : vector<16x32xf32>, vector<32x8xf32>, vector<16x8xf32> -> vector<16x8xf32>
    %146 = arith.addf %143, %145 : vector<16x8xf32>
    %147 = vector.extract_strided_slice %146 {offsets = [0, 0], sizes = [16, 4], strides = [1, 1]} : vector<16x8xf32> to vector<16x4xf32>
    %148 = vector.extract_strided_slice %146 {offsets = [0, 4], sizes = [16, 4], strides = [1, 1]} : vector<16x8xf32> to vector<16x4xf32>
    %149 = arith.addf %147, %148 : vector<16x4xf32>
    %cst_93 = arith.constant 5.000000e-01 : f32
    %150 = vector.broadcast %cst_93 : f32 to vector<16x4xf32>
    %151 = arith.mulf %149, %150 : vector<16x4xf32>
    %c0_94 = arith.constant 0 : index
    %c0_95 = arith.constant 0 : index
    %152 = vector.load %arg3[%c0_94, %c0_95] : memref<16x4xf32, #tpu.memory_space<vmem>>, vector<16x4xf32>
    tpu.vector_store %arg3[%c0_94, %c0_95], %151 {strides = array<i32>} : memref<16x4xf32, #tpu.memory_space<vmem>>, vector<16x4xf32>,
    return
  }
}

</mosaic_0001>

<llo_original>
// kernel: tpu_custom_call.1
$region0: #{tpu_custom_call.1}
  #allocation0 [shape = 'u32[]', space=smem, size = 0x4, offset = 0x4, fixed_abs, tag = 'smem constant byte address 0x4 - core index']
  #allocation1 [shape = 'u32[144,128]{1,0:T(1,128)}', space=vmem, size = 0x12000, scoped, tag = 'internal scratch']
  %s0 = inlined_call_operand.vmem [shape: f32[16,16], index: 0, kind: input, shape index: {}]
  %s1 = inlined_call_operand.vmem [shape: f32[16,16], index: 1, kind: input, shape index: {}]
  %s2 = inlined_call_operand.vmem [shape: f32[480,64], index: 2, kind: input, shape index: {}]
  %s3 = inlined_call_operand.vmem [shape: f32[16,4], index: 3, kind: output, shape index: {}]
  %s4 = sld [smem:[#allocation0]]
  $region22: #{tpu_custom_call.1} parent=0
    _
  %s6 = ssub.s32 1, %s4
  %s7 = scalar_select 0, %s6, %s4
  // Predicated region
  $region2: #{tpu_custom_call.1} parent=0 // pred_check
    _
  $region3: #{tpu_custom_call.1} parent=0 // pred_check_branch
    %9 = sbr.rel (0) target = $region5
  $region4: #{tpu_custom_call.1} parent=0 // pred_region
    _
  $region5: #{tpu_custom_call.1} parent=0 // pred_fallthru
    _
  // Predicated region
  $region6: #{tpu_custom_call.1} parent=0 // pred_check
    _
  $region7: #{tpu_custom_call.1} parent=0 // pred_check_branch
    %11 = sbr.rel (0) target = $region9
  $region8: #{tpu_custom_call.1} parent=0 // pred_region
    _
  $region9: #{tpu_custom_call.1} parent=0 // pred_fallthru
    _
  // Predicated region
  $region10: #{tpu_custom_call.1} parent=0 // pred_check
    _
  $region11: #{tpu_custom_call.1} parent=0 // pred_check_branch
    %13 = sbr.rel (0) target = $region13
  $region12: #{tpu_custom_call.1} parent=0 // pred_region
    _
  $region13: #{tpu_custom_call.1} parent=0 // pred_fallthru
    _
  %v14 = vld [vmem:[%s2 + $0x120] sm:$0xff]
  %v15 = vld [vmem:[%s2 + $0x128] sm:$0xff]
  %v16 = vld [vmem:[%s0] sm:$0xff]
  %v17 = vld [vmem:[%s0 + $0x8] sm:$0xff]
  %vm18 = vcmask 130048
  %v20 = vsel %vm18, %v16, 0
  %v23 = vsel %vm18, %v17, 0
  %25 = vmatprep.subr.mxu0 0.0
  %26 = vmatpush1.msra.mxu0 0.0
  %27 = vmatprep.subr.mxu0 0.0
  %28 = vmatpush1.msra.mxu0 0.0
  %29 = vmatprep.subr.mxu0 0.0
  %30 = vmatpush1.msra.mxu0 0.0
  %31 = vmatprep.subr.mxu0 0.0
  %32 = vmatpush1.msra.mxu0 0.0
  %33 = vmatprep.subr.mxu0 0.0
  %34 = vmatpush1.msra.mxu0 0.0
  %35 = vmatprep.subr.mxu0 0.0
  %36 = vmatpush1.msra.mxu0 0.0
  %37 = vmatprep.subr.mxu0 0.0
  %38 = vmatpush1.msra.mxu0 0.0
  %39 = vmatprep.subr.mxu0 0.0
  %40 = vmatpush1.msra.mxu0 0.0
  %41 = vmatprep.subr.mxu0 0.0
  %42 = vmatpush1.msra.mxu0 0.0
  %43 = vmatprep.subr.mxu0 0.0
  %44 = vmatpush1.msra.mxu0 0.0
  %45 = vmatprep.subr.mxu0 0.0
  %46 = vmatpush1.msra.mxu0 0.0
  %47 = vmatprep.subr.mxu0 0.0
  %48 = vmatpush1.msra.mxu0 0.0
  %49 = vmatprep.subr.mxu0 0.0
  %50 = vmatpush1.msra.mxu0 0.0
  %51 = vmatprep.subr.mxu0 0.0
  %52 = vmatpush1.msra.mxu0 0.0
  %53 = vmatprep.subr.mxu0 0.0
  %54 = vmatpush1.msra.mxu0 %v15
  %55 = vmatprep.subr.mxu0 0.0
  %56 = vmatpush1.msra.mxu0 %v14
  %57 = vmatprep.subr.mxu0 0.0
  %58 = vmatpush2.msra.mxu0 0.0
  %59 = vmatprep.subr.mxu0 0.0
  %60 = vmatpush2.msra.mxu0 0.0
  %61 = vmatprep.subr.mxu0 0.0
  %62 = vmatpush2.msra.mxu0 0.0
  %63 = vmatprep.subr.mxu0 0.0
  %64 = vmatpush2.msra.mxu0 0.0
  %65 = vmatprep.subr.mxu0 0.0
  %66 = vmatpush2.msra.mxu0 0.0
  %67 = vmatprep.subr.mxu0 0.0
  %68 = vmatpush2.msra.mxu0 0.0
  %69 = vmatprep.subr.mxu0 0.0
  %70 = vmatpush2.msra.mxu0 0.0
  %71 = vmatprep.subr.mxu0 0.0
  %72 = vmatpush2.msra.mxu0 0.0
  %73 = vmatprep.subr.mxu0 0.0
  %74 = vmatpush2.msra.mxu0 0.0
  %75 = vmatprep.subr.mxu0 0.0
  %76 = vmatpush2.msra.mxu0 0.0
  %77 = vmatprep.subr.mxu0 0.0
  %78 = vmatpush2.msra.mxu0 0.0
  %79 = vmatprep.subr.mxu0 0.0
  %80 = vmatpush2.msra.mxu0 0.0
  %81 = vmatprep.subr.mxu0 0.0
  %82 = vmatpush2.msra.mxu0 0.0
  %83 = vmatprep.subr.mxu0 0.0
  %84 = vmatpush2.msra.mxu0 0.0
  %85 = vmatprep.subr.mxu0 0.0
  %86 = vmatpush2.msra.mxu0 0.0
  %87 = vmatprep.subr.mxu0 0.0
  %88 = vmatpush2.msra.mxu0 0.0
  %89 = vmatprep.mubr.f32.mxu0 0.0
  %90 = vmatmul.mubr.f32.gmra.mxu0 %v20
  %v91 = vpop.f32.mrf.mxu0
  %v92 = vadd.f32 0.0, %v91
  %v93 = vpop.f32.mrf.mxu0
  %94 = vmatprep.mubr.f32.mxu0 0.0
  %95 = vmatmul.mubr.f32.gmra.mxu0 %v23
  %v96 = vpop.f32.mrf.mxu0
  %v97 = vadd.f32 0.0, %v96
  %v98 = vpop.f32.mrf.mxu0
  %99 = vdwg.mxu0
  %vm100 = vcmp.gt.f32.partialorder %v92, 0.0
  %vm101 = vcmp.gt.f32.partialorder %v97, 0.0
  %v102 = vsel %vm100, 0.0, -1e+30
  %v103 = vsel %vm101, 0.0, -1e+30
  %v104 = vld [vmem:[%s1] sm:$0xff]
  %v105 = vld [vmem:[%s1 + $0x8] sm:$0xff]
  %v106 = vld [vmem:[%s2] sm:$0xff]
  %v107 = vld [vmem:[%s2 + $0x8] sm:$0xff]
  %v108 = vld [vmem:[%s2 + $0x10] sm:$0xff]
  %v109 = vld [vmem:[%s2 + $0x18] sm:$0xff]
  %v110 = vld [vmem:[%s2 + $0x20] sm:$0xff]
  %v111 = vld [vmem:[%s2 + $0x28] sm:$0xff]
  %v112 = vld [vmem:[%s2 + $0x30] sm:$0xff]
  %v113 = vld [vmem:[%s2 + $0x38] sm:$0xff]
  %v114 = vld [vmem:[%s2 + $0x40] sm:$0xff]
  %v115 = vld [vmem:[%s2 + $0x48] sm:$0xff]
  %v116 = vld [vmem:[%s2 + $0x50] sm:$0x1]
  %v117 = vld [vmem:[%s2 + $0x118] sm:$0xf]
  %v118 = vld [vmem:[%s2 + $0x130] sm:$0xff]
  %v119 = vld [vmem:[%s2 + $0x138] sm:$0xff]
  %v120 = vld [vmem:[%s2 + $0x140] sm:$0xff]
  %v121 = vld [vmem:[%s2 + $0x148] sm:$0xff]
  %v122 = vld [vmem:[%s2 + $0x150] sm:$0xff]
  %v123 = vld [vmem:[%s2 + $0x158] sm:$0xff]
  %v124 = vld [vmem:[%s2 + $0x160] sm:$0xff]
  %v125 = vld [vmem:[%s2 + $0x168] sm:$0xff]
  %v126 = vld [vmem:[%s2 + $0x170] sm:$0xff]
  %v127 = vld [vmem:[%s2 + $0x178] sm:$0xff]
  %v128 = vld [vmem:[%s2 + $0x180] sm:$0xff]
  %v129 = vld [vmem:[%s2 + $0x188] sm:$0xff]
  %v130 = vld [vmem:[%s2 + $0x190] sm:$0xff]
  %v131 = vld [vmem:[%s2 + $0x198] sm:$0xff]
  %v132 = vld [vmem:[%s2 + $0x1a0] sm:$0xff]
  %v133 = vld [vmem:[%s2 + $0x1a8] sm:$0xff]
  %v134 = vld [vmem:[%s2 + $0x1b0] sm:$0xf]
  %v136 = vsel %vm18, %v104, 0
  %v139 = vsel %vm18, %v105, 0
  %141 = vmatprep.subr.mxu0 0.0
  %142 = vmatpush1.msra.mxu0 0.0
  %143 = vmatprep.subr.mxu0 0.0
  %144 = vmatpush1.msra.mxu0 0.0
  %145 = vmatprep.subr.mxu0 0.0
  %146 = vmatpush1.msra.mxu0 0.0
  %147 = vmatprep.subr.mxu0 0.0
  %148 = vmatpush1.msra.mxu0 0.0
  %149 = vmatprep.subr.mxu0 0.0
  %150 = vmatpush1.msra.mxu0 0.0
  %151 = vmatprep.subr.mxu0 0.0
  %152 = vmatpush1.msra.mxu0 0.0
  %153 = vmatprep.subr.mxu0 0.0
  %154 = vmatpush1.msra.mxu0 0.0
  %155 = vmatprep.subr.mxu0 0.0
  %156 = vmatpush1.msra.mxu0 0.0
  %157 = vmatprep.subr.mxu0 0.0
  %158 = vmatpush1.msra.mxu0 0.0
  %159 = vmatprep.subr.mxu0 0.0
  %160 = vmatpush1.msra.mxu0 0.0
  %161 = vmatprep.subr.mxu0 0.0
  %162 = vmatpush1.msra.mxu0 0.0
  %163 = vmatprep.subr.mxu0 0.0
  %164 = vmatpush1.msra.mxu0 0.0
  %165 = vmatprep.subr.mxu0 0.0
  %166 = vmatpush1.msra.mxu0 0.0
  %167 = vmatprep.subr.mxu0 0.0
  %168 = vmatpush1.msra.mxu0 0.0
  %169 = vmatprep.subr.mxu0 0.0
  %170 = vmatpush1.msra.mxu0 %v107
  %171 = vmatprep.subr.mxu0 0.0
  %172 = vmatpush1.msra.mxu0 %v106
  %173 = vmatprep.subr.mxu0 0.0
  %174 = vmatpush2.msra.mxu0 0.0
  %175 = vmatprep.subr.mxu0 0.0
  %176 = vmatpush2.msra.mxu0 0.0
  %177 = vmatprep.subr.mxu0 0.0
  %178 = vmatpush2.msra.mxu0 0.0
  %179 = vmatprep.subr.mxu0 0.0
  %180 = vmatpush2.msra.mxu0 0.0
  %181 = vmatprep.subr.mxu0 0.0
  %182 = vmatpush2.msra.mxu0 0.0
  %183 = vmatprep.subr.mxu0 0.0
  %184 = vmatpush2.msra.mxu0 0.0
  %185 = vmatprep.subr.mxu0 0.0
  %186 = vmatpush2.msra.mxu0 0.0
  %187 = vmatprep.subr.mxu0 0.0
  %188 = vmatpush2.msra.mxu0 0.0
  %189 = vmatprep.subr.mxu0 0.0
  %190 = vmatpush2.msra.mxu0 0.0
  %191 = vmatprep.subr.mxu0 0.0
  %192 = vmatpush2.msra.mxu0 0.0
  %193 = vmatprep.subr.mxu0 0.0
  %194 = vmatpush2.msra.mxu0 0.0
  %195 = vmatprep.subr.mxu0 0.0
  %196 = vmatpush2.msra.mxu0 0.0
  %197 = vmatprep.subr.mxu0 0.0
  %198 = vmatpush2.msra.mxu0 0.0
  %199 = vmatprep.subr.mxu0 0.0
  %200 = vmatpush2.msra.mxu0 0.0
  %201 = vmatprep.subr.mxu0 0.0
  %202 = vmatpush2.msra.mxu0 0.0
  %203 = vmatprep.subr.mxu0 0.0
  %204 = vmatpush2.msra.mxu0 0.0
  %205 = vmatprep.mubr.f32.mxu0 0.0
  %206 = vmatmul.mubr.f32.gmra.mxu0 %v136
  %v207 = vpop.f32.mrf.mxu0
  %v208 = vadd.f32 0.0, %v207
  %v209 = vpop.f32.mrf.mxu0
  %210 = vmatprep.mubr.f32.mxu0 0.0
  %211 = vmatmul.mubr.f32.gmra.mxu0 %v139
  %v212 = vpop.f32.mrf.mxu0
  %v213 = vadd.f32 0.0, %v212
  %v214 = vpop.f32.mrf.mxu0
  %215 = vdwg.mxu0
  %vm216 = vcmask 261120
  %v218 = vsel %vm216, %v208, 0
  %v221 = vsel %vm216, %v213, 0
  %223 = vmatprep.subr.mxu0 0.0
  %224 = vmatpush1.msra.mxu0 0.0
  %225 = vmatprep.subr.mxu0 0.0
  %226 = vmatpush1.msra.mxu0 0.0
  %227 = vmatprep.subr.mxu0 0.0
  %228 = vmatpush1.msra.mxu0 0.0
  %229 = vmatprep.subr.mxu0 0.0
  %230 = vmatpush1.msra.mxu0 0.0
  %231 = vmatprep.subr.mxu0 0.0
  %232 = vmatpush1.msra.mxu0 0.0
  %233 = vmatprep.subr.mxu0 0.0
  %234 = vmatpush1.msra.mxu0 0.0
  %235 = vmatprep.subr.mxu0 0.0
  %236 = vmatpush1.msra.mxu0 0.0
  %237 = vmatprep.subr.mxu0 0.0
  %238 = vmatpush1.msra.mxu0 0.0
  %239 = vmatprep.subr.mxu0 0.0
  %240 = vmatpush1.msra.mxu0 0.0
  %241 = vmatprep.subr.mxu0 0.0
  %242 = vmatpush1.msra.mxu0 0.0
  %243 = vmatprep.subr.mxu0 0.0
  %244 = vmatpush1.msra.mxu0 0.0
  %245 = vmatprep.subr.mxu0 0.0
  %246 = vmatpush1.msra.mxu0 0.0
  %247 = vmatprep.subr.mxu0 0.0
  %248 = vmatpush1.msra.mxu0 %v115
  %249 = vmatprep.subr.mxu0 0.0
  %250 = vmatpush1.msra.mxu0 %v114
  %251 = vmatprep.subr.mxu0 0.0
  %252 = vmatpush1.msra.mxu0 %v113
  %253 = vmatprep.subr.mxu0 0.0
  %254 = vmatpush1.msra.mxu0 %v112
  %255 = vmatprep.subr.mxu0 0.0
  %256 = vmatpush2.msra.mxu0 0.0
  %257 = vmatprep.subr.mxu0 0.0
  %258 = vmatpush2.msra.mxu0 0.0
  %259 = vmatprep.subr.mxu0 0.0
  %260 = vmatpush2.msra.mxu0 0.0
  %261 = vmatprep.subr.mxu0 0.0
  %262 = vmatpush2.msra.mxu0 0.0
  %263 = vmatprep.subr.mxu0 0.0
  %264 = vmatpush2.msra.mxu0 0.0
  %265 = vmatprep.subr.mxu0 0.0
  %266 = vmatpush2.msra.mxu0 0.0
  %267 = vmatprep.subr.mxu0 0.0
  %268 = vmatpush2.msra.mxu0 0.0
  %269 = vmatprep.subr.mxu0 0.0
  %270 = vmatpush2.msra.mxu0 0.0
  %271 = vmatprep.subr.mxu0 0.0
  %272 = vmatpush2.msra.mxu0 0.0
  %273 = vmatprep.subr.mxu0 0.0
  %274 = vmatpush2.msra.mxu0 0.0
  %275 = vmatprep.subr.mxu0 0.0
  %276 = vmatpush2.msra.mxu0 0.0
  %277 = vmatprep.subr.mxu0 0.0
  %278 = vmatpush2.msra.mxu0 0.0
  %279 = vmatprep.subr.mxu0 0.0
  %280 = vmatpush2.msra.mxu0 0.0
  %281 = vmatprep.subr.mxu0 0.0
  %282 = vmatpush2.msra.mxu0 0.0
  %283 = vmatprep.subr.mxu0 0.0
  %284 = vmatpush2.msra.mxu0 0.0
  %285 = vmatprep.subr.mxu0 0.0
  %286 = vmatpush2.msra.mxu0 0.0
  %287 = vmatprep.mubr.f32.mxu0 0.0
  %288 = vmatmul.mubr.f32.gmra.mxu0 %v218
  %v289 = vpop.f32.mrf.mxu0
  %v290 = vadd.f32 0.0, %v289
  %v291 = vpop.f32.mrf.mxu0
  %292 = vmatprep.mubr.f32.mxu0 0.0
  %293 = vmatmul.mubr.f32.gmra.mxu0 %v221
  %v294 = vpop.f32.mrf.mxu0
  %v295 = vadd.f32 0.0, %v294
  %v296 = vpop.f32.mrf.mxu0
  %297 = vdwg.mxu0
  %298 = vmatprep.subr.mxu0 0.0
  %299 = vmatpush1.msra.mxu0 0.0
  %300 = vmatprep.subr.mxu0 0.0
  %301 = vmatpush1.msra.mxu0 0.0
  %302 = vmatprep.subr.mxu0 0.0
  %303 = vmatpush1.msra.mxu0 0.0
  %304 = vmatprep.subr.mxu0 0.0
  %305 = vmatpush1.msra.mxu0 0.0
  %306 = vmatprep.subr.mxu0 0.0
  %307 = vmatpush1.msra.mxu0 0.0
  %308 = vmatprep.subr.mxu0 0.0
  %309 = vmatpush1.msra.mxu0 0.0
  %310 = vmatprep.subr.mxu0 0.0
  %311 = vmatpush1.msra.mxu0 0.0
  %312 = vmatprep.subr.mxu0 0.0
  %313 = vmatpush1.msra.mxu0 0.0
  %314 = vmatprep.subr.mxu0 0.0
  %315 = vmatpush1.msra.mxu0 0.0
  %316 = vmatprep.subr.mxu0 0.0
  %317 = vmatpush1.msra.mxu0 0.0
  %318 = vmatprep.subr.mxu0 0.0
  %319 = vmatpush1.msra.mxu0 0.0
  %320 = vmatprep.subr.mxu0 0.0
  %321 = vmatpush1.msra.mxu0 0.0
  %322 = vmatprep.subr.mxu0 0.0
  %323 = vmatpush1.msra.mxu0 %v111
  %324 = vmatprep.subr.mxu0 0.0
  %325 = vmatpush1.msra.mxu0 %v110
  %326 = vmatprep.subr.mxu0 0.0
  %327 = vmatpush1.msra.mxu0 %v109
  %328 = vmatprep.subr.mxu0 0.0
  %329 = vmatpush1.msra.mxu0 %v108
  %330 = vmatprep.subr.mxu0 0.0
  %331 = vmatpush2.msra.mxu0 0.0
  %332 = vmatprep.subr.mxu0 0.0
  %333 = vmatpush2.msra.mxu0 0.0
  %334 = vmatprep.subr.mxu0 0.0
  %335 = vmatpush2.msra.mxu0 0.0
  %336 = vmatprep.subr.mxu0 0.0
  %337 = vmatpush2.msra.mxu0 0.0
  %338 = vmatprep.subr.mxu0 0.0
  %339 = vmatpush2.msra.mxu0 0.0
  %340 = vmatprep.subr.mxu0 0.0
  %341 = vmatpush2.msra.mxu0 0.0
  %342 = vmatprep.subr.mxu0 0.0
  %343 = vmatpush2.msra.mxu0 0.0
  %344 = vmatprep.subr.mxu0 0.0
  %345 = vmatpush2.msra.mxu0 0.0
  %346 = vmatprep.subr.mxu0 0.0
  %347 = vmatpush2.msra.mxu0 0.0
  %348 = vmatprep.subr.mxu0 0.0
  %349 = vmatpush2.msra.mxu0 0.0
  %350 = vmatprep.subr.mxu0 0.0
  %351 = vmatpush2.msra.mxu0 0.0
  %352 = vmatprep.subr.mxu0 0.0
  %353 = vmatpush2.msra.mxu0 0.0
  %354 = vmatprep.subr.mxu0 0.0
  %355 = vmatpush2.msra.mxu0 0.0
  %356 = vmatprep.subr.mxu0 0.0
  %357 = vmatpush2.msra.mxu0 0.0
  %358 = vmatprep.subr.mxu0 0.0
  %359 = vmatpush2.msra.mxu0 0.0
  %360 = vmatprep.subr.mxu0 0.0
  %361 = vmatpush2.msra.mxu0 0.0
  %362 = vmatprep.mubr.f32.mxu0 0.0
  %363 = vmatmul.mubr.f32.gmra.mxu0 %v218
  %v364 = vpop.f32.mrf.mxu0
  %v365 = vadd.f32 0.0, %v364
  %v366 = vpop.f32.mrf.mxu0
  %367 = vmatprep.mubr.f32.mxu0 0.0
  %368 = vmatmul.mubr.f32.gmra.mxu0 %v221
  %v369 = vpop.f32.mrf.mxu0
  %v370 = vadd.f32 0.0, %v369
  %v371 = vpop.f32.mrf.mxu0
  %372 = vdwg.mxu0
  %vm373 = vcmask 31744
  %v375 = vsel %vm373, %v365, 0
  %v378 = vsel %vm373, %v370, 0
  %vm380 = vcmask 1043456
  %v382 = vsel %vm380, %v117, 0
  %384 = vmatprep.subr.mxu0 0.0
  %385 = vmatpush1.msra.mxu0 0.0
  %386 = vmatprep.subr.mxu0 0.0
  %387 = vmatpush1.msra.mxu0 0.0
  %388 = vmatprep.subr.mxu0 0.0
  %389 = vmatpush1.msra.mxu0 0.0
  %390 = vmatprep.subr.mxu0 0.0
  %391 = vmatpush1.msra.mxu0 0.0
  %392 = vmatprep.subr.mxu0 0.0
  %393 = vmatpush1.msra.mxu0 0.0
  %394 = vmatprep.subr.mxu0 0.0
  %395 = vmatpush1.msra.mxu0 0.0
  %396 = vmatprep.subr.mxu0 0.0
  %397 = vmatpush1.msra.mxu0 0.0
  %398 = vmatprep.subr.mxu0 0.0
  %399 = vmatpush1.msra.mxu0 0.0
  %400 = vmatprep.subr.mxu0 0.0
  %401 = vmatpush1.msra.mxu0 0.0
  %402 = vmatprep.subr.mxu0 0.0
  %403 = vmatpush1.msra.mxu0 0.0
  %404 = vmatprep.subr.mxu0 0.0
  %405 = vmatpush1.msra.mxu0 0.0
  %406 = vmatprep.subr.mxu0 0.0
  %407 = vmatpush1.msra.mxu0 0.0
  %408 = vmatprep.subr.mxu0 0.0
  %409 = vmatpush1.msra.mxu0 0.0
  %410 = vmatprep.subr.mxu0 0.0
  %411 = vmatpush1.msra.mxu0 0.0
  %412 = vmatprep.subr.mxu0 0.0
  %413 = vmatpush1.msra.mxu0 0.0
  %414 = vmatprep.subr.mxu0 0.0
  %415 = vmatpush1.msra.mxu0 %v382
  %416 = vmatprep.subr.mxu0 0.0
  %417 = vmatpush2.msra.mxu0 0.0
  %418 = vmatprep.subr.mxu0 0.0
  %419 = vmatpush2.msra.mxu0 0.0
  %420 = vmatprep.subr.mxu0 0.0
  %421 = vmatpush2.msra.mxu0 0.0
  %422 = vmatprep.subr.mxu0 0.0
  %423 = vmatpush2.msra.mxu0 0.0
  %424 = vmatprep.subr.mxu0 0.0
  %425 = vmatpush2.msra.mxu0 0.0
  %426 = vmatprep.subr.mxu0 0.0
  %427 = vmatpush2.msra.mxu0 0.0
  %428 = vmatprep.subr.mxu0 0.0
  %429 = vmatpush2.msra.mxu0 0.0
  %430 = vmatprep.subr.mxu0 0.0
  %431 = vmatpush2.msra.mxu0 0.0
  %432 = vmatprep.subr.mxu0 0.0
  %433 = vmatpush2.msra.mxu0 0.0
  %434 = vmatprep.subr.mxu0 0.0
  %435 = vmatpush2.msra.mxu0 0.0
  %436 = vmatprep.subr.mxu0 0.0
  %437 = vmatpush2.msra.mxu0 0.0
  %438 = vmatprep.subr.mxu0 0.0
  %439 = vmatpush2.msra.mxu0 0.0
  %440 = vmatprep.subr.mxu0 0.0
  %441 = vmatpush2.msra.mxu0 0.0
  %442 = vmatprep.subr.mxu0 0.0
  %443 = vmatpush2.msra.mxu0 0.0
  %444 = vmatprep.subr.mxu0 0.0
  %445 = vmatpush2.msra.mxu0 0.0
  %446 = vmatprep.subr.mxu0 0.0
  %447 = vmatpush2.msra.mxu0 0.0
  %448 = vmatprep.mubr.f32.mxu0 0.0
  %449 = vmatmul.mubr.f32.gmra.mxu0 %v375
  %v450 = vpop.f32.mrf.mxu0
  %v451 = vadd.f32 0.0, %v450
  %v452 = vpop.f32.mrf.mxu0
  %453 = vmatprep.mubr.f32.mxu0 0.0
  %454 = vmatmul.mubr.f32.gmra.mxu0 %v378
  %v455 = vpop.f32.mrf.mxu0
  %v456 = vadd.f32 0.0, %v455
  %v457 = vpop.f32.mrf.mxu0
  %458 = vdwg.mxu0
  %v459 = vmul.f32 %v451, %v14
  %v460 = vmul.f32 %v456, %v15
  %v462 = vsel %vm18, 1.0, 0
  %464 = vmatprep.subr.mxu0 0.0
  %465 = vmatpush1.msra.mxu0 0.0
  %466 = vmatprep.subr.mxu0 0.0
  %467 = vmatpush1.msra.mxu0 0.0
  %468 = vmatprep.subr.mxu0 0.0
  %469 = vmatpush1.msra.mxu0 0.0
  %470 = vmatprep.subr.mxu0 0.0
  %471 = vmatpush1.msra.mxu0 0.0
  %472 = vmatprep.subr.mxu0 0.0
  %473 = vmatpush1.msra.mxu0 0.0
  %474 = vmatprep.subr.mxu0 0.0
  %475 = vmatpush1.msra.mxu0 0.0
  %476 = vmatprep.subr.mxu0 0.0
  %477 = vmatpush1.msra.mxu0 0.0
  %478 = vmatprep.subr.mxu0 0.0
  %479 = vmatpush1.msra.mxu0 0.0
  %480 = vmatprep.subr.mxu0 0.0
  %481 = vmatpush1.msra.mxu0 0.0
  %482 = vmatprep.subr.mxu0 0.0
  %483 = vmatpush1.msra.mxu0 0.0
  %484 = vmatprep.subr.mxu0 0.0
  %485 = vmatpush1.msra.mxu0 0.0
  %486 = vmatprep.subr.mxu0 0.0
  %487 = vmatpush1.msra.mxu0 0.0
  %488 = vmatprep.subr.mxu0 0.0
  %489 = vmatpush1.msra.mxu0 0.0
  %490 = vmatprep.subr.mxu0 0.0
  %491 = vmatpush1.msra.mxu0 0.0
  %492 = vmatprep.subr.mxu0 0.0
  %493 = vmatpush1.msra.mxu0 %v460
  %494 = vmatprep.subr.mxu0 0.0
  %495 = vmatpush1.msra.mxu0 %v459
  %496 = vmatprep.subr.mxu0 0.0
  %497 = vmatpush2.msra.mxu0 0.0
  %498 = vmatprep.subr.mxu0 0.0
  %499 = vmatpush2.msra.mxu0 0.0
  %500 = vmatprep.subr.mxu0 0.0
  %501 = vmatpush2.msra.mxu0 0.0
  %502 = vmatprep.subr.mxu0 0.0
  %503 = vmatpush2.msra.mxu0 0.0
  %504 = vmatprep.subr.mxu0 0.0
  %505 = vmatpush2.msra.mxu0 0.0
  %506 = vmatprep.subr.mxu0 0.0
  %507 = vmatpush2.msra.mxu0 0.0
  %508 = vmatprep.subr.mxu0 0.0
  %509 = vmatpush2.msra.mxu0 0.0
  %510 = vmatprep.subr.mxu0 0.0
  %511 = vmatpush2.msra.mxu0 0.0
  %512 = vmatprep.subr.mxu0 0.0
  %513 = vmatpush2.msra.mxu0 0.0
  %514 = vmatprep.subr.mxu0 0.0
  %515 = vmatpush2.msra.mxu0 0.0
  %516 = vmatprep.subr.mxu0 0.0
  %517 = vmatpush2.msra.mxu0 0.0
  %518 = vmatprep.subr.mxu0 0.0
  %519 = vmatpush2.msra.mxu0 0.0
  %520 = vmatprep.subr.mxu0 0.0
  %521 = vmatpush2.msra.mxu0 0.0
  %522 = vmatprep.subr.mxu0 0.0
  %523 = vmatpush2.msra.mxu0 0.0
  %524 = vmatprep.subr.mxu0 0.0
  %525 = vmatpush2.msra.mxu0 0.0
  %526 = vmatprep.subr.mxu0 0.0
  %527 = vmatpush2.msra.mxu0 0.0
  %528 = vmatprep.mubr.f32.mxu0 0.0
  %529 = vmatmul.mubr.f32.gmra.mxu0 %v462
  %v530 = vpop.f32.mrf.mxu0
  %v531 = vadd.f32 0.0, %v530
  %v532 = vpop.f32.mrf.mxu0
  %533 = vmatprep.mubr.f32.mxu0 0.0
  %534 = vmatmul.mubr.f32.gmra.mxu0 %v462
  %v535 = vpop.f32.mrf.mxu0
  %v536 = vadd.f32 0.0, %v535
  %v537 = vpop.f32.mrf.mxu0
  %538 = vdwg.mxu0
  %v540 = vsel %vm373, %v290, 0
  %v543 = vsel %vm373, %v295, 0
  %545 = vmatprep.subr.mxu0 0.0
  %546 = vmatpush1.msra.mxu0 0.0
  %547 = vmatprep.subr.mxu0 0.0
  %548 = vmatpush1.msra.mxu0 0.0
  %549 = vmatprep.subr.mxu0 0.0
  %550 = vmatpush1.msra.mxu0 0.0
  %551 = vmatprep.subr.mxu0 0.0
  %552 = vmatpush1.msra.mxu0 0.0
  %553 = vmatprep.subr.mxu0 0.0
  %554 = vmatpush1.msra.mxu0 0.0
  %555 = vmatprep.subr.mxu0 0.0
  %556 = vmatpush1.msra.mxu0 0.0
  %557 = vmatprep.subr.mxu0 0.0
  %558 = vmatpush1.msra.mxu0 0.0
  %559 = vmatprep.subr.mxu0 0.0
  %560 = vmatpush1.msra.mxu0 0.0
  %561 = vmatprep.subr.mxu0 0.0
  %562 = vmatpush1.msra.mxu0 0.0
  %563 = vmatprep.subr.mxu0 0.0
  %564 = vmatpush1.msra.mxu0 0.0
  %565 = vmatprep.subr.mxu0 0.0
  %566 = vmatpush1.msra.mxu0 0.0
  %567 = vmatprep.subr.mxu0 0.0
  %568 = vmatpush1.msra.mxu0 0.0
  %569 = vmatprep.subr.mxu0 0.0
  %570 = vmatpush1.msra.mxu0 0.0
  %571 = vmatprep.subr.mxu0 0.0
  %572 = vmatpush1.msra.mxu0 0.0
  %573 = vmatprep.subr.mxu0 0.0
  %574 = vmatpush1.msra.mxu0 0.0
  %575 = vmatprep.subr.mxu0 0.0
  %576 = vmatpush1.msra.mxu0 %v382
  %577 = vmatprep.subr.mxu0 0.0
  %578 = vmatpush2.msra.mxu0 0.0
  %579 = vmatprep.subr.mxu0 0.0
  %580 = vmatpush2.msra.mxu0 0.0
  %581 = vmatprep.subr.mxu0 0.0
  %582 = vmatpush2.msra.mxu0 0.0
  %583 = vmatprep.subr.mxu0 0.0
  %584 = vmatpush2.msra.mxu0 0.0
  %585 = vmatprep.subr.mxu0 0.0
  %586 = vmatpush2.msra.mxu0 0.0
  %587 = vmatprep.subr.mxu0 0.0
  %588 = vmatpush2.msra.mxu0 0.0
  %589 = vmatprep.subr.mxu0 0.0
  %590 = vmatpush2.msra.mxu0 0.0
  %591 = vmatprep.subr.mxu0 0.0
  %592 = vmatpush2.msra.mxu0 0.0
  %593 = vmatprep.subr.mxu0 0.0
  %594 = vmatpush2.msra.mxu0 0.0
  %595 = vmatprep.subr.mxu0 0.0
  %596 = vmatpush2.msra.mxu0 0.0
  %597 = vmatprep.subr.mxu0 0.0
  %598 = vmatpush2.msra.mxu0 0.0
  %599 = vmatprep.subr.mxu0 0.0
  %600 = vmatpush2.msra.mxu0 0.0
  %601 = vmatprep.subr.mxu0 0.0
  %602 = vmatpush2.msra.mxu0 0.0
  %603 = vmatprep.subr.mxu0 0.0
  %604 = vmatpush2.msra.mxu0 0.0
  %605 = vmatprep.subr.mxu0 0.0
  %606 = vmatpush2.msra.mxu0 0.0
  %607 = vmatprep.subr.mxu0 0.0
  %608 = vmatpush2.msra.mxu0 0.0
  %609 = vmatprep.mubr.f32.mxu0 0.0
  %610 = vmatmul.mubr.f32.gmra.mxu0 %v540
  %v611 = vpop.f32.mrf.mxu0
  %v612 = vadd.f32 %v531, %v611
  %v613 = vpop.f32.mrf.mxu0
  %614 = vmatprep.mubr.f32.mxu0 0.0
  %615 = vmatmul.mubr.f32.gmra.mxu0 %v543
  %v616 = vpop.f32.mrf.mxu0
  %v617 = vadd.f32 %v536, %v616
  %v618 = vpop.f32.mrf.mxu0
  %619 = vdwg.mxu0
  %v620 = vmul.f32 %v612, 0.2
  %v621 = vmul.f32 %v617, 0.2
  %v622 = vmax.f32 %v612, %v620
  %v623 = vmax.f32 %v617, %v621
  %v624 = vsel %vm373, %v365, -inf
  %v625 = vsel %vm373, %v370, -inf
  %v626 = vmax.f32 %v624, %v625
  %v627 = vrot.slane %v626, 4
  %v628 = vmax.f32 %v626, %v627
  %v629 = vrot.slane %v628, 2
  %v630 = vmax.f32 %v628, %v629
  %v631 = vrot.slane %v630, 1
  %v632 = vmax.f32 %v630, %v631
  %v633 = vadd.f32 %v290, %v632
  %v634 = vadd.f32 %v295, %v632
  %v635 = vmul.f32 %v633, 0.2
  %v636 = vmul.f32 %v634, 0.2
  %v637 = vmax.f32 %v633, %v635
  %v638 = vmax.f32 %v634, %v636
  %v640 = vsel %vm373, %v637, 0
  %v643 = vsel %vm373, %v638, 0
  %645 = vmatprep.subr.mxu0 0.0
  %646 = vmatpush1.msra.mxu0 0.0
  %647 = vmatprep.subr.mxu0 0.0
  %648 = vmatpush1.msra.mxu0 0.0
  %649 = vmatprep.subr.mxu0 0.0
  %650 = vmatpush1.msra.mxu0 0.0
  %651 = vmatprep.subr.mxu0 0.0
  %652 = vmatpush1.msra.mxu0 0.0
  %653 = vmatprep.subr.mxu0 0.0
  %654 = vmatpush1.msra.mxu0 0.0
  %655 = vmatprep.subr.mxu0 0.0
  %656 = vmatpush1.msra.mxu0 0.0
  %657 = vmatprep.subr.mxu0 0.0
  %658 = vmatpush1.msra.mxu0 0.0
  %659 = vmatprep.subr.mxu0 0.0
  %660 = vmatpush1.msra.mxu0 0.0
  %661 = vmatprep.subr.mxu0 0.0
  %662 = vmatpush1.msra.mxu0 0.0
  %663 = vmatprep.subr.mxu0 0.0
  %664 = vmatpush1.msra.mxu0 0.0
  %665 = vmatprep.subr.mxu0 0.0
  %666 = vmatpush1.msra.mxu0 0.0
  %667 = vmatprep.subr.mxu0 0.0
  %668 = vmatpush1.msra.mxu0 0.0
  %669 = vmatprep.subr.mxu0 0.0
  %670 = vmatpush1.msra.mxu0 0.0
  %671 = vmatprep.subr.mxu0 0.0
  %672 = vmatpush1.msra.mxu0 0.0
  %673 = vmatprep.subr.mxu0 0.0
  %674 = vmatpush1.msra.mxu0 0.0
  %675 = vmatprep.subr.mxu0 0.0
  %676 = vmatpush1.msra.mxu0 %v382
  %677 = vmatprep.subr.mxu0 0.0
  %678 = vmatpush2.msra.mxu0 0.0
  %679 = vmatprep.subr.mxu0 0.0
  %680 = vmatpush2.msra.mxu0 0.0
  %681 = vmatprep.subr.mxu0 0.0
  %682 = vmatpush2.msra.mxu0 0.0
  %683 = vmatprep.subr.mxu0 0.0
  %684 = vmatpush2.msra.mxu0 0.0
  %685 = vmatprep.subr.mxu0 0.0
  %686 = vmatpush2.msra.mxu0 0.0
  %687 = vmatprep.subr.mxu0 0.0
  %688 = vmatpush2.msra.mxu0 0.0
  %689 = vmatprep.subr.mxu0 0.0
  %690 = vmatpush2.msra.mxu0 0.0
  %691 = vmatprep.subr.mxu0 0.0
  %692 = vmatpush2.msra.mxu0 0.0
  %693 = vmatprep.subr.mxu0 0.0
  %694 = vmatpush2.msra.mxu0 0.0
  %695 = vmatprep.subr.mxu0 0.0
  %696 = vmatpush2.msra.mxu0 0.0
  %697 = vmatprep.subr.mxu0 0.0
  %698 = vmatpush2.msra.mxu0 0.0
  %699 = vmatprep.subr.mxu0 0.0
  %700 = vmatpush2.msra.mxu0 0.0
  %701 = vmatprep.subr.mxu0 0.0
  %702 = vmatpush2.msra.mxu0 0.0
  %703 = vmatprep.subr.mxu0 0.0
  %704 = vmatpush2.msra.mxu0 0.0
  %705 = vmatprep.subr.mxu0 0.0
  %706 = vmatpush2.msra.mxu0 0.0
  %707 = vmatprep.subr.mxu0 0.0
  %708 = vmatpush2.msra.mxu0 0.0
  %709 = vmatprep.mubr.f32.mxu0 0.0
  %710 = vmatmul.mubr.f32.gmra.mxu0 %v640
  %v711 = vpop.f32.mrf.mxu0
  %v712 = vadd.f32 0.0, %v711
  %v713 = vpop.f32.mrf.mxu0
  %714 = vmatprep.mubr.f32.mxu0 0.0
  %715 = vmatmul.mubr.f32.gmra.mxu0 %v643
  %v716 = vpop.f32.mrf.mxu0
  %v717 = vadd.f32 0.0, %v716
  %v718 = vpop.f32.mrf.mxu0
  %719 = vdwg.mxu0
  %v720 = vadd.f32 %v622, %v102
  %v721 = vadd.f32 %v623, %v103
  %v722 = vsub.f32 %v720, %v712
  %v723 = vsub.f32 %v721, %v717
  %v724 = vmul.f32 %v722, 1.442695
  %v725 = vpow.pop %v724
  %v726 = vmul.f32 %v723, 1.442695
  %v727 = vpow.pop %v726
  %v729 = vsel %vm18, %v118, 0
  %v732 = vsel %vm18, %v119, 0
  %v735 = vsel %vm18, %v120, 0
  %v738 = vsel %vm18, %v121, 0
  %v741 = vsel %vm18, %v122, 0
  %v744 = vsel %vm18, %v123, 0
  %v747 = vsel %vm18, %v124, 0
  %v750 = vsel %vm18, %v125, 0
  %752 = vmatprep.subr.mxu0 0.0
  %753 = vmatpush1.msra.mxu0 0.0
  %754 = vmatprep.subr.mxu0 0.0
  %755 = vmatpush1.msra.mxu0 0.0
  %756 = vmatprep.subr.mxu0 0.0
  %757 = vmatpush1.msra.mxu0 0.0
  %758 = vmatprep.subr.mxu0 0.0
  %759 = vmatpush1.msra.mxu0 0.0
  %760 = vmatprep.subr.mxu0 0.0
  %761 = vmatpush1.msra.mxu0 0.0
  %762 = vmatprep.subr.mxu0 0.0
  %763 = vmatpush1.msra.mxu0 0.0
  %764 = vmatprep.subr.mxu0 0.0
  %765 = vmatpush1.msra.mxu0 0.0
  %766 = vmatprep.subr.mxu0 0.0
  %767 = vmatpush1.msra.mxu0 0.0
  %768 = vmatprep.subr.mxu0 0.0
  %769 = vmatpush1.msra.mxu0 0.0
  %770 = vmatprep.subr.mxu0 0.0
  %771 = vmatpush1.msra.mxu0 0.0
  %772 = vmatprep.subr.mxu0 0.0
  %773 = vmatpush1.msra.mxu0 0.0
  %774 = vmatprep.subr.mxu0 0.0
  %775 = vmatpush1.msra.mxu0 0.0
  %776 = vmatprep.subr.mxu0 0.0
  %777 = vmatpush1.msra.mxu0 0.0
  %778 = vmatprep.subr.mxu0 0.0
  %779 = vmatpush1.msra.mxu0 0.0
  %780 = vmatprep.subr.mxu0 0.0
  %781 = vmatpush1.msra.mxu0 %v213
  %782 = vmatprep.subr.mxu0 0.0
  %783 = vmatpush1.msra.mxu0 %v208
  %784 = vmatprep.subr.mxu0 0.0
  %785 = vmatpush2.msra.mxu0 0.0
  %786 = vmatprep.subr.mxu0 0.0
  %787 = vmatpush2.msra.mxu0 0.0
  %788 = vmatprep.subr.mxu0 0.0
  %789 = vmatpush2.msra.mxu0 0.0
  %790 = vmatprep.subr.mxu0 0.0
  %791 = vmatpush2.msra.mxu0 0.0
  %792 = vmatprep.subr.mxu0 0.0
  %793 = vmatpush2.msra.mxu0 0.0
  %794 = vmatprep.subr.mxu0 0.0
  %795 = vmatpush2.msra.mxu0 0.0
  %796 = vmatprep.subr.mxu0 0.0
  %797 = vmatpush2.msra.mxu0 0.0
  %798 = vmatprep.subr.mxu0 0.0
  %799 = vmatpush2.msra.mxu0 0.0
  %800 = vmatprep.subr.mxu0 0.0
  %801 = vmatpush2.msra.mxu0 0.0
  %802 = vmatprep.subr.mxu0 0.0
  %803 = vmatpush2.msra.mxu0 0.0
  %804 = vmatprep.subr.mxu0 0.0
  %805 = vmatpush2.msra.mxu0 0.0
  %806 = vmatprep.subr.mxu0 0.0
  %807 = vmatpush2.msra.mxu0 0.0
  %808 = vmatprep.subr.mxu0 0.0
  %809 = vmatpush2.msra.mxu0 0.0
  %810 = vmatprep.subr.mxu0 0.0
  %811 = vmatpush2.msra.mxu0 0.0
  %812 = vmatprep.subr.mxu0 0.0
  %813 = vmatpush2.msra.mxu0 0.0
  %814 = vmatprep.subr.mxu0 0.0
  %815 = vmatpush2.msra.mxu0 0.0
  %816 = vmatprep.mubr.f32.mxu0 0.0
  %817 = vmatmul.mubr.f32.gmra.mxu0 %v729
  %v818 = vpop.f32.mrf.mxu0
  %v819 = vadd.f32 0.0, %v818
  %v820 = vpop.f32.mrf.mxu0
  %821 = vmatprep.mubr.f32.mxu0 0.0
  %822 = vmatmul.mubr.f32.gmra.mxu0 %v732
  %v823 = vpop.f32.mrf.mxu0
  %v824 = vadd.f32 0.0, %v823
  %v825 = vpop.f32.mrf.mxu0
  %826 = vmatprep.mubr.f32.mxu0 0.0
  %827 = vmatmul.mubr.f32.gmra.mxu0 %v735
  %v828 = vpop.f32.mrf.mxu0
  %v829 = vadd.f32 0.0, %v828
  %v830 = vpop.f32.mrf.mxu0
  %831 = vmatprep.mubr.f32.mxu0 0.0
  %832 = vmatmul.mubr.f32.gmra.mxu0 %v738
  %v833 = vpop.f32.mrf.mxu0
  %v834 = vadd.f32 0.0, %v833
  %v835 = vpop.f32.mrf.mxu0
  %836 = vmatprep.mubr.f32.mxu0 0.0
  %837 = vmatmul.mubr.f32.gmra.mxu0 %v741
  %v838 = vpop.f32.mrf.mxu0
  %v839 = vadd.f32 0.0, %v838
  %v840 = vpop.f32.mrf.mxu0
  %841 = vmatprep.mubr.f32.mxu0 0.0
  %842 = vmatmul.mubr.f32.gmra.mxu0 %v744
  %v843 = vpop.f32.mrf.mxu0
  %v844 = vadd.f32 0.0, %v843
  %v845 = vpop.f32.mrf.mxu0
  %846 = vmatprep.mubr.f32.mxu0 0.0
  %847 = vmatmul.mubr.f32.gmra.mxu0 %v747
  %v848 = vpop.f32.mrf.mxu0
  %v849 = vadd.f32 0.0, %v848
  %v850 = vpop.f32.mrf.mxu0
  %851 = vmatprep.mubr.f32.mxu0 0.0
  %852 = vmatmul.mubr.f32.gmra.mxu0 %v750
  %v853 = vpop.f32.mrf.mxu0
  %v854 = vadd.f32 0.0, %v853
  %v855 = vpop.f32.mrf.mxu0
  %856 = vdwg.mxu0
  %v857 = vmul.f32 %v819, %v126
  %v858 = vmul.f32 %v824, %v127
  %v859 = vmul.f32 %v829, %v128
  %v860 = vmul.f32 %v834, %v129
  %v861 = vmul.f32 %v839, %v130
  %v862 = vmul.f32 %v844, %v131
  %v863 = vmul.f32 %v849, %v132
  %v864 = vmul.f32 %v854, %v133
  %vm865 = vcmask 523264
  %v867 = vsel %vm865, %v725, 0
  %v870 = vsel %vm865, %v727, 0
  %872 = vmatprep.subr.mxu0 0.0
  %873 = vmatpush1.msra.mxu0 0.0
  %874 = vmatprep.subr.mxu0 0.0
  %875 = vmatpush1.msra.mxu0 0.0
  %876 = vmatprep.subr.mxu0 0.0
  %877 = vmatpush1.msra.mxu0 0.0
  %878 = vmatprep.subr.mxu0 0.0
  %879 = vmatpush1.msra.mxu0 0.0
  %880 = vmatprep.subr.mxu0 0.0
  %881 = vmatpush1.msra.mxu0 0.0
  %882 = vmatprep.subr.mxu0 0.0
  %883 = vmatpush1.msra.mxu0 0.0
  %884 = vmatprep.subr.mxu0 0.0
  %885 = vmatpush1.msra.mxu0 0.0
  %886 = vmatprep.subr.mxu0 0.0
  %887 = vmatpush1.msra.mxu0 0.0
  %888 = vmatprep.subr.mxu0 0.0
  %889 = vmatpush1.msra.mxu0 %v864
  %890 = vmatprep.subr.mxu0 0.0
  %891 = vmatpush1.msra.mxu0 %v863
  %892 = vmatprep.subr.mxu0 0.0
  %893 = vmatpush1.msra.mxu0 %v862
  %894 = vmatprep.subr.mxu0 0.0
  %895 = vmatpush1.msra.mxu0 %v861
  %896 = vmatprep.subr.mxu0 0.0
  %897 = vmatpush1.msra.mxu0 %v860
  %898 = vmatprep.subr.mxu0 0.0
  %899 = vmatpush1.msra.mxu0 %v859
  %900 = vmatprep.subr.mxu0 0.0
  %901 = vmatpush1.msra.mxu0 %v858
  %902 = vmatprep.subr.mxu0 0.0
  %903 = vmatpush1.msra.mxu0 %v857
  %904 = vmatprep.subr.mxu0 0.0
  %905 = vmatpush2.msra.mxu0 0.0
  %906 = vmatprep.subr.mxu0 0.0
  %907 = vmatpush2.msra.mxu0 0.0
  %908 = vmatprep.subr.mxu0 0.0
  %909 = vmatpush2.msra.mxu0 0.0
  %910 = vmatprep.subr.mxu0 0.0
  %911 = vmatpush2.msra.mxu0 0.0
  %912 = vmatprep.subr.mxu0 0.0
  %913 = vmatpush2.msra.mxu0 0.0
  %914 = vmatprep.subr.mxu0 0.0
  %915 = vmatpush2.msra.mxu0 0.0
  %916 = vmatprep.subr.mxu0 0.0
  %917 = vmatpush2.msra.mxu0 0.0
  %918 = vmatprep.subr.mxu0 0.0
  %919 = vmatpush2.msra.mxu0 0.0
  %920 = vmatprep.subr.mxu0 0.0
  %921 = vmatpush2.msra.mxu0 0.0
  %922 = vmatprep.subr.mxu0 0.0
  %923 = vmatpush2.msra.mxu0 0.0
  %924 = vmatprep.subr.mxu0 0.0
  %925 = vmatpush2.msra.mxu0 0.0
  %926 = vmatprep.subr.mxu0 0.0
  %927 = vmatpush2.msra.mxu0 0.0
  %928 = vmatprep.subr.mxu0 0.0
  %929 = vmatpush2.msra.mxu0 0.0
  %930 = vmatprep.subr.mxu0 0.0
  %931 = vmatpush2.msra.mxu0 0.0
  %932 = vmatprep.subr.mxu0 0.0
  %933 = vmatpush2.msra.mxu0 0.0
  %934 = vmatprep.subr.mxu0 0.0
  %935 = vmatpush2.msra.mxu0 0.0
  %936 = vmatprep.mubr.f32.mxu0 0.0
  %937 = vmatmul.mubr.f32.gmra.mxu0 %v867
  %v938 = vpop.f32.mrf.mxu0
  %v939 = vadd.f32 0.0, %v938
  %v940 = vpop.f32.mrf.mxu0
  %941 = vmatprep.mubr.f32.mxu0 0.0
  %942 = vmatmul.mubr.f32.gmra.mxu0 %v870
  %v943 = vpop.f32.mrf.mxu0
  %v944 = vadd.f32 0.0, %v943
  %v945 = vpop.f32.mrf.mxu0
  %946 = vdwg.mxu0
  %v947 = vsel %vm865, %v117, 0
  %949 = vmatprep.subr.mxu0 0.0
  %950 = vmatpush1.xpose.msra.mxu0 0.0
  %951 = vmatprep.subr.mxu0 0.0
  %952 = vmatpush1.xpose.msra.mxu0 0.0
  %953 = vmatprep.subr.mxu0 0.0
  %954 = vmatpush1.xpose.msra.mxu0 0.0
  %955 = vmatprep.subr.mxu0 0.0
  %956 = vmatpush1.xpose.msra.mxu0 0.0
  %957 = vmatprep.subr.mxu0 0.0
  %958 = vmatpush1.xpose.msra.mxu0 0.0
  %959 = vmatprep.subr.mxu0 0.0
  %960 = vmatpush1.xpose.msra.mxu0 0.0
  %961 = vmatprep.subr.mxu0 0.0
  %962 = vmatpush1.xpose.msra.mxu0 0.0
  %963 = vmatprep.subr.mxu0 0.0
  %964 = vmatpush1.xpose.msra.mxu0 0.0
  %965 = vmatprep.subr.mxu0 0.0
  %966 = vmatpush1.xpose.msra.mxu0 0.0
  %967 = vmatprep.subr.mxu0 0.0
  %968 = vmatpush1.xpose.msra.mxu0 0.0
  %969 = vmatprep.subr.mxu0 0.0
  %970 = vmatpush1.xpose.msra.mxu0 0.0
  %971 = vmatprep.subr.mxu0 0.0
  %972 = vmatpush1.xpose.msra.mxu0 0.0
  %973 = vmatprep.subr.mxu0 0.0
  %974 = vmatpush1.xpose.msra.mxu0 0.0
  %975 = vmatprep.subr.mxu0 0.0
  %976 = vmatpush1.xpose.msra.mxu0 0.0
  %977 = vmatprep.subr.mxu0 0.0
  %978 = vmatpush1.xpose.msra.mxu0 0.0
  %979 = vmatprep.subr.mxu0 0.0
  %980 = vmatpush1.xpose.msra.mxu0 %v947
  %981 = vmatprep.subr.mxu0 0.0
  %982 = vmatpush2.xpose.msra.mxu0 0.0
  %983 = vmatprep.subr.mxu0 0.0
  %984 = vmatpush2.xpose.msra.mxu0 0.0
  %985 = vmatprep.subr.mxu0 0.0
  %986 = vmatpush2.xpose.msra.mxu0 0.0
  %987 = vmatprep.subr.mxu0 0.0
  %988 = vmatpush2.xpose.msra.mxu0 0.0
  %989 = vmatprep.subr.mxu0 0.0
  %990 = vmatpush2.xpose.msra.mxu0 0.0
  %991 = vmatprep.subr.mxu0 0.0
  %992 = vmatpush2.xpose.msra.mxu0 0.0
  %993 = vmatprep.subr.mxu0 0.0
  %994 = vmatpush2.xpose.msra.mxu0 0.0
  %995 = vmatprep.subr.mxu0 0.0
  %996 = vmatpush2.xpose.msra.mxu0 0.0
  %997 = vmatprep.subr.mxu0 0.0
  %998 = vmatpush2.xpose.msra.mxu0 0.0
  %999 = vmatprep.subr.mxu0 0.0
  %1000 = vmatpush2.xpose.msra.mxu0 0.0
  %1001 = vmatprep.subr.mxu0 0.0
  %1002 = vmatpush2.xpose.msra.mxu0 0.0
  %1003 = vmatprep.subr.mxu0 0.0
  %1004 = vmatpush2.xpose.msra.mxu0 0.0
  %1005 = vmatprep.subr.mxu0 0.0
  %1006 = vmatpush2.xpose.msra.mxu0 0.0
  %1007 = vmatprep.subr.mxu0 0.0
  %1008 = vmatpush2.xpose.msra.mxu0 0.0
  %1009 = vmatprep.subr.mxu0 0.0
  %1010 = vmatpush2.xpose.msra.mxu0 0.0
  %1011 = vmatprep.subr.mxu0 0.0
  %1012 = vmatpush2.xpose.msra.mxu0 0.0
  %1013 = vmatprep.mubr.f32.mxu0 0.0
  %1014 = vmatmul.mubr.f32.gmra.mxu0 %v867
  %v1015 = vpop.f32.mrf.mxu0
  %v1016 = vadd.f32 0.0, %v1015
  %v1017 = vpop.f32.mrf.mxu0
  %1018 = vmatprep.mubr.f32.mxu0 0.0
  %1019 = vmatmul.mubr.f32.gmra.mxu0 %v870
  %v1020 = vpop.f32.mrf.mxu0
  %v1021 = vadd.f32 0.0, %v1020
  %v1022 = vpop.f32.mrf.mxu0
  %1023 = vdwg.mxu0
  %v1024 = vrcp.pop %v1016
  %v1025 = vrcp.pop %v1021
  %v1027 = vsel %vm373, %v1024, 0
  %v1030 = vsel %vm373, %v1025, 0
  %v1033 = vsel %vm380, %v134, 0
  %1035 = vmatprep.subr.mxu0 0.0
  %1036 = vmatpush1.msra.mxu0 0.0
  %1037 = vmatprep.subr.mxu0 0.0
  %1038 = vmatpush1.msra.mxu0 0.0
  %1039 = vmatprep.subr.mxu0 0.0
  %1040 = vmatpush1.msra.mxu0 0.0
  %1041 = vmatprep.subr.mxu0 0.0
  %1042 = vmatpush1.msra.mxu0 0.0
  %1043 = vmatprep.subr.mxu0 0.0
  %1044 = vmatpush1.msra.mxu0 0.0
  %1045 = vmatprep.subr.mxu0 0.0
  %1046 = vmatpush1.msra.mxu0 0.0
  %1047 = vmatprep.subr.mxu0 0.0
  %1048 = vmatpush1.msra.mxu0 0.0
  %1049 = vmatprep.subr.mxu0 0.0
  %1050 = vmatpush1.msra.mxu0 0.0
  %1051 = vmatprep.subr.mxu0 0.0
  %1052 = vmatpush1.msra.mxu0 0.0
  %1053 = vmatprep.subr.mxu0 0.0
  %1054 = vmatpush1.msra.mxu0 0.0
  %1055 = vmatprep.subr.mxu0 0.0
  %1056 = vmatpush1.msra.mxu0 0.0
  %1057 = vmatprep.subr.mxu0 0.0
  %1058 = vmatpush1.msra.mxu0 0.0
  %1059 = vmatprep.subr.mxu0 0.0
  %1060 = vmatpush1.msra.mxu0 0.0
  %1061 = vmatprep.subr.mxu0 0.0
  %1062 = vmatpush1.msra.mxu0 0.0
  %1063 = vmatprep.subr.mxu0 0.0
  %1064 = vmatpush1.msra.mxu0 0.0
  %1065 = vmatprep.subr.mxu0 0.0
  %1066 = vmatpush1.msra.mxu0 %v1033
  %1067 = vmatprep.subr.mxu0 0.0
  %1068 = vmatpush2.msra.mxu0 0.0
  %1069 = vmatprep.subr.mxu0 0.0
  %1070 = vmatpush2.msra.mxu0 0.0
  %1071 = vmatprep.subr.mxu0 0.0
  %1072 = vmatpush2.msra.mxu0 0.0
  %1073 = vmatprep.subr.mxu0 0.0
  %1074 = vmatpush2.msra.mxu0 0.0
  %1075 = vmatprep.subr.mxu0 0.0
  %1076 = vmatpush2.msra.mxu0 0.0
  %1077 = vmatprep.subr.mxu0 0.0
  %1078 = vmatpush2.msra.mxu0 0.0
  %1079 = vmatprep.subr.mxu0 0.0
  %1080 = vmatpush2.msra.mxu0 0.0
  %1081 = vmatprep.subr.mxu0 0.0
  %1082 = vmatpush2.msra.mxu0 0.0
  %1083 = vmatprep.subr.mxu0 0.0
  %1084 = vmatpush2.msra.mxu0 0.0
  %1085 = vmatprep.subr.mxu0 0.0
  %1086 = vmatpush2.msra.mxu0 0.0
  %1087 = vmatprep.subr.mxu0 0.0
  %1088 = vmatpush2.msra.mxu0 0.0
  %1089 = vmatprep.subr.mxu0 0.0
  %1090 = vmatpush2.msra.mxu0 0.0
  %1091 = vmatprep.subr.mxu0 0.0
  %1092 = vmatpush2.msra.mxu0 0.0
  %1093 = vmatprep.subr.mxu0 0.0
  %1094 = vmatpush2.msra.mxu0 0.0
  %1095 = vmatprep.subr.mxu0 0.0
  %1096 = vmatpush2.msra.mxu0 0.0
  %1097 = vmatprep.subr.mxu0 0.0
  %1098 = vmatpush2.msra.mxu0 0.0
  %1099 = vmatprep.mubr.f32.mxu0 0.0
  %1100 = vmatmul.mubr.f32.gmra.mxu0 %v1027
  %v1101 = vpop.f32.mrf.mxu0
  %v1102 = vadd.f32 0.0, %v1101
  %v1103 = vpop.f32.mrf.mxu0
  %1104 = vmatprep.mubr.f32.mxu0 0.0
  %1105 = vmatmul.mubr.f32.gmra.mxu0 %v1030
  %v1106 = vpop.f32.mrf.mxu0
  %v1107 = vadd.f32 0.0, %v1106
  %v1108 = vpop.f32.mrf.mxu0
  %1109 = vdwg.mxu0
  %v1110 = vmul.f32 %v939, %v1102
  %v1111 = vmul.f32 %v944, %v1107
  %v1112 = vlaneseq
  %v1113 = vshrl.u32 %v1112, 7
  %v1114 = vsub.s32 0, %v1113
  %v1115 = vrot.slane %v116, %v1114
  %v1116 = vadd.f32 %v1110, %v1115
  %v1117 = vadd.f32 %v1111, %v1115
  %vm1118 = vcmp.gt.f32.partialorder %v1116, 0.0
  %vm1119 = vcmp.gt.f32.partialorder %v1117, 0.0
  %v1120 = vmul.f32 %v1116, 1.442695
  %v1121 = vpow.pop %v1120
  %v1122 = vmul.f32 %v1117, 1.442695
  %v1123 = vpow.pop %v1122
  %v1124 = vsub.f32 %v1121, 1.0
  %v1125 = vsub.f32 %v1123, 1.0
  %v1126 = vsel %vm1118, %v1116, %v1124
  %v1127 = vsel %vm1119, %v1117, %v1125
  %v1128 = vld [vmem:[%s2 + $0x58] sm:$0xff]
  %v1129 = vld [vmem:[%s2 + $0x60] sm:$0xff]
  %v1130 = vld [vmem:[%s2 + $0x68] sm:$0xff]
  %v1131 = vld [vmem:[%s2 + $0x70] sm:$0xff]
  %v1132 = vld [vmem:[%s2 + $0x78] sm:$0xff]
  %v1133 = vld [vmem:[%s2 + $0x80] sm:$0xff]
  %v1134 = vld [vmem:[%s2 + $0x88] sm:$0xff]
  %v1135 = vld [vmem:[%s2 + $0x90] sm:$0xff]
  %v1136 = vld [vmem:[%s2 + $0x98] sm:$0xff]
  %v1137 = vld [vmem:[%s2 + $0xa0] sm:$0xff]
  %v1138 = vld [vmem:[%s2 + $0xa8] sm:$0xff]
  %v1139 = vld [vmem:[%s2 + $0xb0] sm:$0xff]
  %v1140 = vld [vmem:[%s2 + $0xb8] sm:$0x1]
  %v1142 = vsel %vm216, %v1126, 0
  %v1145 = vsel %vm216, %v1127, 0
  %1147 = vmatprep.subr.mxu0 0.0
  %1148 = vmatpush1.msra.mxu0 0.0
  %1149 = vmatprep.subr.mxu0 0.0
  %1150 = vmatpush1.msra.mxu0 0.0
  %1151 = vmatprep.subr.mxu0 0.0
  %1152 = vmatpush1.msra.mxu0 0.0
  %1153 = vmatprep.subr.mxu0 0.0
  %1154 = vmatpush1.msra.mxu0 0.0
  %1155 = vmatprep.subr.mxu0 0.0
  %1156 = vmatpush1.msra.mxu0 0.0
  %1157 = vmatprep.subr.mxu0 0.0
  %1158 = vmatpush1.msra.mxu0 0.0
  %1159 = vmatprep.subr.mxu0 0.0
  %1160 = vmatpush1.msra.mxu0 0.0
  %1161 = vmatprep.subr.mxu0 0.0
  %1162 = vmatpush1.msra.mxu0 0.0
  %1163 = vmatprep.subr.mxu0 0.0
  %1164 = vmatpush1.msra.mxu0 0.0
  %1165 = vmatprep.subr.mxu0 0.0
  %1166 = vmatpush1.msra.mxu0 0.0
  %1167 = vmatprep.subr.mxu0 0.0
  %1168 = vmatpush1.msra.mxu0 0.0
  %1169 = vmatprep.subr.mxu0 0.0
  %1170 = vmatpush1.msra.mxu0 0.0
  %1171 = vmatprep.subr.mxu0 0.0
  %1172 = vmatpush1.msra.mxu0 %v1131
  %1173 = vmatprep.subr.mxu0 0.0
  %1174 = vmatpush1.msra.mxu0 %v1130
  %1175 = vmatprep.subr.mxu0 0.0
  %1176 = vmatpush1.msra.mxu0 %v1129
  %1177 = vmatprep.subr.mxu0 0.0
  %1178 = vmatpush1.msra.mxu0 %v1128
  %1179 = vmatprep.subr.mxu0 0.0
  %1180 = vmatpush2.msra.mxu0 0.0
  %1181 = vmatprep.subr.mxu0 0.0
  %1182 = vmatpush2.msra.mxu0 0.0
  %1183 = vmatprep.subr.mxu0 0.0
  %1184 = vmatpush2.msra.mxu0 0.0
  %1185 = vmatprep.subr.mxu0 0.0
  %1186 = vmatpush2.msra.mxu0 0.0
  %1187 = vmatprep.subr.mxu0 0.0
  %1188 = vmatpush2.msra.mxu0 0.0
  %1189 = vmatprep.subr.mxu0 0.0
  %1190 = vmatpush2.msra.mxu0 0.0
  %1191 = vmatprep.subr.mxu0 0.0
  %1192 = vmatpush2.msra.mxu0 0.0
  %1193 = vmatprep.subr.mxu0 0.0
  %1194 = vmatpush2.msra.mxu0 0.0
  %1195 = vmatprep.subr.mxu0 0.0
  %1196 = vmatpush2.msra.mxu0 0.0
  %1197 = vmatprep.subr.mxu0 0.0
  %1198 = vmatpush2.msra.mxu0 0.0
  %1199 = vmatprep.subr.mxu0 0.0
  %1200 = vmatpush2.msra.mxu0 0.0
  %1201 = vmatprep.subr.mxu0 0.0
  %1202 = vmatpush2.msra.mxu0 0.0
  %1203 = vmatprep.subr.mxu0 0.0
  %1204 = vmatpush2.msra.mxu0 0.0
  %1205 = vmatprep.subr.mxu0 0.0
  %1206 = vmatpush2.msra.mxu0 0.0
  %1207 = vmatprep.subr.mxu0 0.0
  %1208 = vmatpush2.msra.mxu0 0.0
  %1209 = vmatprep.subr.mxu0 0.0
  %1210 = vmatpush2.msra.mxu0 0.0
  %1211 = vmatprep.mubr.f32.mxu0 0.0
  %1212 = vmatmul.mubr.f32.gmra.mxu0 %v1142
  %v1213 = vpop.f32.mrf.mxu0
  %v1214 = vadd.f32 0.0, %v1213
  %v1215 = vpop.f32.mrf.mxu0
  %1216 = vmatprep.mubr.f32.mxu0 0.0
  %1217 = vmatmul.mubr.f32.gmra.mxu0 %v1145
  %v1218 = vpop.f32.mrf.mxu0
  %v1219 = vadd.f32 0.0, %v1218
  %v1220 = vpop.f32.mrf.mxu0
  %1221 = vdwg.mxu0
  %v1223 = vsel %vm216, %v1214, 0
  %v1226 = vsel %vm216, %v1219, 0
  %1228 = vmatprep.subr.mxu0 0.0
  %1229 = vmatpush1.msra.mxu0 0.0
  %1230 = vmatprep.subr.mxu0 0.0
  %1231 = vmatpush1.msra.mxu0 0.0
  %1232 = vmatprep.subr.mxu0 0.0
  %1233 = vmatpush1.msra.mxu0 0.0
  %1234 = vmatprep.subr.mxu0 0.0
  %1235 = vmatpush1.msra.mxu0 0.0
  %1236 = vmatprep.subr.mxu0 0.0
  %1237 = vmatpush1.msra.mxu0 0.0
  %1238 = vmatprep.subr.mxu0 0.0
  %1239 = vmatpush1.msra.mxu0 0.0
  %1240 = vmatprep.subr.mxu0 0.0
  %1241 = vmatpush1.msra.mxu0 0.0
  %1242 = vmatprep.subr.mxu0 0.0
  %1243 = vmatpush1.msra.mxu0 0.0
  %1244 = vmatprep.subr.mxu0 0.0
  %1245 = vmatpush1.msra.mxu0 0.0
  %1246 = vmatprep.subr.mxu0 0.0
  %1247 = vmatpush1.msra.mxu0 0.0
  %1248 = vmatprep.subr.mxu0 0.0
  %1249 = vmatpush1.msra.mxu0 0.0
  %1250 = vmatprep.subr.mxu0 0.0
  %1251 = vmatpush1.msra.mxu0 0.0
  %1252 = vmatprep.subr.mxu0 0.0
  %1253 = vmatpush1.msra.mxu0 %v1139
  %1254 = vmatprep.subr.mxu0 0.0
  %1255 = vmatpush1.msra.mxu0 %v1138
  %1256 = vmatprep.subr.mxu0 0.0
  %1257 = vmatpush1.msra.mxu0 %v1137
  %1258 = vmatprep.subr.mxu0 0.0
  %1259 = vmatpush1.msra.mxu0 %v1136
  %1260 = vmatprep.subr.mxu0 0.0
  %1261 = vmatpush2.msra.mxu0 0.0
  %1262 = vmatprep.subr.mxu0 0.0
  %1263 = vmatpush2.msra.mxu0 0.0
  %1264 = vmatprep.subr.mxu0 0.0
  %1265 = vmatpush2.msra.mxu0 0.0
  %1266 = vmatprep.subr.mxu0 0.0
  %1267 = vmatpush2.msra.mxu0 0.0
  %1268 = vmatprep.subr.mxu0 0.0
  %1269 = vmatpush2.msra.mxu0 0.0
  %1270 = vmatprep.subr.mxu0 0.0
  %1271 = vmatpush2.msra.mxu0 0.0
  %1272 = vmatprep.subr.mxu0 0.0
  %1273 = vmatpush2.msra.mxu0 0.0
  %1274 = vmatprep.subr.mxu0 0.0
  %1275 = vmatpush2.msra.mxu0 0.0
  %1276 = vmatprep.subr.mxu0 0.0
  %1277 = vmatpush2.msra.mxu0 0.0
  %1278 = vmatprep.subr.mxu0 0.0
  %1279 = vmatpush2.msra.mxu0 0.0
  %1280 = vmatprep.subr.mxu0 0.0
  %1281 = vmatpush2.msra.mxu0 0.0
  %1282 = vmatprep.subr.mxu0 0.0
  %1283 = vmatpush2.msra.mxu0 0.0
  %1284 = vmatprep.subr.mxu0 0.0
  %1285 = vmatpush2.msra.mxu0 0.0
  %1286 = vmatprep.subr.mxu0 0.0
  %1287 = vmatpush2.msra.mxu0 0.0
  %1288 = vmatprep.subr.mxu0 0.0
  %1289 = vmatpush2.msra.mxu0 0.0
  %1290 = vmatprep.subr.mxu0 0.0
  %1291 = vmatpush2.msra.mxu0 0.0
  %1292 = vmatprep.mubr.f32.mxu0 0.0
  %1293 = vmatmul.mubr.f32.gmra.mxu0 %v1223
  %v1294 = vpop.f32.mrf.mxu0
  %v1295 = vadd.f32 0.0, %v1294
  %v1296 = vpop.f32.mrf.mxu0
  %1297 = vmatprep.mubr.f32.mxu0 0.0
  %1298 = vmatmul.mubr.f32.gmra.mxu0 %v1226
  %v1299 = vpop.f32.mrf.mxu0
  %v1300 = vadd.f32 0.0, %v1299
  %v1301 = vpop.f32.mrf.mxu0
  %1302 = vdwg.mxu0
  %1303 = vmatprep.subr.mxu0 0.0
  %1304 = vmatpush1.msra.mxu0 0.0
  %1305 = vmatprep.subr.mxu0 0.0
  %1306 = vmatpush1.msra.mxu0 0.0
  %1307 = vmatprep.subr.mxu0 0.0
  %1308 = vmatpush1.msra.mxu0 0.0
  %1309 = vmatprep.subr.mxu0 0.0
  %1310 = vmatpush1.msra.mxu0 0.0
  %1311 = vmatprep.subr.mxu0 0.0
  %1312 = vmatpush1.msra.mxu0 0.0
  %1313 = vmatprep.subr.mxu0 0.0
  %1314 = vmatpush1.msra.mxu0 0.0
  %1315 = vmatprep.subr.mxu0 0.0
  %1316 = vmatpush1.msra.mxu0 0.0
  %1317 = vmatprep.subr.mxu0 0.0
  %1318 = vmatpush1.msra.mxu0 0.0
  %1319 = vmatprep.subr.mxu0 0.0
  %1320 = vmatpush1.msra.mxu0 0.0
  %1321 = vmatprep.subr.mxu0 0.0
  %1322 = vmatpush1.msra.mxu0 0.0
  %1323 = vmatprep.subr.mxu0 0.0
  %1324 = vmatpush1.msra.mxu0 0.0
  %1325 = vmatprep.subr.mxu0 0.0
  %1326 = vmatpush1.msra.mxu0 0.0
  %1327 = vmatprep.subr.mxu0 0.0
  %1328 = vmatpush1.msra.mxu0 %v1135
  %1329 = vmatprep.subr.mxu0 0.0
  %1330 = vmatpush1.msra.mxu0 %v1134
  %1331 = vmatprep.subr.mxu0 0.0
  %1332 = vmatpush1.msra.mxu0 %v1133
  %1333 = vmatprep.subr.mxu0 0.0
  %1334 = vmatpush1.msra.mxu0 %v1132
  %1335 = vmatprep.subr.mxu0 0.0
  %1336 = vmatpush2.msra.mxu0 0.0
  %1337 = vmatprep.subr.mxu0 0.0
  %1338 = vmatpush2.msra.mxu0 0.0
  %1339 = vmatprep.subr.mxu0 0.0
  %1340 = vmatpush2.msra.mxu0 0.0
  %1341 = vmatprep.subr.mxu0 0.0
  %1342 = vmatpush2.msra.mxu0 0.0
  %1343 = vmatprep.subr.mxu0 0.0
  %1344 = vmatpush2.msra.mxu0 0.0
  %1345 = vmatprep.subr.mxu0 0.0
  %1346 = vmatpush2.msra.mxu0 0.0
  %1347 = vmatprep.subr.mxu0 0.0
  %1348 = vmatpush2.msra.mxu0 0.0
  %1349 = vmatprep.subr.mxu0 0.0
  %1350 = vmatpush2.msra.mxu0 0.0
  %1351 = vmatprep.subr.mxu0 0.0
  %1352 = vmatpush2.msra.mxu0 0.0
  %1353 = vmatprep.subr.mxu0 0.0
  %1354 = vmatpush2.msra.mxu0 0.0
  %1355 = vmatprep.subr.mxu0 0.0
  %1356 = vmatpush2.msra.mxu0 0.0
  %1357 = vmatprep.subr.mxu0 0.0
  %1358 = vmatpush2.msra.mxu0 0.0
  %1359 = vmatprep.subr.mxu0 0.0
  %1360 = vmatpush2.msra.mxu0 0.0
  %1361 = vmatprep.subr.mxu0 0.0
  %1362 = vmatpush2.msra.mxu0 0.0
  %1363 = vmatprep.subr.mxu0 0.0
  %1364 = vmatpush2.msra.mxu0 0.0
  %1365 = vmatprep.subr.mxu0 0.0
  %1366 = vmatpush2.msra.mxu0 0.0
  %1367 = vmatprep.mubr.f32.mxu0 0.0
  %1368 = vmatmul.mubr.f32.gmra.mxu0 %v1223
  %v1369 = vpop.f32.mrf.mxu0
  %v1370 = vadd.f32 0.0, %v1369
  %v1371 = vpop.f32.mrf.mxu0
  %1372 = vmatprep.mubr.f32.mxu0 0.0
  %1373 = vmatmul.mubr.f32.gmra.mxu0 %v1226
  %v1374 = vpop.f32.mrf.mxu0
  %v1375 = vadd.f32 0.0, %v1374
  %v1376 = vpop.f32.mrf.mxu0
  %1377 = vdwg.mxu0
  %v1379 = vsel %vm373, %v1370, 0
  %v1382 = vsel %vm373, %v1375, 0
  %1384 = vmatprep.subr.mxu0 0.0
  %1385 = vmatpush1.msra.mxu0 0.0
  %1386 = vmatprep.subr.mxu0 0.0
  %1387 = vmatpush1.msra.mxu0 0.0
  %1388 = vmatprep.subr.mxu0 0.0
  %1389 = vmatpush1.msra.mxu0 0.0
  %1390 = vmatprep.subr.mxu0 0.0
  %1391 = vmatpush1.msra.mxu0 0.0
  %1392 = vmatprep.subr.mxu0 0.0
  %1393 = vmatpush1.msra.mxu0 0.0
  %1394 = vmatprep.subr.mxu0 0.0
  %1395 = vmatpush1.msra.mxu0 0.0
  %1396 = vmatprep.subr.mxu0 0.0
  %1397 = vmatpush1.msra.mxu0 0.0
  %1398 = vmatprep.subr.mxu0 0.0
  %1399 = vmatpush1.msra.mxu0 0.0
  %1400 = vmatprep.subr.mxu0 0.0
  %1401 = vmatpush1.msra.mxu0 0.0
  %1402 = vmatprep.subr.mxu0 0.0
  %1403 = vmatpush1.msra.mxu0 0.0
  %1404 = vmatprep.subr.mxu0 0.0
  %1405 = vmatpush1.msra.mxu0 0.0
  %1406 = vmatprep.subr.mxu0 0.0
  %1407 = vmatpush1.msra.mxu0 0.0
  %1408 = vmatprep.subr.mxu0 0.0
  %1409 = vmatpush1.msra.mxu0 0.0
  %1410 = vmatprep.subr.mxu0 0.0
  %1411 = vmatpush1.msra.mxu0 0.0
  %1412 = vmatprep.subr.mxu0 0.0
  %1413 = vmatpush1.msra.mxu0 0.0
  %1414 = vmatprep.subr.mxu0 0.0
  %1415 = vmatpush1.msra.mxu0 %v382
  %1416 = vmatprep.subr.mxu0 0.0
  %1417 = vmatpush2.msra.mxu0 0.0
  %1418 = vmatprep.subr.mxu0 0.0
  %1419 = vmatpush2.msra.mxu0 0.0
  %1420 = vmatprep.subr.mxu0 0.0
  %1421 = vmatpush2.msra.mxu0 0.0
  %1422 = vmatprep.subr.mxu0 0.0
  %1423 = vmatpush2.msra.mxu0 0.0
  %1424 = vmatprep.subr.mxu0 0.0
  %1425 = vmatpush2.msra.mxu0 0.0
  %1426 = vmatprep.subr.mxu0 0.0
  %1427 = vmatpush2.msra.mxu0 0.0
  %1428 = vmatprep.subr.mxu0 0.0
  %1429 = vmatpush2.msra.mxu0 0.0
  %1430 = vmatprep.subr.mxu0 0.0
  %1431 = vmatpush2.msra.mxu0 0.0
  %1432 = vmatprep.subr.mxu0 0.0
  %1433 = vmatpush2.msra.mxu0 0.0
  %1434 = vmatprep.subr.mxu0 0.0
  %1435 = vmatpush2.msra.mxu0 0.0
  %1436 = vmatprep.subr.mxu0 0.0
  %1437 = vmatpush2.msra.mxu0 0.0
  %1438 = vmatprep.subr.mxu0 0.0
  %1439 = vmatpush2.msra.mxu0 0.0
  %1440 = vmatprep.subr.mxu0 0.0
  %1441 = vmatpush2.msra.mxu0 0.0
  %1442 = vmatprep.subr.mxu0 0.0
  %1443 = vmatpush2.msra.mxu0 0.0
  %1444 = vmatprep.subr.mxu0 0.0
  %1445 = vmatpush2.msra.mxu0 0.0
  %1446 = vmatprep.subr.mxu0 0.0
  %1447 = vmatpush2.msra.mxu0 0.0
  %1448 = vmatprep.mubr.f32.mxu0 0.0
  %1449 = vmatmul.mubr.f32.gmra.mxu0 %v1379
  %v1450 = vpop.f32.mrf.mxu0
  %v1451 = vadd.f32 0.0, %v1450
  %v1452 = vpop.f32.mrf.mxu0
  %1453 = vmatprep.mubr.f32.mxu0 0.0
  %1454 = vmatmul.mubr.f32.gmra.mxu0 %v1382
  %v1455 = vpop.f32.mrf.mxu0
  %v1456 = vadd.f32 0.0, %v1455
  %v1457 = vpop.f32.mrf.mxu0
  %1458 = vdwg.mxu0
  %v1459 = vmul.f32 %v1451, %v14
  %v1460 = vmul.f32 %v1456, %v15
  %1461 = vmatprep.subr.mxu0 0.0
  %1462 = vmatpush1.msra.mxu0 0.0
  %1463 = vmatprep.subr.mxu0 0.0
  %1464 = vmatpush1.msra.mxu0 0.0
  %1465 = vmatprep.subr.mxu0 0.0
  %1466 = vmatpush1.msra.mxu0 0.0
  %1467 = vmatprep.subr.mxu0 0.0
  %1468 = vmatpush1.msra.mxu0 0.0
  %1469 = vmatprep.subr.mxu0 0.0
  %1470 = vmatpush1.msra.mxu0 0.0
  %1471 = vmatprep.subr.mxu0 0.0
  %1472 = vmatpush1.msra.mxu0 0.0
  %1473 = vmatprep.subr.mxu0 0.0
  %1474 = vmatpush1.msra.mxu0 0.0
  %1475 = vmatprep.subr.mxu0 0.0
  %1476 = vmatpush1.msra.mxu0 0.0
  %1477 = vmatprep.subr.mxu0 0.0
  %1478 = vmatpush1.msra.mxu0 0.0
  %1479 = vmatprep.subr.mxu0 0.0
  %1480 = vmatpush1.msra.mxu0 0.0
  %1481 = vmatprep.subr.mxu0 0.0
  %1482 = vmatpush1.msra.mxu0 0.0
  %1483 = vmatprep.subr.mxu0 0.0
  %1484 = vmatpush1.msra.mxu0 0.0
  %1485 = vmatprep.subr.mxu0 0.0
  %1486 = vmatpush1.msra.mxu0 0.0
  %1487 = vmatprep.subr.mxu0 0.0
  %1488 = vmatpush1.msra.mxu0 0.0
  %1489 = vmatprep.subr.mxu0 0.0
  %1490 = vmatpush1.msra.mxu0 %v1460
  %1491 = vmatprep.subr.mxu0 0.0
  %1492 = vmatpush1.msra.mxu0 %v1459
  %1493 = vmatprep.subr.mxu0 0.0
  %1494 = vmatpush2.msra.mxu0 0.0
  %1495 = vmatprep.subr.mxu0 0.0
  %1496 = vmatpush2.msra.mxu0 0.0
  %1497 = vmatprep.subr.mxu0 0.0
  %1498 = vmatpush2.msra.mxu0 0.0
  %1499 = vmatprep.subr.mxu0 0.0
  %1500 = vmatpush2.msra.mxu0 0.0
  %1501 = vmatprep.subr.mxu0 0.0
  %1502 = vmatpush2.msra.mxu0 0.0
  %1503 = vmatprep.subr.mxu0 0.0
  %1504 = vmatpush2.msra.mxu0 0.0
  %1505 = vmatprep.subr.mxu0 0.0
  %1506 = vmatpush2.msra.mxu0 0.0
  %1507 = vmatprep.subr.mxu0 0.0
  %1508 = vmatpush2.msra.mxu0 0.0
  %1509 = vmatprep.subr.mxu0 0.0
  %1510 = vmatpush2.msra.mxu0 0.0
  %1511 = vmatprep.subr.mxu0 0.0
  %1512 = vmatpush2.msra.mxu0 0.0
  %1513 = vmatprep.subr.mxu0 0.0
  %1514 = vmatpush2.msra.mxu0 0.0
  %1515 = vmatprep.subr.mxu0 0.0
  %1516 = vmatpush2.msra.mxu0 0.0
  %1517 = vmatprep.subr.mxu0 0.0
  %1518 = vmatpush2.msra.mxu0 0.0
  %1519 = vmatprep.subr.mxu0 0.0
  %1520 = vmatpush2.msra.mxu0 0.0
  %1521 = vmatprep.subr.mxu0 0.0
  %1522 = vmatpush2.msra.mxu0 0.0
  %1523 = vmatprep.subr.mxu0 0.0
  %1524 = vmatpush2.msra.mxu0 0.0
  %1525 = vmatprep.mubr.f32.mxu0 0.0
  %1526 = vmatmul.mubr.f32.gmra.mxu0 %v462
  %v1527 = vpop.f32.mrf.mxu0
  %v1528 = vadd.f32 0.0, %v1527
  %v1529 = vpop.f32.mrf.mxu0
  %1530 = vmatprep.mubr.f32.mxu0 0.0
  %1531 = vmatmul.mubr.f32.gmra.mxu0 %v462
  %v1532 = vpop.f32.mrf.mxu0
  %v1533 = vadd.f32 0.0, %v1532
  %v1534 = vpop.f32.mrf.mxu0
  %1535 = vdwg.mxu0
  %v1537 = vsel %vm373, %v1295, 0
  %v1540 = vsel %vm373, %v1300, 0
  %1542 = vmatprep.subr.mxu0 0.0
  %1543 = vmatpush1.msra.mxu0 0.0
  %1544 = vmatprep.subr.mxu0 0.0
  %1545 = vmatpush1.msra.mxu0 0.0
  %1546 = vmatprep.subr.mxu0 0.0
  %1547 = vmatpush1.msra.mxu0 0.0
  %1548 = vmatprep.subr.mxu0 0.0
  %1549 = vmatpush1.msra.mxu0 0.0
  %1550 = vmatprep.subr.mxu0 0.0
  %1551 = vmatpush1.msra.mxu0 0.0
  %1552 = vmatprep.subr.mxu0 0.0
  %1553 = vmatpush1.msra.mxu0 0.0
  %1554 = vmatprep.subr.mxu0 0.0
  %1555 = vmatpush1.msra.mxu0 0.0
  %1556 = vmatprep.subr.mxu0 0.0
  %1557 = vmatpush1.msra.mxu0 0.0
  %1558 = vmatprep.subr.mxu0 0.0
  %1559 = vmatpush1.msra.mxu0 0.0
  %1560 = vmatprep.subr.mxu0 0.0
  %1561 = vmatpush1.msra.mxu0 0.0
  %1562 = vmatprep.subr.mxu0 0.0
  %1563 = vmatpush1.msra.mxu0 0.0
  %1564 = vmatprep.subr.mxu0 0.0
  %1565 = vmatpush1.msra.mxu0 0.0
  %1566 = vmatprep.subr.mxu0 0.0
  %1567 = vmatpush1.msra.mxu0 0.0
  %1568 = vmatprep.subr.mxu0 0.0
  %1569 = vmatpush1.msra.mxu0 0.0
  %1570 = vmatprep.subr.mxu0 0.0
  %1571 = vmatpush1.msra.mxu0 0.0
  %1572 = vmatprep.subr.mxu0 0.0
  %1573 = vmatpush1.msra.mxu0 %v382
  %1574 = vmatprep.subr.mxu0 0.0
  %1575 = vmatpush2.msra.mxu0 0.0
  %1576 = vmatprep.subr.mxu0 0.0
  %1577 = vmatpush2.msra.mxu0 0.0
  %1578 = vmatprep.subr.mxu0 0.0
  %1579 = vmatpush2.msra.mxu0 0.0
  %1580 = vmatprep.subr.mxu0 0.0
  %1581 = vmatpush2.msra.mxu0 0.0
  %1582 = vmatprep.subr.mxu0 0.0
  %1583 = vmatpush2.msra.mxu0 0.0
  %1584 = vmatprep.subr.mxu0 0.0
  %1585 = vmatpush2.msra.mxu0 0.0
  %1586 = vmatprep.subr.mxu0 0.0
  %1587 = vmatpush2.msra.mxu0 0.0
  %1588 = vmatprep.subr.mxu0 0.0
  %1589 = vmatpush2.msra.mxu0 0.0
  %1590 = vmatprep.subr.mxu0 0.0
  %1591 = vmatpush2.msra.mxu0 0.0
  %1592 = vmatprep.subr.mxu0 0.0
  %1593 = vmatpush2.msra.mxu0 0.0
  %1594 = vmatprep.subr.mxu0 0.0
  %1595 = vmatpush2.msra.mxu0 0.0
  %1596 = vmatprep.subr.mxu0 0.0
  %1597 = vmatpush2.msra.mxu0 0.0
  %1598 = vmatprep.subr.mxu0 0.0
  %1599 = vmatpush2.msra.mxu0 0.0
  %1600 = vmatprep.subr.mxu0 0.0
  %1601 = vmatpush2.msra.mxu0 0.0
  %1602 = vmatprep.subr.mxu0 0.0
  %1603 = vmatpush2.msra.mxu0 0.0
  %1604 = vmatprep.subr.mxu0 0.0
  %1605 = vmatpush2.msra.mxu0 0.0
  %1606 = vmatprep.mubr.f32.mxu0 0.0
  %1607 = vmatmul.mubr.f32.gmra.mxu0 %v1537
  %v1608 = vpop.f32.mrf.mxu0
  %v1609 = vadd.f32 %v1528, %v1608
  %v1610 = vpop.f32.mrf.mxu0
  %1611 = vmatprep.mubr.f32.mxu0 0.0
  %1612 = vmatmul.mubr.f32.gmra.mxu0 %v1540
  %v1613 = vpop.f32.mrf.mxu0
  %v1614 = vadd.f32 %v1533, %v1613
  %v1615 = vpop.f32.mrf.mxu0
  %1616 = vdwg.mxu0
  %v1617 = vmul.f32 %v1609, 0.2
  %v1618 = vmul.f32 %v1614, 0.2
  %v1619 = vmax.f32 %v1609, %v1617
  %v1620 = vmax.f32 %v1614, %v1618
  %v1621 = vsel %vm373, %v1370, -inf
  %v1622 = vsel %vm373, %v1375, -inf
  %v1623 = vmax.f32 %v1621, %v1622
  %v1624 = vrot.slane %v1623, 4
  %v1625 = vmax.f32 %v1623, %v1624
  %v1626 = vrot.slane %v1625, 2
  %v1627 = vmax.f32 %v1625, %v1626
  %v1628 = vrot.slane %v1627, 1
  %v1629 = vmax.f32 %v1627, %v1628
  %v1630 = vadd.f32 %v1295, %v1629
  %v1631 = vadd.f32 %v1300, %v1629
  %v1632 = vmul.f32 %v1630, 0.2
  %v1633 = vmul.f32 %v1631, 0.2
  %v1634 = vmax.f32 %v1630, %v1632
  %v1635 = vmax.f32 %v1631, %v1633
  %v1637 = vsel %vm373, %v1634, 0
  %v1640 = vsel %vm373, %v1635, 0
  %1642 = vmatprep.subr.mxu0 0.0
  %1643 = vmatpush1.msra.mxu0 0.0
  %1644 = vmatprep.subr.mxu0 0.0
  %1645 = vmatpush1.msra.mxu0 0.0
  %1646 = vmatprep.subr.mxu0 0.0
  %1647 = vmatpush1.msra.mxu0 0.0
  %1648 = vmatprep.subr.mxu0 0.0
  %1649 = vmatpush1.msra.mxu0 0.0
  %1650 = vmatprep.subr.mxu0 0.0
  %1651 = vmatpush1.msra.mxu0 0.0
  %1652 = vmatprep.subr.mxu0 0.0
  %1653 = vmatpush1.msra.mxu0 0.0
  %1654 = vmatprep.subr.mxu0 0.0
  %1655 = vmatpush1.msra.mxu0 0.0
  %1656 = vmatprep.subr.mxu0 0.0
  %1657 = vmatpush1.msra.mxu0 0.0
  %1658 = vmatprep.subr.mxu0 0.0
  %1659 = vmatpush1.msra.mxu0 0.0
  %1660 = vmatprep.subr.mxu0 0.0
  %1661 = vmatpush1.msra.mxu0 0.0
  %1662 = vmatprep.subr.mxu0 0.0
  %1663 = vmatpush1.msra.mxu0 0.0
  %1664 = vmatprep.subr.mxu0 0.0
  %1665 = vmatpush1.msra.mxu0 0.0
  %1666 = vmatprep.subr.mxu0 0.0
  %1667 = vmatpush1.msra.mxu0 0.0
  %1668 = vmatprep.subr.mxu0 0.0
  %1669 = vmatpush1.msra.mxu0 0.0
  %1670 = vmatprep.subr.mxu0 0.0
  %1671 = vmatpush1.msra.mxu0 0.0
  %1672 = vmatprep.subr.mxu0 0.0
  %1673 = vmatpush1.msra.mxu0 %v382
  %1674 = vmatprep.subr.mxu0 0.0
  %1675 = vmatpush2.msra.mxu0 0.0
  %1676 = vmatprep.subr.mxu0 0.0
  %1677 = vmatpush2.msra.mxu0 0.0
  %1678 = vmatprep.subr.mxu0 0.0
  %1679 = vmatpush2.msra.mxu0 0.0
  %1680 = vmatprep.subr.mxu0 0.0
  %1681 = vmatpush2.msra.mxu0 0.0
  %1682 = vmatprep.subr.mxu0 0.0
  %1683 = vmatpush2.msra.mxu0 0.0
  %1684 = vmatprep.subr.mxu0 0.0
  %1685 = vmatpush2.msra.mxu0 0.0
  %1686 = vmatprep.subr.mxu0 0.0
  %1687 = vmatpush2.msra.mxu0 0.0
  %1688 = vmatprep.subr.mxu0 0.0
  %1689 = vmatpush2.msra.mxu0 0.0
  %1690 = vmatprep.subr.mxu0 0.0
  %1691 = vmatpush2.msra.mxu0 0.0
  %1692 = vmatprep.subr.mxu0 0.0
  %1693 = vmatpush2.msra.mxu0 0.0
  %1694 = vmatprep.subr.mxu0 0.0
  %1695 = vmatpush2.msra.mxu0 0.0
  %1696 = vmatprep.subr.mxu0 0.0
  %1697 = vmatpush2.msra.mxu0 0.0
  %1698 = vmatprep.subr.mxu0 0.0
  %1699 = vmatpush2.msra.mxu0 0.0
  %1700 = vmatprep.subr.mxu0 0.0
  %1701 = vmatpush2.msra.mxu0 0.0
  %1702 = vmatprep.subr.mxu0 0.0
  %1703 = vmatpush2.msra.mxu0 0.0
  %1704 = vmatprep.subr.mxu0 0.0
  %1705 = vmatpush2.msra.mxu0 0.0
  %1706 = vmatprep.mubr.f32.mxu0 0.0
  %1707 = vmatmul.mubr.f32.gmra.mxu0 %v1637
  %v1708 = vpop.f32.mrf.mxu0
  %v1709 = vadd.f32 0.0, %v1708
  %v1710 = vpop.f32.mrf.mxu0
  %1711 = vmatprep.mubr.f32.mxu0 0.0
  %1712 = vmatmul.mubr.f32.gmra.mxu0 %v1640
  %v1713 = vpop.f32.mrf.mxu0
  %v1714 = vadd.f32 0.0, %v1713
  %v1715 = vpop.f32.mrf.mxu0
  %1716 = vdwg.mxu0
  %v1717 = vadd.f32 %v1619, %v102
  %v1718 = vadd.f32 %v1620, %v103
  %v1719 = vsub.f32 %v1717, %v1709
  %v1720 = vsub.f32 %v1718, %v1714
  %v1721 = vmul.f32 %v1719, 1.442695
  %v1722 = vpow.pop %v1721
  %v1723 = vmul.f32 %v1720, 1.442695
  %v1724 = vpow.pop %v1723
  %1725 = vmatprep.subr.mxu0 0.0
  %1726 = vmatpush1.msra.mxu0 0.0
  %1727 = vmatprep.subr.mxu0 0.0
  %1728 = vmatpush1.msra.mxu0 0.0
  %1729 = vmatprep.subr.mxu0 0.0
  %1730 = vmatpush1.msra.mxu0 0.0
  %1731 = vmatprep.subr.mxu0 0.0
  %1732 = vmatpush1.msra.mxu0 0.0
  %1733 = vmatprep.subr.mxu0 0.0
  %1734 = vmatpush1.msra.mxu0 0.0
  %1735 = vmatprep.subr.mxu0 0.0
  %1736 = vmatpush1.msra.mxu0 0.0
  %1737 = vmatprep.subr.mxu0 0.0
  %1738 = vmatpush1.msra.mxu0 0.0
  %1739 = vmatprep.subr.mxu0 0.0
  %1740 = vmatpush1.msra.mxu0 0.0
  %1741 = vmatprep.subr.mxu0 0.0
  %1742 = vmatpush1.msra.mxu0 0.0
  %1743 = vmatprep.subr.mxu0 0.0
  %1744 = vmatpush1.msra.mxu0 0.0
  %1745 = vmatprep.subr.mxu0 0.0
  %1746 = vmatpush1.msra.mxu0 0.0
  %1747 = vmatprep.subr.mxu0 0.0
  %1748 = vmatpush1.msra.mxu0 0.0
  %1749 = vmatprep.subr.mxu0 0.0
  %1750 = vmatpush1.msra.mxu0 0.0
  %1751 = vmatprep.subr.mxu0 0.0
  %1752 = vmatpush1.msra.mxu0 0.0
  %1753 = vmatprep.subr.mxu0 0.0
  %1754 = vmatpush1.msra.mxu0 %v1219
  %1755 = vmatprep.subr.mxu0 0.0
  %1756 = vmatpush1.msra.mxu0 %v1214
  %1757 = vmatprep.subr.mxu0 0.0
  %1758 = vmatpush2.msra.mxu0 0.0
  %1759 = vmatprep.subr.mxu0 0.0
  %1760 = vmatpush2.msra.mxu0 0.0
  %1761 = vmatprep.subr.mxu0 0.0
  %1762 = vmatpush2.msra.mxu0 0.0
  %1763 = vmatprep.subr.mxu0 0.0
  %1764 = vmatpush2.msra.mxu0 0.0
  %1765 = vmatprep.subr.mxu0 0.0
  %1766 = vmatpush2.msra.mxu0 0.0
  %1767 = vmatprep.subr.mxu0 0.0
  %1768 = vmatpush2.msra.mxu0 0.0
  %1769 = vmatprep.subr.mxu0 0.0
  %1770 = vmatpush2.msra.mxu0 0.0
  %1771 = vmatprep.subr.mxu0 0.0
  %1772 = vmatpush2.msra.mxu0 0.0
  %1773 = vmatprep.subr.mxu0 0.0
  %1774 = vmatpush2.msra.mxu0 0.0
  %1775 = vmatprep.subr.mxu0 0.0
  %1776 = vmatpush2.msra.mxu0 0.0
  %1777 = vmatprep.subr.mxu0 0.0
  %1778 = vmatpush2.msra.mxu0 0.0
  %1779 = vmatprep.subr.mxu0 0.0
  %1780 = vmatpush2.msra.mxu0 0.0
  %1781 = vmatprep.subr.mxu0 0.0
  %1782 = vmatpush2.msra.mxu0 0.0
  %1783 = vmatprep.subr.mxu0 0.0
  %1784 = vmatpush2.msra.mxu0 0.0
  %1785 = vmatprep.subr.mxu0 0.0
  %1786 = vmatpush2.msra.mxu0 0.0
  %1787 = vmatprep.subr.mxu0 0.0
  %1788 = vmatpush2.msra.mxu0 0.0
  %1789 = vmatprep.mubr.f32.mxu0 0.0
  %1790 = vmatmul.mubr.f32.gmra.mxu0 %v729
  %v1791 = vpop.f32.mrf.mxu0
  %v1792 = vadd.f32 0.0, %v1791
  %v1793 = vpop.f32.mrf.mxu0
  %1794 = vmatprep.mubr.f32.mxu0 0.0
  %1795 = vmatmul.mubr.f32.gmra.mxu0 %v732
  %v1796 = vpop.f32.mrf.mxu0
  %v1797 = vadd.f32 0.0, %v1796
  %v1798 = vpop.f32.mrf.mxu0
  %1799 = vmatprep.mubr.f32.mxu0 0.0
  %1800 = vmatmul.mubr.f32.gmra.mxu0 %v735
  %v1801 = vpop.f32.mrf.mxu0
  %v1802 = vadd.f32 0.0, %v1801
  %v1803 = vpop.f32.mrf.mxu0
  %1804 = vmatprep.mubr.f32.mxu0 0.0
  %1805 = vmatmul.mubr.f32.gmra.mxu0 %v738
  %v1806 = vpop.f32.mrf.mxu0
  %v1807 = vadd.f32 0.0, %v1806
  %v1808 = vpop.f32.mrf.mxu0
  %1809 = vmatprep.mubr.f32.mxu0 0.0
  %1810 = vmatmul.mubr.f32.gmra.mxu0 %v741
  %v1811 = vpop.f32.mrf.mxu0
  %v1812 = vadd.f32 0.0, %v1811
  %v1813 = vpop.f32.mrf.mxu0
  %1814 = vmatprep.mubr.f32.mxu0 0.0
  %1815 = vmatmul.mubr.f32.gmra.mxu0 %v744
  %v1816 = vpop.f32.mrf.mxu0
  %v1817 = vadd.f32 0.0, %v1816
  %v1818 = vpop.f32.mrf.mxu0
  %1819 = vmatprep.mubr.f32.mxu0 0.0
  %1820 = vmatmul.mubr.f32.gmra.mxu0 %v747
  %v1821 = vpop.f32.mrf.mxu0
  %v1822 = vadd.f32 0.0, %v1821
  %v1823 = vpop.f32.mrf.mxu0
  %1824 = vmatprep.mubr.f32.mxu0 0.0
  %1825 = vmatmul.mubr.f32.gmra.mxu0 %v750
  %v1826 = vpop.f32.mrf.mxu0
  %v1827 = vadd.f32 0.0, %v1826
  %v1828 = vpop.f32.mrf.mxu0
  %1829 = vdwg.mxu0
  %v1830 = vmul.f32 %v1792, %v126
  %v1831 = vmul.f32 %v1797, %v127
  %v1832 = vmul.f32 %v1802, %v128
  %v1833 = vmul.f32 %v1807, %v129
  %v1834 = vmul.f32 %v1812, %v130
  %v1835 = vmul.f32 %v1817, %v131
  %v1836 = vmul.f32 %v1822, %v132
  %v1837 = vmul.f32 %v1827, %v133
  %v1839 = vsel %vm865, %v1722, 0
  %v1842 = vsel %vm865, %v1724, 0
  %1844 = vmatprep.subr.mxu0 0.0
  %1845 = vmatpush1.msra.mxu0 0.0
  %1846 = vmatprep.subr.mxu0 0.0
  %1847 = vmatpush1.msra.mxu0 0.0
  %1848 = vmatprep.subr.mxu0 0.0
  %1849 = vmatpush1.msra.mxu0 0.0
  %1850 = vmatprep.subr.mxu0 0.0
  %1851 = vmatpush1.msra.mxu0 0.0
  %1852 = vmatprep.subr.mxu0 0.0
  %1853 = vmatpush1.msra.mxu0 0.0
  %1854 = vmatprep.subr.mxu0 0.0
  %1855 = vmatpush1.msra.mxu0 0.0
  %1856 = vmatprep.subr.mxu0 0.0
  %1857 = vmatpush1.msra.mxu0 0.0
  %1858 = vmatprep.subr.mxu0 0.0
  %1859 = vmatpush1.msra.mxu0 0.0
  %1860 = vmatprep.subr.mxu0 0.0
  %1861 = vmatpush1.msra.mxu0 %v1837
  %1862 = vmatprep.subr.mxu0 0.0
  %1863 = vmatpush1.msra.mxu0 %v1836
  %1864 = vmatprep.subr.mxu0 0.0
  %1865 = vmatpush1.msra.mxu0 %v1835
  %1866 = vmatprep.subr.mxu0 0.0
  %1867 = vmatpush1.msra.mxu0 %v1834
  %1868 = vmatprep.subr.mxu0 0.0
  %1869 = vmatpush1.msra.mxu0 %v1833
  %1870 = vmatprep.subr.mxu0 0.0
  %1871 = vmatpush1.msra.mxu0 %v1832
  %1872 = vmatprep.subr.mxu0 0.0
  %1873 = vmatpush1.msra.mxu0 %v1831
  %1874 = vmatprep.subr.mxu0 0.0
  %1875 = vmatpush1.msra.mxu0 %v1830
  %1876 = vmatprep.subr.mxu0 0.0
  %1877 = vmatpush2.msra.mxu0 0.0
  %1878 = vmatprep.subr.mxu0 0.0
  %1879 = vmatpush2.msra.mxu0 0.0
  %1880 = vmatprep.subr.mxu0 0.0
  %1881 = vmatpush2.msra.mxu0 0.0
  %1882 = vmatprep.subr.mxu0 0.0
  %1883 = vmatpush2.msra.mxu0 0.0
  %1884 = vmatprep.subr.mxu0 0.0
  %1885 = vmatpush2.msra.mxu0 0.0
  %1886 = vmatprep.subr.mxu0 0.0
  %1887 = vmatpush2.msra.mxu0 0.0
  %1888 = vmatprep.subr.mxu0 0.0
  %1889 = vmatpush2.msra.mxu0 0.0
  %1890 = vmatprep.subr.mxu0 0.0
  %1891 = vmatpush2.msra.mxu0 0.0
  %1892 = vmatprep.subr.mxu0 0.0
  %1893 = vmatpush2.msra.mxu0 0.0
  %1894 = vmatprep.subr.mxu0 0.0
  %1895 = vmatpush2.msra.mxu0 0.0
  %1896 = vmatprep.subr.mxu0 0.0
  %1897 = vmatpush2.msra.mxu0 0.0
  %1898 = vmatprep.subr.mxu0 0.0
  %1899 = vmatpush2.msra.mxu0 0.0
  %1900 = vmatprep.subr.mxu0 0.0
  %1901 = vmatpush2.msra.mxu0 0.0
  %1902 = vmatprep.subr.mxu0 0.0
  %1903 = vmatpush2.msra.mxu0 0.0
  %1904 = vmatprep.subr.mxu0 0.0
  %1905 = vmatpush2.msra.mxu0 0.0
  %1906 = vmatprep.subr.mxu0 0.0
  %1907 = vmatpush2.msra.mxu0 0.0
  %1908 = vmatprep.mubr.f32.mxu0 0.0
  %1909 = vmatmul.mubr.f32.gmra.mxu0 %v1839
  %v1910 = vpop.f32.mrf.mxu0
  %v1911 = vadd.f32 0.0, %v1910
  %v1912 = vpop.f32.mrf.mxu0
  %1913 = vmatprep.mubr.f32.mxu0 0.0
  %1914 = vmatmul.mubr.f32.gmra.mxu0 %v1842
  %v1915 = vpop.f32.mrf.mxu0
  %v1916 = vadd.f32 0.0, %v1915
  %v1917 = vpop.f32.mrf.mxu0
  %1918 = vdwg.mxu0
  %1919 = vmatprep.subr.mxu0 0.0
  %1920 = vmatpush1.xpose.msra.mxu0 0.0
  %1921 = vmatprep.subr.mxu0 0.0
  %1922 = vmatpush1.xpose.msra.mxu0 0.0
  %1923 = vmatprep.subr.mxu0 0.0
  %1924 = vmatpush1.xpose.msra.mxu0 0.0
  %1925 = vmatprep.subr.mxu0 0.0
  %1926 = vmatpush1.xpose.msra.mxu0 0.0
  %1927 = vmatprep.subr.mxu0 0.0
  %1928 = vmatpush1.xpose.msra.mxu0 0.0
  %1929 = vmatprep.subr.mxu0 0.0
  %1930 = vmatpush1.xpose.msra.mxu0 0.0
  %1931 = vmatprep.subr.mxu0 0.0
  %1932 = vmatpush1.xpose.msra.mxu0 0.0
  %1933 = vmatprep.subr.mxu0 0.0
  %1934 = vmatpush1.xpose.msra.mxu0 0.0
  %1935 = vmatprep.subr.mxu0 0.0
  %1936 = vmatpush1.xpose.msra.mxu0 0.0
  %1937 = vmatprep.subr.mxu0 0.0
  %1938 = vmatpush1.xpose.msra.mxu0 0.0
  %1939 = vmatprep.subr.mxu0 0.0
  %1940 = vmatpush1.xpose.msra.mxu0 0.0
  %1941 = vmatprep.subr.mxu0 0.0
  %1942 = vmatpush1.xpose.msra.mxu0 0.0
  %1943 = vmatprep.subr.mxu0 0.0
  %1944 = vmatpush1.xpose.msra.mxu0 0.0
  %1945 = vmatprep.subr.mxu0 0.0
  %1946 = vmatpush1.xpose.msra.mxu0 0.0
  %1947 = vmatprep.subr.mxu0 0.0
  %1948 = vmatpush1.xpose.msra.mxu0 0.0
  %1949 = vmatprep.subr.mxu0 0.0
  %1950 = vmatpush1.xpose.msra.mxu0 %v947
  %1951 = vmatprep.subr.mxu0 0.0
  %1952 = vmatpush2.xpose.msra.mxu0 0.0
  %1953 = vmatprep.subr.mxu0 0.0
  %1954 = vmatpush2.xpose.msra.mxu0 0.0
  %1955 = vmatprep.subr.mxu0 0.0
  %1956 = vmatpush2.xpose.msra.mxu0 0.0
  %1957 = vmatprep.subr.mxu0 0.0
  %1958 = vmatpush2.xpose.msra.mxu0 0.0
  %1959 = vmatprep.subr.mxu0 0.0
  %1960 = vmatpush2.xpose.msra.mxu0 0.0
  %1961 = vmatprep.subr.mxu0 0.0
  %1962 = vmatpush2.xpose.msra.mxu0 0.0
  %1963 = vmatprep.subr.mxu0 0.0
  %1964 = vmatpush2.xpose.msra.mxu0 0.0
  %1965 = vmatprep.subr.mxu0 0.0
  %1966 = vmatpush2.xpose.msra.mxu0 0.0
  %1967 = vmatprep.subr.mxu0 0.0
  %1968 = vmatpush2.xpose.msra.mxu0 0.0
  %1969 = vmatprep.subr.mxu0 0.0
  %1970 = vmatpush2.xpose.msra.mxu0 0.0
  %1971 = vmatprep.subr.mxu0 0.0
  %1972 = vmatpush2.xpose.msra.mxu0 0.0
  %1973 = vmatprep.subr.mxu0 0.0
  %1974 = vmatpush2.xpose.msra.mxu0 0.0
  %1975 = vmatprep.subr.mxu0 0.0
  %1976 = vmatpush2.xpose.msra.mxu0 0.0
  %1977 = vmatprep.subr.mxu0 0.0
  %1978 = vmatpush2.xpose.msra.mxu0 0.0
  %1979 = vmatprep.subr.mxu0 0.0
  %1980 = vmatpush2.xpose.msra.mxu0 0.0
  %1981 = vmatprep.subr.mxu0 0.0
  %1982 = vmatpush2.xpose.msra.mxu0 0.0
  %1983 = vmatprep.mubr.f32.mxu0 0.0
  %1984 = vmatmul.mubr.f32.gmra.mxu0 %v1839
  %v1985 = vpop.f32.mrf.mxu0
  %v1986 = vadd.f32 0.0, %v1985
  %v1987 = vpop.f32.mrf.mxu0
  %1988 = vmatprep.mubr.f32.mxu0 0.0
  %1989 = vmatmul.mubr.f32.gmra.mxu0 %v1842
  %v1990 = vpop.f32.mrf.mxu0
  %v1991 = vadd.f32 0.0, %v1990
  %v1992 = vpop.f32.mrf.mxu0
  %1993 = vdwg.mxu0
  %v1994 = vrcp.pop %v1986
  %v1995 = vrcp.pop %v1991
  %v1997 = vsel %vm373, %v1994, 0
  %v2000 = vsel %vm373, %v1995, 0
  %2002 = vmatprep.subr.mxu0 0.0
  %2003 = vmatpush1.msra.mxu0 0.0
  %2004 = vmatprep.subr.mxu0 0.0
  %2005 = vmatpush1.msra.mxu0 0.0
  %2006 = vmatprep.subr.mxu0 0.0
  %2007 = vmatpush1.msra.mxu0 0.0
  %2008 = vmatprep.subr.mxu0 0.0
  %2009 = vmatpush1.msra.mxu0 0.0
  %2010 = vmatprep.subr.mxu0 0.0
  %2011 = vmatpush1.msra.mxu0 0.0
  %2012 = vmatprep.subr.mxu0 0.0
  %2013 = vmatpush1.msra.mxu0 0.0
  %2014 = vmatprep.subr.mxu0 0.0
  %2015 = vmatpush1.msra.mxu0 0.0
  %2016 = vmatprep.subr.mxu0 0.0
  %2017 = vmatpush1.msra.mxu0 0.0
  %2018 = vmatprep.subr.mxu0 0.0
  %2019 = vmatpush1.msra.mxu0 0.0
  %2020 = vmatprep.subr.mxu0 0.0
  %2021 = vmatpush1.msra.mxu0 0.0
  %2022 = vmatprep.subr.mxu0 0.0
  %2023 = vmatpush1.msra.mxu0 0.0
  %2024 = vmatprep.subr.mxu0 0.0
  %2025 = vmatpush1.msra.mxu0 0.0
  %2026 = vmatprep.subr.mxu0 0.0
  %2027 = vmatpush1.msra.mxu0 0.0
  %2028 = vmatprep.subr.mxu0 0.0
  %2029 = vmatpush1.msra.mxu0 0.0
  %2030 = vmatprep.subr.mxu0 0.0
  %2031 = vmatpush1.msra.mxu0 0.0
  %2032 = vmatprep.subr.mxu0 0.0
  %2033 = vmatpush1.msra.mxu0 %v1033
  %2034 = vmatprep.subr.mxu0 0.0
  %2035 = vmatpush2.msra.mxu0 0.0
  %2036 = vmatprep.subr.mxu0 0.0
  %2037 = vmatpush2.msra.mxu0 0.0
  %2038 = vmatprep.subr.mxu0 0.0
  %2039 = vmatpush2.msra.mxu0 0.0
  %2040 = vmatprep.subr.mxu0 0.0
  %2041 = vmatpush2.msra.mxu0 0.0
  %2042 = vmatprep.subr.mxu0 0.0
  %2043 = vmatpush2.msra.mxu0 0.0
  %2044 = vmatprep.subr.mxu0 0.0
  %2045 = vmatpush2.msra.mxu0 0.0
  %2046 = vmatprep.subr.mxu0 0.0
  %2047 = vmatpush2.msra.mxu0 0.0
  %2048 = vmatprep.subr.mxu0 0.0
  %2049 = vmatpush2.msra.mxu0 0.0
  %2050 = vmatprep.subr.mxu0 0.0
  %2051 = vmatpush2.msra.mxu0 0.0
  %2052 = vmatprep.subr.mxu0 0.0
  %2053 = vmatpush2.msra.mxu0 0.0
  %2054 = vmatprep.subr.mxu0 0.0
  %2055 = vmatpush2.msra.mxu0 0.0
  %2056 = vmatprep.subr.mxu0 0.0
  %2057 = vmatpush2.msra.mxu0 0.0
  %2058 = vmatprep.subr.mxu0 0.0
  %2059 = vmatpush2.msra.mxu0 0.0
  %2060 = vmatprep.subr.mxu0 0.0
  %2061 = vmatpush2.msra.mxu0 0.0
  %2062 = vmatprep.subr.mxu0 0.0
  %2063 = vmatpush2.msra.mxu0 0.0
  %2064 = vmatprep.subr.mxu0 0.0
  %2065 = vmatpush2.msra.mxu0 0.0
  %2066 = vmatprep.mubr.f32.mxu0 0.0
  %2067 = vmatmul.mubr.f32.gmra.mxu0 %v1997
  %v2068 = vpop.f32.mrf.mxu0
  %v2069 = vadd.f32 0.0, %v2068
  %v2070 = vpop.f32.mrf.mxu0
  %2071 = vmatprep.mubr.f32.mxu0 0.0
  %2072 = vmatmul.mubr.f32.gmra.mxu0 %v2000
  %v2073 = vpop.f32.mrf.mxu0
  %v2074 = vadd.f32 0.0, %v2073
  %v2075 = vpop.f32.mrf.mxu0
  %2076 = vdwg.mxu0
  %v2077 = vmul.f32 %v1911, %v2069
  %v2078 = vmul.f32 %v1916, %v2074
  %v2079 = vlaneseq
  %v2080 = vshrl.u32 %v2079, 7
  %v2081 = vsub.s32 0, %v2080
  %v2082 = vrot.slane %v1140, %v2081
  %v2083 = vadd.f32 %v2077, %v2082
  %v2084 = vadd.f32 %v2078, %v2082
  %v2085 = vadd.f32 %v2083, %v1126
  %v2086 = vadd.f32 %v2084, %v1127
  %vm2087 = vcmp.gt.f32.partialorder %v2085, 0.0
  %vm2088 = vcmp.gt.f32.partialorder %v2086, 0.0
  %v2089 = vmul.f32 %v2085, 1.442695
  %v2090 = vpow.pop %v2089
  %v2091 = vmul.f32 %v2086, 1.442695
  %v2092 = vpow.pop %v2091
  %v2093 = vsub.f32 %v2090, 1.0
  %v2094 = vsub.f32 %v2092, 1.0
  %v2095 = vsel %vm2087, %v2085, %v2093
  %v2096 = vsel %vm2088, %v2086, %v2094
  %v2097 = vld [vmem:[%s2 + $0xc0] sm:$0xff]
  %v2098 = vld [vmem:[%s2 + $0xc8] sm:$0xff]
  %v2099 = vld [vmem:[%s2 + $0xd0] sm:$0xff]
  %v2100 = vld [vmem:[%s2 + $0xd8] sm:$0xff]
  %v2101 = vld [vmem:[%s2 + $0xe0] sm:$0xff]
  %v2102 = vld [vmem:[%s2 + $0xe8] sm:$0xff]
  %v2103 = vld [vmem:[%s2 + $0xf0] sm:$0x1]
  %v2104 = vld [vmem:[%s2 + $0x118] sm:$0x3]
  %v2105 = vld [vmem:[%s2 + $0x130] sm:$0xff]
  %v2106 = vld [vmem:[%s2 + $0x138] sm:$0xff]
  %v2107 = vld [vmem:[%s2 + $0x140] sm:$0xff]
  %v2108 = vld [vmem:[%s2 + $0x148] sm:$0xff]
  %v2109 = vld [vmem:[%s2 + $0x1b8] sm:$0xff]
  %v2110 = vld [vmem:[%s2 + $0x1c0] sm:$0xff]
  %v2111 = vld [vmem:[%s2 + $0x1c8] sm:$0xff]
  %v2112 = vld [vmem:[%s2 + $0x1d0] sm:$0xff]
  %v2113 = vld [vmem:[%s2 + $0x1d8] sm:$0x3]
  %v2115 = vsel %vm216, %v2095, 0
  %v2118 = vsel %vm216, %v2096, 0
  %2120 = vmatprep.subr.mxu0 0.0
  %2121 = vmatpush1.msra.mxu0 0.0
  %2122 = vmatprep.subr.mxu0 0.0
  %2123 = vmatpush1.msra.mxu0 0.0
  %2124 = vmatprep.subr.mxu0 0.0
  %2125 = vmatpush1.msra.mxu0 0.0
  %2126 = vmatprep.subr.mxu0 0.0
  %2127 = vmatpush1.msra.mxu0 0.0
  %2128 = vmatprep.subr.mxu0 0.0
  %2129 = vmatpush1.msra.mxu0 0.0
  %2130 = vmatprep.subr.mxu0 0.0
  %2131 = vmatpush1.msra.mxu0 0.0
  %2132 = vmatprep.subr.mxu0 0.0
  %2133 = vmatpush1.msra.mxu0 0.0
  %2134 = vmatprep.subr.mxu0 0.0
  %2135 = vmatpush1.msra.mxu0 0.0
  %2136 = vmatprep.subr.mxu0 0.0
  %2137 = vmatpush1.msra.mxu0 0.0
  %2138 = vmatprep.subr.mxu0 0.0
  %2139 = vmatpush1.msra.mxu0 0.0
  %2140 = vmatprep.subr.mxu0 0.0
  %2141 = vmatpush1.msra.mxu0 0.0
  %2142 = vmatprep.subr.mxu0 0.0
  %2143 = vmatpush1.msra.mxu0 0.0
  %2144 = vmatprep.subr.mxu0 0.0
  %2145 = vmatpush1.msra.mxu0 %v2100
  %2146 = vmatprep.subr.mxu0 0.0
  %2147 = vmatpush1.msra.mxu0 %v2099
  %2148 = vmatprep.subr.mxu0 0.0
  %2149 = vmatpush1.msra.mxu0 %v2098
  %2150 = vmatprep.subr.mxu0 0.0
  %2151 = vmatpush1.msra.mxu0 %v2097
  %2152 = vmatprep.subr.mxu0 0.0
  %2153 = vmatpush2.msra.mxu0 0.0
  %2154 = vmatprep.subr.mxu0 0.0
  %2155 = vmatpush2.msra.mxu0 0.0
  %2156 = vmatprep.subr.mxu0 0.0
  %2157 = vmatpush2.msra.mxu0 0.0
  %2158 = vmatprep.subr.mxu0 0.0
  %2159 = vmatpush2.msra.mxu0 0.0
  %2160 = vmatprep.subr.mxu0 0.0
  %2161 = vmatpush2.msra.mxu0 0.0
  %2162 = vmatprep.subr.mxu0 0.0
  %2163 = vmatpush2.msra.mxu0 0.0
  %2164 = vmatprep.subr.mxu0 0.0
  %2165 = vmatpush2.msra.mxu0 0.0
  %2166 = vmatprep.subr.mxu0 0.0
  %2167 = vmatpush2.msra.mxu0 0.0
  %2168 = vmatprep.subr.mxu0 0.0
  %2169 = vmatpush2.msra.mxu0 0.0
  %2170 = vmatprep.subr.mxu0 0.0
  %2171 = vmatpush2.msra.mxu0 0.0
  %2172 = vmatprep.subr.mxu0 0.0
  %2173 = vmatpush2.msra.mxu0 0.0
  %2174 = vmatprep.subr.mxu0 0.0
  %2175 = vmatpush2.msra.mxu0 0.0
  %2176 = vmatprep.subr.mxu0 0.0
  %2177 = vmatpush2.msra.mxu0 0.0
  %2178 = vmatprep.subr.mxu0 0.0
  %2179 = vmatpush2.msra.mxu0 0.0
  %2180 = vmatprep.subr.mxu0 0.0
  %2181 = vmatpush2.msra.mxu0 0.0
  %2182 = vmatprep.subr.mxu0 0.0
  %2183 = vmatpush2.msra.mxu0 0.0
  %2184 = vmatprep.mubr.f32.mxu0 0.0
  %2185 = vmatmul.mubr.f32.gmra.mxu0 %v2115
  %v2186 = vpop.f32.mrf.mxu0
  %v2187 = vadd.f32 0.0, %v2186
  %v2188 = vpop.f32.mrf.mxu0
  %2189 = vmatprep.mubr.f32.mxu0 0.0
  %2190 = vmatmul.mubr.f32.gmra.mxu0 %v2118
  %v2191 = vpop.f32.mrf.mxu0
  %v2192 = vadd.f32 0.0, %v2191
  %v2193 = vpop.f32.mrf.mxu0
  %2194 = vdwg.mxu0
  %vm2195 = vcmask 64512
  %v2197 = vsel %vm2195, %v2187, 0
  %v2200 = vsel %vm2195, %v2192, 0
  %2202 = vmatprep.subr.mxu0 0.0
  %2203 = vmatpush1.msra.mxu0 0.0
  %2204 = vmatprep.subr.mxu0 0.0
  %2205 = vmatpush1.msra.mxu0 0.0
  %2206 = vmatprep.subr.mxu0 0.0
  %2207 = vmatpush1.msra.mxu0 0.0
  %2208 = vmatprep.subr.mxu0 0.0
  %2209 = vmatpush1.msra.mxu0 0.0
  %2210 = vmatprep.subr.mxu0 0.0
  %2211 = vmatpush1.msra.mxu0 0.0
  %2212 = vmatprep.subr.mxu0 0.0
  %2213 = vmatpush1.msra.mxu0 0.0
  %2214 = vmatprep.subr.mxu0 0.0
  %2215 = vmatpush1.msra.mxu0 0.0
  %2216 = vmatprep.subr.mxu0 0.0
  %2217 = vmatpush1.msra.mxu0 0.0
  %2218 = vmatprep.subr.mxu0 0.0
  %2219 = vmatpush1.msra.mxu0 0.0
  %2220 = vmatprep.subr.mxu0 0.0
  %2221 = vmatpush1.msra.mxu0 0.0
  %2222 = vmatprep.subr.mxu0 0.0
  %2223 = vmatpush1.msra.mxu0 0.0
  %2224 = vmatprep.subr.mxu0 0.0
  %2225 = vmatpush1.msra.mxu0 0.0
  %2226 = vmatprep.subr.mxu0 0.0
  %2227 = vmatpush1.msra.mxu0 0.0
  %2228 = vmatprep.subr.mxu0 0.0
  %2229 = vmatpush1.msra.mxu0 0.0
  %2230 = vmatprep.subr.mxu0 0.0
  %2231 = vmatpush1.msra.mxu0 0.0
  %2232 = vmatprep.subr.mxu0 0.0
  %2233 = vmatpush1.msra.mxu0 %v2102
  %2234 = vmatprep.subr.mxu0 0.0
  %2235 = vmatpush2.msra.mxu0 0.0
  %2236 = vmatprep.subr.mxu0 0.0
  %2237 = vmatpush2.msra.mxu0 0.0
  %2238 = vmatprep.subr.mxu0 0.0
  %2239 = vmatpush2.msra.mxu0 0.0
  %2240 = vmatprep.subr.mxu0 0.0
  %2241 = vmatpush2.msra.mxu0 0.0
  %2242 = vmatprep.subr.mxu0 0.0
  %2243 = vmatpush2.msra.mxu0 0.0
  %2244 = vmatprep.subr.mxu0 0.0
  %2245 = vmatpush2.msra.mxu0 0.0
  %2246 = vmatprep.subr.mxu0 0.0
  %2247 = vmatpush2.msra.mxu0 0.0
  %2248 = vmatprep.subr.mxu0 0.0
  %2249 = vmatpush2.msra.mxu0 0.0
  %2250 = vmatprep.subr.mxu0 0.0
  %2251 = vmatpush2.msra.mxu0 0.0
  %2252 = vmatprep.subr.mxu0 0.0
  %2253 = vmatpush2.msra.mxu0 0.0
  %2254 = vmatprep.subr.mxu0 0.0
  %2255 = vmatpush2.msra.mxu0 0.0
  %2256 = vmatprep.subr.mxu0 0.0
  %2257 = vmatpush2.msra.mxu0 0.0
  %2258 = vmatprep.subr.mxu0 0.0
  %2259 = vmatpush2.msra.mxu0 0.0
  %2260 = vmatprep.subr.mxu0 0.0
  %2261 = vmatpush2.msra.mxu0 0.0
  %2262 = vmatprep.subr.mxu0 0.0
  %2263 = vmatpush2.msra.mxu0 0.0
  %2264 = vmatprep.subr.mxu0 0.0
  %2265 = vmatpush2.msra.mxu0 0.0
  %2266 = vmatprep.mubr.f32.mxu0 0.0
  %2267 = vmatmul.mubr.f32.gmra.mxu0 %v2197
  %v2268 = vpop.f32.mrf.mxu0
  %v2269 = vadd.f32 0.0, %v2268
  %v2270 = vpop.f32.mrf.mxu0
  %2271 = vmatprep.mubr.f32.mxu0 0.0
  %2272 = vmatmul.mubr.f32.gmra.mxu0 %v2200
  %v2273 = vpop.f32.mrf.mxu0
  %v2274 = vadd.f32 0.0, %v2273
  %v2275 = vpop.f32.mrf.mxu0
  %2276 = vdwg.mxu0
  %2277 = vmatprep.subr.mxu0 0.0
  %2278 = vmatpush1.msra.mxu0 0.0
  %2279 = vmatprep.subr.mxu0 0.0
  %2280 = vmatpush1.msra.mxu0 0.0
  %2281 = vmatprep.subr.mxu0 0.0
  %2282 = vmatpush1.msra.mxu0 0.0
  %2283 = vmatprep.subr.mxu0 0.0
  %2284 = vmatpush1.msra.mxu0 0.0
  %2285 = vmatprep.subr.mxu0 0.0
  %2286 = vmatpush1.msra.mxu0 0.0
  %2287 = vmatprep.subr.mxu0 0.0
  %2288 = vmatpush1.msra.mxu0 0.0
  %2289 = vmatprep.subr.mxu0 0.0
  %2290 = vmatpush1.msra.mxu0 0.0
  %2291 = vmatprep.subr.mxu0 0.0
  %2292 = vmatpush1.msra.mxu0 0.0
  %2293 = vmatprep.subr.mxu0 0.0
  %2294 = vmatpush1.msra.mxu0 0.0
  %2295 = vmatprep.subr.mxu0 0.0
  %2296 = vmatpush1.msra.mxu0 0.0
  %2297 = vmatprep.subr.mxu0 0.0
  %2298 = vmatpush1.msra.mxu0 0.0
  %2299 = vmatprep.subr.mxu0 0.0
  %2300 = vmatpush1.msra.mxu0 0.0
  %2301 = vmatprep.subr.mxu0 0.0
  %2302 = vmatpush1.msra.mxu0 0.0
  %2303 = vmatprep.subr.mxu0 0.0
  %2304 = vmatpush1.msra.mxu0 0.0
  %2305 = vmatprep.subr.mxu0 0.0
  %2306 = vmatpush1.msra.mxu0 0.0
  %2307 = vmatprep.subr.mxu0 0.0
  %2308 = vmatpush1.msra.mxu0 %v2101
  %2309 = vmatprep.subr.mxu0 0.0
  %2310 = vmatpush2.msra.mxu0 0.0
  %2311 = vmatprep.subr.mxu0 0.0
  %2312 = vmatpush2.msra.mxu0 0.0
  %2313 = vmatprep.subr.mxu0 0.0
  %2314 = vmatpush2.msra.mxu0 0.0
  %2315 = vmatprep.subr.mxu0 0.0
  %2316 = vmatpush2.msra.mxu0 0.0
  %2317 = vmatprep.subr.mxu0 0.0
  %2318 = vmatpush2.msra.mxu0 0.0
  %2319 = vmatprep.subr.mxu0 0.0
  %2320 = vmatpush2.msra.mxu0 0.0
  %2321 = vmatprep.subr.mxu0 0.0
  %2322 = vmatpush2.msra.mxu0 0.0
  %2323 = vmatprep.subr.mxu0 0.0
  %2324 = vmatpush2.msra.mxu0 0.0
  %2325 = vmatprep.subr.mxu0 0.0
  %2326 = vmatpush2.msra.mxu0 0.0
  %2327 = vmatprep.subr.mxu0 0.0
  %2328 = vmatpush2.msra.mxu0 0.0
  %2329 = vmatprep.subr.mxu0 0.0
  %2330 = vmatpush2.msra.mxu0 0.0
  %2331 = vmatprep.subr.mxu0 0.0
  %2332 = vmatpush2.msra.mxu0 0.0
  %2333 = vmatprep.subr.mxu0 0.0
  %2334 = vmatpush2.msra.mxu0 0.0
  %2335 = vmatprep.subr.mxu0 0.0
  %2336 = vmatpush2.msra.mxu0 0.0
  %2337 = vmatprep.subr.mxu0 0.0
  %2338 = vmatpush2.msra.mxu0 0.0
  %2339 = vmatprep.subr.mxu0 0.0
  %2340 = vmatpush2.msra.mxu0 0.0
  %2341 = vmatprep.mubr.f32.mxu0 0.0
  %2342 = vmatmul.mubr.f32.gmra.mxu0 %v2197
  %v2343 = vpop.f32.mrf.mxu0
  %v2344 = vadd.f32 0.0, %v2343
  %v2345 = vpop.f32.mrf.mxu0
  %2346 = vmatprep.mubr.f32.mxu0 0.0
  %2347 = vmatmul.mubr.f32.gmra.mxu0 %v2200
  %v2348 = vpop.f32.mrf.mxu0
  %v2349 = vadd.f32 0.0, %v2348
  %v2350 = vpop.f32.mrf.mxu0
  %2351 = vdwg.mxu0
  %vm2352 = vcmask 15360
  %v2354 = vsel %vm2352, %v2344, 0
  %v2357 = vsel %vm2352, %v2349, 0
  %vm2359 = vcmask 1041408
  %v2361 = vsel %vm2359, %v2104, 0
  %2363 = vmatprep.subr.mxu0 0.0
  %2364 = vmatpush1.msra.mxu0 0.0
  %2365 = vmatprep.subr.mxu0 0.0
  %2366 = vmatpush1.msra.mxu0 0.0
  %2367 = vmatprep.subr.mxu0 0.0
  %2368 = vmatpush1.msra.mxu0 0.0
  %2369 = vmatprep.subr.mxu0 0.0
  %2370 = vmatpush1.msra.mxu0 0.0
  %2371 = vmatprep.subr.mxu0 0.0
  %2372 = vmatpush1.msra.mxu0 0.0
  %2373 = vmatprep.subr.mxu0 0.0
  %2374 = vmatpush1.msra.mxu0 0.0
  %2375 = vmatprep.subr.mxu0 0.0
  %2376 = vmatpush1.msra.mxu0 0.0
  %2377 = vmatprep.subr.mxu0 0.0
  %2378 = vmatpush1.msra.mxu0 0.0
  %2379 = vmatprep.subr.mxu0 0.0
  %2380 = vmatpush1.msra.mxu0 0.0
  %2381 = vmatprep.subr.mxu0 0.0
  %2382 = vmatpush1.msra.mxu0 0.0
  %2383 = vmatprep.subr.mxu0 0.0
  %2384 = vmatpush1.msra.mxu0 0.0
  %2385 = vmatprep.subr.mxu0 0.0
  %2386 = vmatpush1.msra.mxu0 0.0
  %2387 = vmatprep.subr.mxu0 0.0
  %2388 = vmatpush1.msra.mxu0 0.0
  %2389 = vmatprep.subr.mxu0 0.0
  %2390 = vmatpush1.msra.mxu0 0.0
  %2391 = vmatprep.subr.mxu0 0.0
  %2392 = vmatpush1.msra.mxu0 0.0
  %2393 = vmatprep.subr.mxu0 0.0
  %2394 = vmatpush1.msra.mxu0 %v2361
  %2395 = vmatprep.subr.mxu0 0.0
  %2396 = vmatpush2.msra.mxu0 0.0
  %2397 = vmatprep.subr.mxu0 0.0
  %2398 = vmatpush2.msra.mxu0 0.0
  %2399 = vmatprep.subr.mxu0 0.0
  %2400 = vmatpush2.msra.mxu0 0.0
  %2401 = vmatprep.subr.mxu0 0.0
  %2402 = vmatpush2.msra.mxu0 0.0
  %2403 = vmatprep.subr.mxu0 0.0
  %2404 = vmatpush2.msra.mxu0 0.0
  %2405 = vmatprep.subr.mxu0 0.0
  %2406 = vmatpush2.msra.mxu0 0.0
  %2407 = vmatprep.subr.mxu0 0.0
  %2408 = vmatpush2.msra.mxu0 0.0
  %2409 = vmatprep.subr.mxu0 0.0
  %2410 = vmatpush2.msra.mxu0 0.0
  %2411 = vmatprep.subr.mxu0 0.0
  %2412 = vmatpush2.msra.mxu0 0.0
  %2413 = vmatprep.subr.mxu0 0.0
  %2414 = vmatpush2.msra.mxu0 0.0
  %2415 = vmatprep.subr.mxu0 0.0
  %2416 = vmatpush2.msra.mxu0 0.0
  %2417 = vmatprep.subr.mxu0 0.0
  %2418 = vmatpush2.msra.mxu0 0.0
  %2419 = vmatprep.subr.mxu0 0.0
  %2420 = vmatpush2.msra.mxu0 0.0
  %2421 = vmatprep.subr.mxu0 0.0
  %2422 = vmatpush2.msra.mxu0 0.0
  %2423 = vmatprep.subr.mxu0 0.0
  %2424 = vmatpush2.msra.mxu0 0.0
  %2425 = vmatprep.subr.mxu0 0.0
  %2426 = vmatpush2.msra.mxu0 0.0
  %2427 = vmatprep.mubr.f32.mxu0 0.0
  %2428 = vmatmul.mubr.f32.gmra.mxu0 %v2354
  %v2429 = vpop.f32.mrf.mxu0
  %v2430 = vadd.f32 0.0, %v2429
  %v2431 = vpop.f32.mrf.mxu0
  %2432 = vmatprep.mubr.f32.mxu0 0.0
  %2433 = vmatmul.mubr.f32.gmra.mxu0 %v2357
  %v2434 = vpop.f32.mrf.mxu0
  %v2435 = vadd.f32 0.0, %v2434
  %v2436 = vpop.f32.mrf.mxu0
  %2437 = vdwg.mxu0
  %v2438 = vmul.f32 %v2430, %v14
  %v2439 = vmul.f32 %v2435, %v15
  %2440 = vmatprep.subr.mxu0 0.0
  %2441 = vmatpush1.msra.mxu0 0.0
  %2442 = vmatprep.subr.mxu0 0.0
  %2443 = vmatpush1.msra.mxu0 0.0
  %2444 = vmatprep.subr.mxu0 0.0
  %2445 = vmatpush1.msra.mxu0 0.0
  %2446 = vmatprep.subr.mxu0 0.0
  %2447 = vmatpush1.msra.mxu0 0.0
  %2448 = vmatprep.subr.mxu0 0.0
  %2449 = vmatpush1.msra.mxu0 0.0
  %2450 = vmatprep.subr.mxu0 0.0
  %2451 = vmatpush1.msra.mxu0 0.0
  %2452 = vmatprep.subr.mxu0 0.0
  %2453 = vmatpush1.msra.mxu0 0.0
  %2454 = vmatprep.subr.mxu0 0.0
  %2455 = vmatpush1.msra.mxu0 0.0
  %2456 = vmatprep.subr.mxu0 0.0
  %2457 = vmatpush1.msra.mxu0 0.0
  %2458 = vmatprep.subr.mxu0 0.0
  %2459 = vmatpush1.msra.mxu0 0.0
  %2460 = vmatprep.subr.mxu0 0.0
  %2461 = vmatpush1.msra.mxu0 0.0
  %2462 = vmatprep.subr.mxu0 0.0
  %2463 = vmatpush1.msra.mxu0 0.0
  %2464 = vmatprep.subr.mxu0 0.0
  %2465 = vmatpush1.msra.mxu0 0.0
  %2466 = vmatprep.subr.mxu0 0.0
  %2467 = vmatpush1.msra.mxu0 0.0
  %2468 = vmatprep.subr.mxu0 0.0
  %2469 = vmatpush1.msra.mxu0 %v2439
  %2470 = vmatprep.subr.mxu0 0.0
  %2471 = vmatpush1.msra.mxu0 %v2438
  %2472 = vmatprep.subr.mxu0 0.0
  %2473 = vmatpush2.msra.mxu0 0.0
  %2474 = vmatprep.subr.mxu0 0.0
  %2475 = vmatpush2.msra.mxu0 0.0
  %2476 = vmatprep.subr.mxu0 0.0
  %2477 = vmatpush2.msra.mxu0 0.0
  %2478 = vmatprep.subr.mxu0 0.0
  %2479 = vmatpush2.msra.mxu0 0.0
  %2480 = vmatprep.subr.mxu0 0.0
  %2481 = vmatpush2.msra.mxu0 0.0
  %2482 = vmatprep.subr.mxu0 0.0
  %2483 = vmatpush2.msra.mxu0 0.0
  %2484 = vmatprep.subr.mxu0 0.0
  %2485 = vmatpush2.msra.mxu0 0.0
  %2486 = vmatprep.subr.mxu0 0.0
  %2487 = vmatpush2.msra.mxu0 0.0
  %2488 = vmatprep.subr.mxu0 0.0
  %2489 = vmatpush2.msra.mxu0 0.0
  %2490 = vmatprep.subr.mxu0 0.0
  %2491 = vmatpush2.msra.mxu0 0.0
  %2492 = vmatprep.subr.mxu0 0.0
  %2493 = vmatpush2.msra.mxu0 0.0
  %2494 = vmatprep.subr.mxu0 0.0
  %2495 = vmatpush2.msra.mxu0 0.0
  %2496 = vmatprep.subr.mxu0 0.0
  %2497 = vmatpush2.msra.mxu0 0.0
  %2498 = vmatprep.subr.mxu0 0.0
  %2499 = vmatpush2.msra.mxu0 0.0
  %2500 = vmatprep.subr.mxu0 0.0
  %2501 = vmatpush2.msra.mxu0 0.0
  %2502 = vmatprep.subr.mxu0 0.0
  %2503 = vmatpush2.msra.mxu0 0.0
  %2504 = vmatprep.mubr.f32.mxu0 0.0
  %2505 = vmatmul.mubr.f32.gmra.mxu0 %v462
  %v2506 = vpop.f32.mrf.mxu0
  %v2507 = vadd.f32 0.0, %v2506
  %v2508 = vpop.f32.mrf.mxu0
  %2509 = vmatprep.mubr.f32.mxu0 0.0
  %2510 = vmatmul.mubr.f32.gmra.mxu0 %v462
  %v2511 = vpop.f32.mrf.mxu0
  %v2512 = vadd.f32 0.0, %v2511
  %v2513 = vpop.f32.mrf.mxu0
  %2514 = vdwg.mxu0
  %v2516 = vsel %vm2352, %v2269, 0
  %v2519 = vsel %vm2352, %v2274, 0
  %2521 = vmatprep.subr.mxu0 0.0
  %2522 = vmatpush1.msra.mxu0 0.0
  %2523 = vmatprep.subr.mxu0 0.0
  %2524 = vmatpush1.msra.mxu0 0.0
  %2525 = vmatprep.subr.mxu0 0.0
  %2526 = vmatpush1.msra.mxu0 0.0
  %2527 = vmatprep.subr.mxu0 0.0
  %2528 = vmatpush1.msra.mxu0 0.0
  %2529 = vmatprep.subr.mxu0 0.0
  %2530 = vmatpush1.msra.mxu0 0.0
  %2531 = vmatprep.subr.mxu0 0.0
  %2532 = vmatpush1.msra.mxu0 0.0
  %2533 = vmatprep.subr.mxu0 0.0
  %2534 = vmatpush1.msra.mxu0 0.0
  %2535 = vmatprep.subr.mxu0 0.0
  %2536 = vmatpush1.msra.mxu0 0.0
  %2537 = vmatprep.subr.mxu0 0.0
  %2538 = vmatpush1.msra.mxu0 0.0
  %2539 = vmatprep.subr.mxu0 0.0
  %2540 = vmatpush1.msra.mxu0 0.0
  %2541 = vmatprep.subr.mxu0 0.0
  %2542 = vmatpush1.msra.mxu0 0.0
  %2543 = vmatprep.subr.mxu0 0.0
  %2544 = vmatpush1.msra.mxu0 0.0
  %2545 = vmatprep.subr.mxu0 0.0
  %2546 = vmatpush1.msra.mxu0 0.0
  %2547 = vmatprep.subr.mxu0 0.0
  %2548 = vmatpush1.msra.mxu0 0.0
  %2549 = vmatprep.subr.mxu0 0.0
  %2550 = vmatpush1.msra.mxu0 0.0
  %2551 = vmatprep.subr.mxu0 0.0
  %2552 = vmatpush1.msra.mxu0 %v2361
  %2553 = vmatprep.subr.mxu0 0.0
  %2554 = vmatpush2.msra.mxu0 0.0
  %2555 = vmatprep.subr.mxu0 0.0
  %2556 = vmatpush2.msra.mxu0 0.0
  %2557 = vmatprep.subr.mxu0 0.0
  %2558 = vmatpush2.msra.mxu0 0.0
  %2559 = vmatprep.subr.mxu0 0.0
  %2560 = vmatpush2.msra.mxu0 0.0
  %2561 = vmatprep.subr.mxu0 0.0
  %2562 = vmatpush2.msra.mxu0 0.0
  %2563 = vmatprep.subr.mxu0 0.0
  %2564 = vmatpush2.msra.mxu0 0.0
  %2565 = vmatprep.subr.mxu0 0.0
  %2566 = vmatpush2.msra.mxu0 0.0
  %2567 = vmatprep.subr.mxu0 0.0
  %2568 = vmatpush2.msra.mxu0 0.0
  %2569 = vmatprep.subr.mxu0 0.0
  %2570 = vmatpush2.msra.mxu0 0.0
  %2571 = vmatprep.subr.mxu0 0.0
  %2572 = vmatpush2.msra.mxu0 0.0
  %2573 = vmatprep.subr.mxu0 0.0
  %2574 = vmatpush2.msra.mxu0 0.0
  %2575 = vmatprep.subr.mxu0 0.0
  %2576 = vmatpush2.msra.mxu0 0.0
  %2577 = vmatprep.subr.mxu0 0.0
  %2578 = vmatpush2.msra.mxu0 0.0
  %2579 = vmatprep.subr.mxu0 0.0
  %2580 = vmatpush2.msra.mxu0 0.0
  %2581 = vmatprep.subr.mxu0 0.0
  %2582 = vmatpush2.msra.mxu0 0.0
  %2583 = vmatprep.subr.mxu0 0.0
  %2584 = vmatpush2.msra.mxu0 0.0
  %2585 = vmatprep.mubr.f32.mxu0 0.0
  %2586 = vmatmul.mubr.f32.gmra.mxu0 %v2516
  %v2587 = vpop.f32.mrf.mxu0
  %v2588 = vadd.f32 %v2507, %v2587
  %v2589 = vpop.f32.mrf.mxu0
  %2590 = vmatprep.mubr.f32.mxu0 0.0
  %2591 = vmatmul.mubr.f32.gmra.mxu0 %v2519
  %v2592 = vpop.f32.mrf.mxu0
  %v2593 = vadd.f32 %v2512, %v2592
  %v2594 = vpop.f32.mrf.mxu0
  %2595 = vdwg.mxu0
  %v2596 = vmul.f32 %v2588, 0.2
  %v2597 = vmul.f32 %v2593, 0.2
  %v2598 = vmax.f32 %v2588, %v2596
  %v2599 = vmax.f32 %v2593, %v2597
  %v2600 = vsel %vm2352, %v2344, -inf
  %v2601 = vsel %vm2352, %v2349, -inf
  %v2602 = vmax.f32 %v2600, %v2601
  %v2603 = vrot.slane %v2602, 4
  %v2604 = vmax.f32 %v2602, %v2603
  %v2605 = vrot.slane %v2604, 2
  %v2606 = vmax.f32 %v2604, %v2605
  %v2607 = vrot.slane %v2606, 1
  %v2608 = vmax.f32 %v2606, %v2607
  %v2609 = vadd.f32 %v2269, %v2608
  %v2610 = vadd.f32 %v2274, %v2608
  %v2611 = vmul.f32 %v2609, 0.2
  %v2612 = vmul.f32 %v2610, 0.2
  %v2613 = vmax.f32 %v2609, %v2611
  %v2614 = vmax.f32 %v2610, %v2612
  %v2616 = vsel %vm2352, %v2613, 0
  %v2619 = vsel %vm2352, %v2614, 0
  %2621 = vmatprep.subr.mxu0 0.0
  %2622 = vmatpush1.msra.mxu0 0.0
  %2623 = vmatprep.subr.mxu0 0.0
  %2624 = vmatpush1.msra.mxu0 0.0
  %2625 = vmatprep.subr.mxu0 0.0
  %2626 = vmatpush1.msra.mxu0 0.0
  %2627 = vmatprep.subr.mxu0 0.0
  %2628 = vmatpush1.msra.mxu0 0.0
  %2629 = vmatprep.subr.mxu0 0.0
  %2630 = vmatpush1.msra.mxu0 0.0
  %2631 = vmatprep.subr.mxu0 0.0
  %2632 = vmatpush1.msra.mxu0 0.0
  %2633 = vmatprep.subr.mxu0 0.0
  %2634 = vmatpush1.msra.mxu0 0.0
  %2635 = vmatprep.subr.mxu0 0.0
  %2636 = vmatpush1.msra.mxu0 0.0
  %2637 = vmatprep.subr.mxu0 0.0
  %2638 = vmatpush1.msra.mxu0 0.0
  %2639 = vmatprep.subr.mxu0 0.0
  %2640 = vmatpush1.msra.mxu0 0.0
  %2641 = vmatprep.subr.mxu0 0.0
  %2642 = vmatpush1.msra.mxu0 0.0
  %2643 = vmatprep.subr.mxu0 0.0
  %2644 = vmatpush1.msra.mxu0 0.0
  %2645 = vmatprep.subr.mxu0 0.0
  %2646 = vmatpush1.msra.mxu0 0.0
  %2647 = vmatprep.subr.mxu0 0.0
  %2648 = vmatpush1.msra.mxu0 0.0
  %2649 = vmatprep.subr.mxu0 0.0
  %2650 = vmatpush1.msra.mxu0 0.0
  %2651 = vmatprep.subr.mxu0 0.0
  %2652 = vmatpush1.msra.mxu0 %v2361
  %2653 = vmatprep.subr.mxu0 0.0
  %2654 = vmatpush2.msra.mxu0 0.0
  %2655 = vmatprep.subr.mxu0 0.0
  %2656 = vmatpush2.msra.mxu0 0.0
  %2657 = vmatprep.subr.mxu0 0.0
  %2658 = vmatpush2.msra.mxu0 0.0
  %2659 = vmatprep.subr.mxu0 0.0
  %2660 = vmatpush2.msra.mxu0 0.0
  %2661 = vmatprep.subr.mxu0 0.0
  %2662 = vmatpush2.msra.mxu0 0.0
  %2663 = vmatprep.subr.mxu0 0.0
  %2664 = vmatpush2.msra.mxu0 0.0
  %2665 = vmatprep.subr.mxu0 0.0
  %2666 = vmatpush2.msra.mxu0 0.0
  %2667 = vmatprep.subr.mxu0 0.0
  %2668 = vmatpush2.msra.mxu0 0.0
  %2669 = vmatprep.subr.mxu0 0.0
  %2670 = vmatpush2.msra.mxu0 0.0
  %2671 = vmatprep.subr.mxu0 0.0
  %2672 = vmatpush2.msra.mxu0 0.0
  %2673 = vmatprep.subr.mxu0 0.0
  %2674 = vmatpush2.msra.mxu0 0.0
  %2675 = vmatprep.subr.mxu0 0.0
  %2676 = vmatpush2.msra.mxu0 0.0
  %2677 = vmatprep.subr.mxu0 0.0
  %2678 = vmatpush2.msra.mxu0 0.0
  %2679 = vmatprep.subr.mxu0 0.0
  %2680 = vmatpush2.msra.mxu0 0.0
  %2681 = vmatprep.subr.mxu0 0.0
  %2682 = vmatpush2.msra.mxu0 0.0
  %2683 = vmatprep.subr.mxu0 0.0
  %2684 = vmatpush2.msra.mxu0 0.0
  %2685 = vmatprep.mubr.f32.mxu0 0.0
  %2686 = vmatmul.mubr.f32.gmra.mxu0 %v2616
  %v2687 = vpop.f32.mrf.mxu0
  %v2688 = vadd.f32 0.0, %v2687
  %v2689 = vpop.f32.mrf.mxu0
  %2690 = vmatprep.mubr.f32.mxu0 0.0
  %2691 = vmatmul.mubr.f32.gmra.mxu0 %v2619
  %v2692 = vpop.f32.mrf.mxu0
  %v2693 = vadd.f32 0.0, %v2692
  %v2694 = vpop.f32.mrf.mxu0
  %2695 = vdwg.mxu0
  %v2696 = vadd.f32 %v2598, %v102
  %v2697 = vadd.f32 %v2599, %v103
  %v2698 = vsub.f32 %v2696, %v2688
  %v2699 = vsub.f32 %v2697, %v2693
  %v2700 = vmul.f32 %v2698, 1.442695
  %v2701 = vpow.pop %v2700
  %v2702 = vmul.f32 %v2699, 1.442695
  %v2703 = vpow.pop %v2702
  %v2705 = vsel %vm18, %v2105, 0
  %v2708 = vsel %vm18, %v2106, 0
  %v2711 = vsel %vm18, %v2107, 0
  %v2714 = vsel %vm18, %v2108, 0
  %2716 = vmatprep.subr.mxu0 0.0
  %2717 = vmatpush1.msra.mxu0 0.0
  %2718 = vmatprep.subr.mxu0 0.0
  %2719 = vmatpush1.msra.mxu0 0.0
  %2720 = vmatprep.subr.mxu0 0.0
  %2721 = vmatpush1.msra.mxu0 0.0
  %2722 = vmatprep.subr.mxu0 0.0
  %2723 = vmatpush1.msra.mxu0 0.0
  %2724 = vmatprep.subr.mxu0 0.0
  %2725 = vmatpush1.msra.mxu0 0.0
  %2726 = vmatprep.subr.mxu0 0.0
  %2727 = vmatpush1.msra.mxu0 0.0
  %2728 = vmatprep.subr.mxu0 0.0
  %2729 = vmatpush1.msra.mxu0 0.0
  %2730 = vmatprep.subr.mxu0 0.0
  %2731 = vmatpush1.msra.mxu0 0.0
  %2732 = vmatprep.subr.mxu0 0.0
  %2733 = vmatpush1.msra.mxu0 0.0
  %2734 = vmatprep.subr.mxu0 0.0
  %2735 = vmatpush1.msra.mxu0 0.0
  %2736 = vmatprep.subr.mxu0 0.0
  %2737 = vmatpush1.msra.mxu0 0.0
  %2738 = vmatprep.subr.mxu0 0.0
  %2739 = vmatpush1.msra.mxu0 0.0
  %2740 = vmatprep.subr.mxu0 0.0
  %2741 = vmatpush1.msra.mxu0 0.0
  %2742 = vmatprep.subr.mxu0 0.0
  %2743 = vmatpush1.msra.mxu0 0.0
  %2744 = vmatprep.subr.mxu0 0.0
  %2745 = vmatpush1.msra.mxu0 %v2192
  %2746 = vmatprep.subr.mxu0 0.0
  %2747 = vmatpush1.msra.mxu0 %v2187
  %2748 = vmatprep.subr.mxu0 0.0
  %2749 = vmatpush2.msra.mxu0 0.0
  %2750 = vmatprep.subr.mxu0 0.0
  %2751 = vmatpush2.msra.mxu0 0.0
  %2752 = vmatprep.subr.mxu0 0.0
  %2753 = vmatpush2.msra.mxu0 0.0
  %2754 = vmatprep.subr.mxu0 0.0
  %2755 = vmatpush2.msra.mxu0 0.0
  %2756 = vmatprep.subr.mxu0 0.0
  %2757 = vmatpush2.msra.mxu0 0.0
  %2758 = vmatprep.subr.mxu0 0.0
  %2759 = vmatpush2.msra.mxu0 0.0
  %2760 = vmatprep.subr.mxu0 0.0
  %2761 = vmatpush2.msra.mxu0 0.0
  %2762 = vmatprep.subr.mxu0 0.0
  %2763 = vmatpush2.msra.mxu0 0.0
  %2764 = vmatprep.subr.mxu0 0.0
  %2765 = vmatpush2.msra.mxu0 0.0
  %2766 = vmatprep.subr.mxu0 0.0
  %2767 = vmatpush2.msra.mxu0 0.0
  %2768 = vmatprep.subr.mxu0 0.0
  %2769 = vmatpush2.msra.mxu0 0.0
  %2770 = vmatprep.subr.mxu0 0.0
  %2771 = vmatpush2.msra.mxu0 0.0
  %2772 = vmatprep.subr.mxu0 0.0
  %2773 = vmatpush2.msra.mxu0 0.0
  %2774 = vmatprep.subr.mxu0 0.0
  %2775 = vmatpush2.msra.mxu0 0.0
  %2776 = vmatprep.subr.mxu0 0.0
  %2777 = vmatpush2.msra.mxu0 0.0
  %2778 = vmatprep.subr.mxu0 0.0
  %2779 = vmatpush2.msra.mxu0 0.0
  %2780 = vmatprep.mubr.f32.mxu0 0.0
  %2781 = vmatmul.mubr.f32.gmra.mxu0 %v2705
  %v2782 = vpop.f32.mrf.mxu0
  %v2783 = vadd.f32 0.0, %v2782
  %v2784 = vpop.f32.mrf.mxu0
  %2785 = vmatprep.mubr.f32.mxu0 0.0
  %2786 = vmatmul.mubr.f32.gmra.mxu0 %v2708
  %v2787 = vpop.f32.mrf.mxu0
  %v2788 = vadd.f32 0.0, %v2787
  %v2789 = vpop.f32.mrf.mxu0
  %2790 = vmatprep.mubr.f32.mxu0 0.0
  %2791 = vmatmul.mubr.f32.gmra.mxu0 %v2711
  %v2792 = vpop.f32.mrf.mxu0
  %v2793 = vadd.f32 0.0, %v2792
  %v2794 = vpop.f32.mrf.mxu0
  %2795 = vmatprep.mubr.f32.mxu0 0.0
  %2796 = vmatmul.mubr.f32.gmra.mxu0 %v2714
  %v2797 = vpop.f32.mrf.mxu0
  %v2798 = vadd.f32 0.0, %v2797
  %v2799 = vpop.f32.mrf.mxu0
  %2800 = vdwg.mxu0
  %v2801 = vmul.f32 %v2783, %v2109
  %v2802 = vmul.f32 %v2788, %v2110
  %v2803 = vmul.f32 %v2793, %v2111
  %v2804 = vmul.f32 %v2798, %v2112
  %v2806 = vsel %vm216, %v2701, 0
  %v2809 = vsel %vm216, %v2703, 0
  %2811 = vmatprep.subr.mxu0 0.0
  %2812 = vmatpush1.msra.mxu0 0.0
  %2813 = vmatprep.subr.mxu0 0.0
  %2814 = vmatpush1.msra.mxu0 0.0
  %2815 = vmatprep.subr.mxu0 0.0
  %2816 = vmatpush1.msra.mxu0 0.0
  %2817 = vmatprep.subr.mxu0 0.0
  %2818 = vmatpush1.msra.mxu0 0.0
  %2819 = vmatprep.subr.mxu0 0.0
  %2820 = vmatpush1.msra.mxu0 0.0
  %2821 = vmatprep.subr.mxu0 0.0
  %2822 = vmatpush1.msra.mxu0 0.0
  %2823 = vmatprep.subr.mxu0 0.0
  %2824 = vmatpush1.msra.mxu0 0.0
  %2825 = vmatprep.subr.mxu0 0.0
  %2826 = vmatpush1.msra.mxu0 0.0
  %2827 = vmatprep.subr.mxu0 0.0
  %2828 = vmatpush1.msra.mxu0 0.0
  %2829 = vmatprep.subr.mxu0 0.0
  %2830 = vmatpush1.msra.mxu0 0.0
  %2831 = vmatprep.subr.mxu0 0.0
  %2832 = vmatpush1.msra.mxu0 0.0
  %2833 = vmatprep.subr.mxu0 0.0
  %2834 = vmatpush1.msra.mxu0 0.0
  %2835 = vmatprep.subr.mxu0 0.0
  %2836 = vmatpush1.msra.mxu0 %v2804
  %2837 = vmatprep.subr.mxu0 0.0
  %2838 = vmatpush1.msra.mxu0 %v2803
  %2839 = vmatprep.subr.mxu0 0.0
  %2840 = vmatpush1.msra.mxu0 %v2802
  %2841 = vmatprep.subr.mxu0 0.0
  %2842 = vmatpush1.msra.mxu0 %v2801
  %2843 = vmatprep.subr.mxu0 0.0
  %2844 = vmatpush2.msra.mxu0 0.0
  %2845 = vmatprep.subr.mxu0 0.0
  %2846 = vmatpush2.msra.mxu0 0.0
  %2847 = vmatprep.subr.mxu0 0.0
  %2848 = vmatpush2.msra.mxu0 0.0
  %2849 = vmatprep.subr.mxu0 0.0
  %2850 = vmatpush2.msra.mxu0 0.0
  %2851 = vmatprep.subr.mxu0 0.0
  %2852 = vmatpush2.msra.mxu0 0.0
  %2853 = vmatprep.subr.mxu0 0.0
  %2854 = vmatpush2.msra.mxu0 0.0
  %2855 = vmatprep.subr.mxu0 0.0
  %2856 = vmatpush2.msra.mxu0 0.0
  %2857 = vmatprep.subr.mxu0 0.0
  %2858 = vmatpush2.msra.mxu0 0.0
  %2859 = vmatprep.subr.mxu0 0.0
  %2860 = vmatpush2.msra.mxu0 0.0
  %2861 = vmatprep.subr.mxu0 0.0
  %2862 = vmatpush2.msra.mxu0 0.0
  %2863 = vmatprep.subr.mxu0 0.0
  %2864 = vmatpush2.msra.mxu0 0.0
  %2865 = vmatprep.subr.mxu0 0.0
  %2866 = vmatpush2.msra.mxu0 0.0
  %2867 = vmatprep.subr.mxu0 0.0
  %2868 = vmatpush2.msra.mxu0 0.0
  %2869 = vmatprep.subr.mxu0 0.0
  %2870 = vmatpush2.msra.mxu0 0.0
  %2871 = vmatprep.subr.mxu0 0.0
  %2872 = vmatpush2.msra.mxu0 0.0
  %2873 = vmatprep.subr.mxu0 0.0
  %2874 = vmatpush2.msra.mxu0 0.0
  %2875 = vmatprep.mubr.f32.mxu0 0.0
  %2876 = vmatmul.mubr.f32.gmra.mxu0 %v2806
  %v2877 = vpop.f32.mrf.mxu0
  %v2878 = vadd.f32 0.0, %v2877
  %v2879 = vpop.f32.mrf.mxu0
  %2880 = vmatprep.mubr.f32.mxu0 0.0
  %2881 = vmatmul.mubr.f32.gmra.mxu0 %v2809
  %v2882 = vpop.f32.mrf.mxu0
  %v2883 = vadd.f32 0.0, %v2882
  %v2884 = vpop.f32.mrf.mxu0
  %2885 = vdwg.mxu0
  %v2886 = vsel %vm216, %v2104, 0
  %2888 = vmatprep.subr.mxu0 0.0
  %2889 = vmatpush1.xpose.msra.mxu0 0.0
  %2890 = vmatprep.subr.mxu0 0.0
  %2891 = vmatpush1.xpose.msra.mxu0 0.0
  %2892 = vmatprep.subr.mxu0 0.0
  %2893 = vmatpush1.xpose.msra.mxu0 0.0
  %2894 = vmatprep.subr.mxu0 0.0
  %2895 = vmatpush1.xpose.msra.mxu0 0.0
  %2896 = vmatprep.subr.mxu0 0.0
  %2897 = vmatpush1.xpose.msra.mxu0 0.0
  %2898 = vmatprep.subr.mxu0 0.0
  %2899 = vmatpush1.xpose.msra.mxu0 0.0
  %2900 = vmatprep.subr.mxu0 0.0
  %2901 = vmatpush1.xpose.msra.mxu0 0.0
  %2902 = vmatprep.subr.mxu0 0.0
  %2903 = vmatpush1.xpose.msra.mxu0 0.0
  %2904 = vmatprep.subr.mxu0 0.0
  %2905 = vmatpush1.xpose.msra.mxu0 0.0
  %2906 = vmatprep.subr.mxu0 0.0
  %2907 = vmatpush1.xpose.msra.mxu0 0.0
  %2908 = vmatprep.subr.mxu0 0.0
  %2909 = vmatpush1.xpose.msra.mxu0 0.0
  %2910 = vmatprep.subr.mxu0 0.0
  %2911 = vmatpush1.xpose.msra.mxu0 0.0
  %2912 = vmatprep.subr.mxu0 0.0
  %2913 = vmatpush1.xpose.msra.mxu0 0.0
  %2914 = vmatprep.subr.mxu0 0.0
  %2915 = vmatpush1.xpose.msra.mxu0 0.0
  %2916 = vmatprep.subr.mxu0 0.0
  %2917 = vmatpush1.xpose.msra.mxu0 0.0
  %2918 = vmatprep.subr.mxu0 0.0
  %2919 = vmatpush1.xpose.msra.mxu0 %v2886
  %2920 = vmatprep.subr.mxu0 0.0
  %2921 = vmatpush2.xpose.msra.mxu0 0.0
  %2922 = vmatprep.subr.mxu0 0.0
  %2923 = vmatpush2.xpose.msra.mxu0 0.0
  %2924 = vmatprep.subr.mxu0 0.0
  %2925 = vmatpush2.xpose.msra.mxu0 0.0
  %2926 = vmatprep.subr.mxu0 0.0
  %2927 = vmatpush2.xpose.msra.mxu0 0.0
  %2928 = vmatprep.subr.mxu0 0.0
  %2929 = vmatpush2.xpose.msra.mxu0 0.0
  %2930 = vmatprep.subr.mxu0 0.0
  %2931 = vmatpush2.xpose.msra.mxu0 0.0
  %2932 = vmatprep.subr.mxu0 0.0
  %2933 = vmatpush2.xpose.msra.mxu0 0.0
  %2934 = vmatprep.subr.mxu0 0.0
  %2935 = vmatpush2.xpose.msra.mxu0 0.0
  %2936 = vmatprep.subr.mxu0 0.0
  %2937 = vmatpush2.xpose.msra.mxu0 0.0
  %2938 = vmatprep.subr.mxu0 0.0
  %2939 = vmatpush2.xpose.msra.mxu0 0.0
  %2940 = vmatprep.subr.mxu0 0.0
  %2941 = vmatpush2.xpose.msra.mxu0 0.0
  %2942 = vmatprep.subr.mxu0 0.0
  %2943 = vmatpush2.xpose.msra.mxu0 0.0
  %2944 = vmatprep.subr.mxu0 0.0
  %2945 = vmatpush2.xpose.msra.mxu0 0.0
  %2946 = vmatprep.subr.mxu0 0.0
  %2947 = vmatpush2.xpose.msra.mxu0 0.0
  %2948 = vmatprep.subr.mxu0 0.0
  %2949 = vmatpush2.xpose.msra.mxu0 0.0
  %2950 = vmatprep.subr.mxu0 0.0
  %2951 = vmatpush2.xpose.msra.mxu0 0.0
  %2952 = vmatprep.mubr.f32.mxu0 0.0
  %2953 = vmatmul.mubr.f32.gmra.mxu0 %v2806
  %v2954 = vpop.f32.mrf.mxu0
  %v2955 = vadd.f32 0.0, %v2954
  %v2956 = vpop.f32.mrf.mxu0
  %2957 = vmatprep.mubr.f32.mxu0 0.0
  %2958 = vmatmul.mubr.f32.gmra.mxu0 %v2809
  %v2959 = vpop.f32.mrf.mxu0
  %v2960 = vadd.f32 0.0, %v2959
  %v2961 = vpop.f32.mrf.mxu0
  %2962 = vdwg.mxu0
  %v2963 = vrcp.pop %v2955
  %v2964 = vrcp.pop %v2960
  %v2966 = vsel %vm2352, %v2963, 0
  %v2969 = vsel %vm2352, %v2964, 0
  %v2972 = vsel %vm2359, %v2113, 0
  %2974 = vmatprep.subr.mxu0 0.0
  %2975 = vmatpush1.msra.mxu0 0.0
  %2976 = vmatprep.subr.mxu0 0.0
  %2977 = vmatpush1.msra.mxu0 0.0
  %2978 = vmatprep.subr.mxu0 0.0
  %2979 = vmatpush1.msra.mxu0 0.0
  %2980 = vmatprep.subr.mxu0 0.0
  %2981 = vmatpush1.msra.mxu0 0.0
  %2982 = vmatprep.subr.mxu0 0.0
  %2983 = vmatpush1.msra.mxu0 0.0
  %2984 = vmatprep.subr.mxu0 0.0
  %2985 = vmatpush1.msra.mxu0 0.0
  %2986 = vmatprep.subr.mxu0 0.0
  %2987 = vmatpush1.msra.mxu0 0.0
  %2988 = vmatprep.subr.mxu0 0.0
  %2989 = vmatpush1.msra.mxu0 0.0
  %2990 = vmatprep.subr.mxu0 0.0
  %2991 = vmatpush1.msra.mxu0 0.0
  %2992 = vmatprep.subr.mxu0 0.0
  %2993 = vmatpush1.msra.mxu0 0.0
  %2994 = vmatprep.subr.mxu0 0.0
  %2995 = vmatpush1.msra.mxu0 0.0
  %2996 = vmatprep.subr.mxu0 0.0
  %2997 = vmatpush1.msra.mxu0 0.0
  %2998 = vmatprep.subr.mxu0 0.0
  %2999 = vmatpush1.msra.mxu0 0.0
  %3000 = vmatprep.subr.mxu0 0.0
  %3001 = vmatpush1.msra.mxu0 0.0
  %3002 = vmatprep.subr.mxu0 0.0
  %3003 = vmatpush1.msra.mxu0 0.0
  %3004 = vmatprep.subr.mxu0 0.0
  %3005 = vmatpush1.msra.mxu0 %v2972
  %3006 = vmatprep.subr.mxu0 0.0
  %3007 = vmatpush2.msra.mxu0 0.0
  %3008 = vmatprep.subr.mxu0 0.0
  %3009 = vmatpush2.msra.mxu0 0.0
  %3010 = vmatprep.subr.mxu0 0.0
  %3011 = vmatpush2.msra.mxu0 0.0
  %3012 = vmatprep.subr.mxu0 0.0
  %3013 = vmatpush2.msra.mxu0 0.0
  %3014 = vmatprep.subr.mxu0 0.0
  %3015 = vmatpush2.msra.mxu0 0.0
  %3016 = vmatprep.subr.mxu0 0.0
  %3017 = vmatpush2.msra.mxu0 0.0
  %3018 = vmatprep.subr.mxu0 0.0
  %3019 = vmatpush2.msra.mxu0 0.0
  %3020 = vmatprep.subr.mxu0 0.0
  %3021 = vmatpush2.msra.mxu0 0.0
  %3022 = vmatprep.subr.mxu0 0.0
  %3023 = vmatpush2.msra.mxu0 0.0
  %3024 = vmatprep.subr.mxu0 0.0
  %3025 = vmatpush2.msra.mxu0 0.0
  %3026 = vmatprep.subr.mxu0 0.0
  %3027 = vmatpush2.msra.mxu0 0.0
  %3028 = vmatprep.subr.mxu0 0.0
  %3029 = vmatpush2.msra.mxu0 0.0
  %3030 = vmatprep.subr.mxu0 0.0
  %3031 = vmatpush2.msra.mxu0 0.0
  %3032 = vmatprep.subr.mxu0 0.0
  %3033 = vmatpush2.msra.mxu0 0.0
  %3034 = vmatprep.subr.mxu0 0.0
  %3035 = vmatpush2.msra.mxu0 0.0
  %3036 = vmatprep.subr.mxu0 0.0
  %3037 = vmatpush2.msra.mxu0 0.0
  %3038 = vmatprep.mubr.f32.mxu0 0.0
  %3039 = vmatmul.mubr.f32.gmra.mxu0 %v2966
  %v3040 = vpop.f32.mrf.mxu0
  %v3041 = vadd.f32 0.0, %v3040
  %v3042 = vpop.f32.mrf.mxu0
  %3043 = vmatprep.mubr.f32.mxu0 0.0
  %3044 = vmatmul.mubr.f32.gmra.mxu0 %v2969
  %v3045 = vpop.f32.mrf.mxu0
  %v3046 = vadd.f32 0.0, %v3045
  %v3047 = vpop.f32.mrf.mxu0
  %3048 = vdwg.mxu0
  %v3049 = vmul.f32 %v2878, %v3041
  %v3050 = vmul.f32 %v2883, %v3046
  %v3051 = vlaneseq
  %v3052 = vshrl.u32 %v3051, 7
  %v3053 = vsub.s32 0, %v3052
  %v3054 = vrot.slane %v2103, %v3053
  %v3055 = vadd.f32 %v3049, %v3054
  %v3056 = vadd.f32 %v3050, %v3054
  %v3057 = vld [vmem:[%s2 + $0xf8] sm:$0xff]
  %v3058 = vld [vmem:[%s2 + $0x100] sm:$0xff]
  %v3059 = vld [vmem:[%s2 + $0x108] sm:$0xff]
  %v3060 = vld [vmem:[%s2 + $0x110] sm:$0xff]
  %3061 = vmatprep.subr.mxu0 0.0
  %3062 = vmatpush1.msra.mxu0 0.0
  %3063 = vmatprep.subr.mxu0 0.0
  %3064 = vmatpush1.msra.mxu0 0.0
  %3065 = vmatprep.subr.mxu0 0.0
  %3066 = vmatpush1.msra.mxu0 0.0
  %3067 = vmatprep.subr.mxu0 0.0
  %3068 = vmatpush1.msra.mxu0 0.0
  %3069 = vmatprep.subr.mxu0 0.0
  %3070 = vmatpush1.msra.mxu0 0.0
  %3071 = vmatprep.subr.mxu0 0.0
  %3072 = vmatpush1.msra.mxu0 0.0
  %3073 = vmatprep.subr.mxu0 0.0
  %3074 = vmatpush1.msra.mxu0 0.0
  %3075 = vmatprep.subr.mxu0 0.0
  %3076 = vmatpush1.msra.mxu0 0.0
  %3077 = vmatprep.subr.mxu0 0.0
  %3078 = vmatpush1.msra.mxu0 0.0
  %3079 = vmatprep.subr.mxu0 0.0
  %3080 = vmatpush1.msra.mxu0 0.0
  %3081 = vmatprep.subr.mxu0 0.0
  %3082 = vmatpush1.msra.mxu0 0.0
  %3083 = vmatprep.subr.mxu0 0.0
  %3084 = vmatpush1.msra.mxu0 0.0
  %3085 = vmatprep.subr.mxu0 0.0
  %3086 = vmatpush1.msra.mxu0 %v3060
  %3087 = vmatprep.subr.mxu0 0.0
  %3088 = vmatpush1.msra.mxu0 %v3059
  %3089 = vmatprep.subr.mxu0 0.0
  %3090 = vmatpush1.msra.mxu0 %v3058
  %3091 = vmatprep.subr.mxu0 0.0
  %3092 = vmatpush1.msra.mxu0 %v3057
  %3093 = vmatprep.subr.mxu0 0.0
  %3094 = vmatpush2.msra.mxu0 0.0
  %3095 = vmatprep.subr.mxu0 0.0
  %3096 = vmatpush2.msra.mxu0 0.0
  %3097 = vmatprep.subr.mxu0 0.0
  %3098 = vmatpush2.msra.mxu0 0.0
  %3099 = vmatprep.subr.mxu0 0.0
  %3100 = vmatpush2.msra.mxu0 0.0
  %3101 = vmatprep.subr.mxu0 0.0
  %3102 = vmatpush2.msra.mxu0 0.0
  %3103 = vmatprep.subr.mxu0 0.0
  %3104 = vmatpush2.msra.mxu0 0.0
  %3105 = vmatprep.subr.mxu0 0.0
  %3106 = vmatpush2.msra.mxu0 0.0
  %3107 = vmatprep.subr.mxu0 0.0
  %3108 = vmatpush2.msra.mxu0 0.0
  %3109 = vmatprep.subr.mxu0 0.0
  %3110 = vmatpush2.msra.mxu0 0.0
  %3111 = vmatprep.subr.mxu0 0.0
  %3112 = vmatpush2.msra.mxu0 0.0
  %3113 = vmatprep.subr.mxu0 0.0
  %3114 = vmatpush2.msra.mxu0 0.0
  %3115 = vmatprep.subr.mxu0 0.0
  %3116 = vmatpush2.msra.mxu0 0.0
  %3117 = vmatprep.subr.mxu0 0.0
  %3118 = vmatpush2.msra.mxu0 0.0
  %3119 = vmatprep.subr.mxu0 0.0
  %3120 = vmatpush2.msra.mxu0 0.0
  %3121 = vmatprep.subr.mxu0 0.0
  %3122 = vmatpush2.msra.mxu0 0.0
  %3123 = vmatprep.subr.mxu0 0.0
  %3124 = vmatpush2.msra.mxu0 0.0
  %3125 = vmatprep.mubr.f32.mxu0 0.0
  %3126 = vmatmul.mubr.f32.gmra.mxu0 %v2115
  %v3127 = vpop.f32.mrf.mxu0
  %v3128 = vadd.f32 0.0, %v3127
  %v3129 = vpop.f32.mrf.mxu0
  %3130 = vmatprep.mubr.f32.mxu0 0.0
  %3131 = vmatmul.mubr.f32.gmra.mxu0 %v2118
  %v3132 = vpop.f32.mrf.mxu0
  %v3133 = vadd.f32 0.0, %v3132
  %v3134 = vpop.f32.mrf.mxu0
  %3135 = vdwg.mxu0
  %v3136 = vadd.f32 %v3055, %v3128
  %v3137 = vadd.f32 %v3056, %v3133
  %3140 = vrot.lane.b32.xlu0 %v3136, 124
  %v3141 = vpop.permute.xlu0 %3140
  %3142 = vrot.lane.b32.xlu0 %v3137, 124
  %v3143 = vpop.permute.xlu0 %3142
  %v3146 = vadd.f32 %v3136, %v3141
  %v3147 = vadd.f32 %v3137, %v3143
  %v3148 = vmul.f32 %v3146, 0.5
  %v3149 = vmul.f32 %v3147, 0.5
  %3150 = vst.msk [vmem:[%s3] sm:$0xff] %vm373, %v3148
  %3151 = vst.msk [vmem:[%s3 + $0x8] sm:$0xff] %vm373, %v3149
  // Predicated region
  $region14: #{tpu_custom_call.1} parent=0 // pred_check
    _
  $region15: #{tpu_custom_call.1} parent=0 // pred_check_branch
    %3153 = sbr.rel (0) target = $region17
  $region16: #{tpu_custom_call.1} parent=0 // pred_region
    _
  $region17: #{tpu_custom_call.1} parent=0 // pred_fallthru
    _
  // Predicated region
  $region18: #{tpu_custom_call.1} parent=0 // pred_check
    _
  $region19: #{tpu_custom_call.1} parent=0 // pred_check_branch
    %3155 = sbr.rel (0) target = $region21
  $region20: #{tpu_custom_call.1} parent=0 // pred_region
    _
  $region21: #{tpu_custom_call.1} parent=0 // pred_fallthru
    _

</llo_original>
